<compile_context>
chip_gen: v7x
topology: tpu7x:2x2x1
jax: 0.10.0
libtpu: 0.0.40
codegen_flags: <defaults>
</compile_context>

<pallas_src>
import math

import jax
import jax.numpy as jnp
from jax.experimental import pallas as pl
from jax.experimental.pallas import tpu as pltpu


def _actor_kernel(x_ref, w1_ref, b1_ref, w2_ref, b2_ref, w3_ref, b3_ref, o_ref):
    # x arrives f32 and is cast to bf16 in-kernel (no extra HBM pass in the
    # wrapper).  Weights are bf16, biases f32; every dot accumulates in f32
    # and all element-wise math runs in f32 (v5e has no bf16 VPU/EUP).
    x = x_ref[...].astype(jnp.bfloat16)

    # fc1 + leaky_relu (negative_slope = 0.01, PyTorch default)
    h1 = jnp.dot(x, w1_ref[...], preferred_element_type=jnp.float32) + b1_ref[...]
    h1 = jnp.maximum(h1, 0.01 * h1)

    # fc2 + leaky_relu
    h2 = jnp.dot(h1.astype(jnp.bfloat16), w2_ref[...],
                 preferred_element_type=jnp.float32) + b2_ref[...]
    h2 = jnp.maximum(h2, 0.01 * h2)

    # actor head + softmax over the action dimension (dim=1).
    # Padded action columns carry a -1e9 bias -> exp underflows to exact 0.
    logits = jnp.dot(h2.astype(jnp.bfloat16), w3_ref[...],
                     preferred_element_type=jnp.float32) + b3_ref[...]
    m = jnp.max(logits, axis=-1, keepdims=True)
    e = jnp.exp(logits - m)
    denom = jnp.sum(e, axis=-1, keepdims=True)
    o_ref[...] = e / denom          # exact normalization (rows sum to 1)


def _round_up(x, m):
    return ((x + m - 1) // m) * m


def prepare_actor_params(params):
    """One-time conversion of PyTorch-layout params into kernel layout.

    Weights -> bf16, transposed to [in, out].  Only the action head is padded
    (to one 128-lane tile); padded logit columns get a -1e9 bias.  Call once
    after init/loading; `actor_forward` takes the result.
    """
    w1, b1 = params["w1"], params["b1"]   # w1: [1024, D]
    w2, b2 = params["w2"], params["b2"]   # w2: [512, 1024]
    w3, b3 = params["w3"], params["b3"]   # w3: [A, 512]

    H1, D = w1.shape
    H2 = w2.shape[0]
    A = w3.shape[0]
    A_pad = _round_up(A, 128)

    w1_t = w1.T.astype(jnp.bfloat16)                      # [D, 1024] (unpadded K)
    b1_r = b1.reshape(1, H1).astype(jnp.float32)

    w2_t = w2.T.astype(jnp.bfloat16)                      # [1024, 512]
    b2_r = b2.reshape(1, H2).astype(jnp.float32)

    w3_t = jnp.zeros((H2, A_pad), jnp.bfloat16).at[:, :A].set(
        w3.T.astype(jnp.bfloat16))                        # [512, A_pad]
    b3_r = jnp.full((1, A_pad), -1e9, jnp.float32).at[0, :A].set(
        b3.astype(jnp.float32))

    return {
        "w1_t": w1_t, "b1_r": b1_r,
        "w2_t": w2_t, "b2_r": b2_r,
        "w3_t": w3_t, "b3_r": b3_r,
        "D": D, "A": A, "A_pad": A_pad, "H1": H1, "H2": H2,
    }


def actor_forward(x, prepped):
    """x: [B, D] float32. prepped: output of prepare_actor_params.

    Returns softmax probabilities [B, num_actions] (float32).
    """
    D, A, A_pad = prepped["D"], prepped["A"], prepped["A_pad"]
    H1, H2 = prepped["H1"], prepped["H2"]

    B = x.shape[0]
    assert x.shape[1] == D

    # Batch tile: one step for B <= 512 (small-batch latency case stays on a
    # single TensorCore so the resident weights are fetched once); 512-row
    # tiles otherwise, sharded across TCs via "parallel" semantics.
    TB = 512 if B > 512 else B
    n_b = pl.cdiv(B, TB)

    const_map = lambda i: (0, 0)
    single = pl.Buffered(1)   # constant-index blocks: no double buffering

    out = pl.pallas_call(
        _actor_kernel,
        out_shape=jax.ShapeDtypeStruct((B, A_pad), jnp.float32),
        grid_spec=pltpu.PrefetchScalarGridSpec(
            num_scalar_prefetch=0,
            grid=(n_b,),
            in_specs=[
                pl.BlockSpec((TB, D), lambda i: (i, 0)),                      # x rows
                pl.BlockSpec((D, H1), const_map, pipeline_mode=single),       # w1
                pl.BlockSpec((1, H1), const_map, pipeline_mode=single),       # b1
                pl.BlockSpec((H1, H2), const_map, pipeline_mode=single),      # w2
                pl.BlockSpec((1, H2), const_map, pipeline_mode=single),       # b2
                pl.BlockSpec((H2, A_pad), const_map, pipeline_mode=single),   # w3
                pl.BlockSpec((1, A_pad), const_map, pipeline_mode=single),    # b3
            ],
            out_specs=pl.BlockSpec((TB, A_pad), lambda i: (i, 0)),
        ),
        compiler_params=pltpu.CompilerParams(
            dimension_semantics=("parallel",),
            vmem_limit_bytes=32 << 20,
        ),
    )(x, prepped["w1_t"], prepped["b1_r"], prepped["w2_t"], prepped["b2_r"],
      prepped["w3_t"], prepped["b3_r"])

    return out[:, :A]


def init_actor_params(key, input_shape, num_actions):
    """Deterministic parameter init mirroring the PyTorch module's shapes/init."""
    channels, height, width = input_shape
    d = channels * height * width + 4
    k1, k2, k3, k4, k5, k6 = jax.random.split(key, 6)

    # fc1 / fc2 weights ~ N(0, 0.1) as in the module; biases use the default
    # nn.Linear init U(-1/sqrt(fan_in), 1/sqrt(fan_in)).
    w1 = 0.1 * jax.random.normal(k1, (1024, d), jnp.float32)
    b1 = jax.random.uniform(k2, (1024,), jnp.float32,
                            -1.0 / math.sqrt(d), 1.0 / math.sqrt(d))
    w2 = 0.1 * jax.random.normal(k3, (512, 1024), jnp.float32)
    b2 = jax.random.uniform(k4, (512,), jnp.float32,
                            -1.0 / math.sqrt(1024), 1.0 / math.sqrt(1024))
    bound3 = 1.0 / math.sqrt(512)
    w3 = jax.random.uniform(k5, (num_actions, 512), jnp.float32, -bound3, bound3)
    b3 = jax.random.uniform(k6, (num_actions,), jnp.float32, -bound3, bound3)

    return {"w1": w1, "b1": b1, "w2": w2, "b2": b2, "w3": w3, "b3": b3}


if __name__ == "__main__":
    key = jax.random.PRNGKey(0)
    input_shape = (4, 16, 16)          # (channels, height, width)
    num_actions = 6
    batch = 2
    d = input_shape[0] * input_shape[1] * input_shape[2] + 4   # 1028

    kp, kx = jax.random.split(key)
    params = init_actor_params(kp, input_shape, num_actions)
    prepped = prepare_actor_params(params)          # one-time weight prep
    x = jax.random.normal(kx, (batch, d), jnp.float32)

    probs = actor_forward(x, prepped)
    probs = jax.block_until_ready(probs)

    # Reference with the same numerics (bf16 weights/activations into each dot,
    # f32 accumulation and element-wise math), plain JAX.
    def ref_bf16(x, p):
        h1 = jnp.dot(x.astype(jnp.bfloat16), p["w1"].T.astype(jnp.bfloat16),
                     preferred_element_type=jnp.float32) + p["b1"]
        h1 = jnp.where(h1 > 0, h1, 0.01 * h1)
        h2 = jnp.dot(h1.astype(jnp.bfloat16), p["w2"].T.astype(jnp.bfloat16),
                     preferred_element_type=jnp.float32) + p["b2"]
        h2 = jnp.where(h2 > 0, h2, 0.01 * h2)
        logits = jnp.dot(h2.astype(jnp.bfloat16), p["w3"].T.astype(jnp.bfloat16),
                         preferred_element_type=jnp.float32) + p["b3"]
        return jax.nn.softmax(logits, axis=1)

    ref_out = ref_bf16(x, params)
    assert probs.shape == (batch, num_actions)
    assert jnp.allclose(probs, ref_out, atol=5e-3, rtol=5e-3), (
        float(jnp.max(jnp.abs(probs - ref_out))))
    assert jnp.allclose(jnp.sum(probs, axis=1), 1.0, atol=1e-3)

    print("KERNEL_OK")
</pallas_src>

<mosaic_0001>
module attributes {stable_mosaic.version = 11 : i64} {
  func.func @_actor_kernel(%arg0: i32, %arg1: memref<2x1028xf32, #tpu.memory_space<vmem>>, %arg2: memref<1028x1024xbf16, #tpu.memory_space<vmem>>, %arg3: memref<1x1024xf32, #tpu.memory_space<vmem>>, %arg4: memref<1024x512xbf16, #tpu.memory_space<vmem>>, %arg5: memref<1x512xf32, #tpu.memory_space<vmem>>, %arg6: memref<512x128xbf16, #tpu.memory_space<vmem>>, %arg7: memref<1x128xf32, #tpu.memory_space<vmem>>, %arg8: memref<2x128xf32, #tpu.memory_space<vmem>>) attributes {dimension_semantics = [#tpu.dimension_semantics<parallel>], iteration_bounds = array<i64: 1>, scalar_prefetch = 0 : i64, scratch_operands = 0 : i64, tpu.core_type = #tpu.core_type<tc>, window_params = [{transform_indices = @transform_0, window_bounds = array<i64: 2, 1028>}, {pipeline_mode = #tpu.pipeline_mode<synchronous>, transform_indices = @transform_1, window_bounds = array<i64: 1028, 1024>}, {pipeline_mode = #tpu.pipeline_mode<synchronous>, transform_indices = @transform_2, window_bounds = array<i64: 1, 1024>}, {pipeline_mode = #tpu.pipeline_mode<synchronous>, transform_indices = @transform_3, window_bounds = array<i64: 1024, 512>}, {pipeline_mode = #tpu.pipeline_mode<synchronous>, transform_indices = @transform_4, window_bounds = array<i64: 1, 512>}, {pipeline_mode = #tpu.pipeline_mode<synchronous>, transform_indices = @transform_5, window_bounds = array<i64: 512, 128>}, {pipeline_mode = #tpu.pipeline_mode<synchronous>, transform_indices = @transform_6, window_bounds = array<i64: 1, 128>}, {transform_indices = @transform_7, window_bounds = array<i64: 2, 128>}]} {
    %c0 = arith.constant 0 : index
    %c0_0 = arith.constant 0 : index
    %0 = vector.load %arg1[%c0, %c0_0] : memref<2x1028xf32, #tpu.memory_space<vmem>>, vector<2x1028xf32>
    %1 = arith.truncf %0 : vector<2x1028xf32> to vector<2x1028xbf16>
    %c0_1 = arith.constant 0 : index
    %c0_2 = arith.constant 0 : index
    %2 = vector.load %arg2[%c0_1, %c0_2] : memref<1028x1024xbf16, #tpu.memory_space<vmem>>, vector<1028x1024xbf16>
    %cst = arith.constant dense<0.000000e+00> : vector<2x1024xf32>
    %3 = tpu.matmul %1, %2, %cst {dimension_numbers = #tpu.dot_dimension_numbers<[1], [0], [0], [1], [0, 0, 1, 1], [], []>} : vector<2x1028xbf16>, vector<1028x1024xbf16>, vector<2x1024xf32> -> vector<2x1024xf32>
    %c0_3 = arith.constant 0 : index
    %c0_4 = arith.constant 0 : index
    %4 = vector.load %arg3[%c0_3, %c0_4] : memref<1x1024xf32, #tpu.memory_space<vmem>>, vector<1x1024xf32>
    %5 = vector.broadcast %4 : vector<1x1024xf32> to vector<2x1024xf32>
    %6 = arith.addf %3, %5 : vector<2x1024xf32>
    %cst_5 = arith.constant 0.00999999977 : f32
    %7 = vector.broadcast %cst_5 : f32 to vector<2x1024xf32>
    %8 = arith.mulf %7, %6 : vector<2x1024xf32>
    %9 = arith.maximumf %6, %8 : vector<2x1024xf32>
    %10 = arith.truncf %9 : vector<2x1024xf32> to vector<2x1024xbf16>
    %c0_6 = arith.constant 0 : index
    %c0_7 = arith.constant 0 : index
    %11 = vector.load %arg4[%c0_6, %c0_7] : memref<1024x512xbf16, #tpu.memory_space<vmem>>, vector<1024x512xbf16>
    %cst_8 = arith.constant dense<0.000000e+00> : vector<2x512xf32>
    %12 = tpu.matmul %10, %11, %cst_8 {dimension_numbers = #tpu.dot_dimension_numbers<[1], [0], [0], [1], [0, 0, 1, 1], [], []>} : vector<2x1024xbf16>, vector<1024x512xbf16>, vector<2x512xf32> -> vector<2x512xf32>
    %c0_9 = arith.constant 0 : index
    %c0_10 = arith.constant 0 : index
    %13 = vector.load %arg5[%c0_9, %c0_10] : memref<1x512xf32, #tpu.memory_space<vmem>>, vector<1x512xf32>
    %14 = vector.broadcast %13 : vector<1x512xf32> to vector<2x512xf32>
    %15 = arith.addf %12, %14 : vector<2x512xf32>
    %cst_11 = arith.constant 0.00999999977 : f32
    %16 = vector.broadcast %cst_11 : f32 to vector<2x512xf32>
    %17 = arith.mulf %16, %15 : vector<2x512xf32>
    %18 = arith.maximumf %15, %17 : vector<2x512xf32>
    %19 = arith.truncf %18 : vector<2x512xf32> to vector<2x512xbf16>
    %c0_12 = arith.constant 0 : index
    %c0_13 = arith.constant 0 : index
    %20 = vector.load %arg6[%c0_12, %c0_13] : memref<512x128xbf16, #tpu.memory_space<vmem>>, vector<512x128xbf16>
    %cst_14 = arith.constant dense<0.000000e+00> : vector<2x128xf32>
    %21 = tpu.matmul %19, %20, %cst_14 {dimension_numbers = #tpu.dot_dimension_numbers<[1], [0], [0], [1], [0, 0, 1, 1], [], []>} : vector<2x512xbf16>, vector<512x128xbf16>, vector<2x128xf32> -> vector<2x128xf32>
    %c0_15 = arith.constant 0 : index
    %c0_16 = arith.constant 0 : index
    %22 = vector.load %arg7[%c0_15, %c0_16] : memref<1x128xf32, #tpu.memory_space<vmem>>, vector<1x128xf32>
    %23 = vector.broadcast %22 : vector<1x128xf32> to vector<2x128xf32>
    %24 = arith.addf %21, %23 : vector<2x128xf32>
    %cst_17 = arith.constant dense<0xFF800000> : vector<2xf32>
    %25 = vector.multi_reduction <maximumf>, %24, %cst_17 [1] : vector<2x128xf32> to vector<2xf32>
    %26 = vector.shape_cast %25 : vector<2xf32> to vector<2x1xf32>
    %27 = vector.broadcast %26 : vector<2x1xf32> to vector<2x128xf32>
    %28 = arith.subf %24, %27 : vector<2x128xf32>
    %29 = math.exp %28 : vector<2x128xf32>
    %cst_18 = arith.constant dense<0.000000e+00> : vector<2xf32>
    %30 = vector.multi_reduction <add>, %29, %cst_18 [1] : vector<2x128xf32> to vector<2xf32>
    %31 = vector.shape_cast %30 : vector<2xf32> to vector<2x1xf32>
    %32 = vector.broadcast %31 : vector<2x1xf32> to vector<2x128xf32>
    %33 = arith.divf %29, %32 : vector<2x128xf32>
    %c0_19 = arith.constant 0 : index
    %c0_20 = arith.constant 0 : index
    %34 = vector.load %arg8[%c0_19, %c0_20] : memref<2x128xf32, #tpu.memory_space<vmem>>, vector<2x128xf32>
    tpu.vector_store %arg8[%c0_19, %c0_20], %33 {strides = array<i32>} : memref<2x128xf32, #tpu.memory_space<vmem>>, vector<2x128xf32>,
    return
  }
  func.func @transform_0(%arg0: i32) -> (i32, i32) {
    %c0_i32 = arith.constant 0 : i32
    %c0_i32_0 = arith.constant 0 : i32
    return %arg0, %c0_i32 : i32, i32
  }
  func.func @transform_1(%arg0: i32) -> (i32, i32) {
    %c0_i32 = arith.constant 0 : i32
    %c0_i32_0 = arith.constant 0 : i32
    %c0_i32_1 = arith.constant 0 : i32
    return %c0_i32, %c0_i32_0 : i32, i32
  }
  func.func @transform_2(%arg0: i32) -> (i32, i32) {
    %c0_i32 = arith.constant 0 : i32
    %c0_i32_0 = arith.constant 0 : i32
    %c0_i32_1 = arith.constant 0 : i32
    return %c0_i32, %c0_i32_0 : i32, i32
  }
  func.func @transform_3(%arg0: i32) -> (i32, i32) {
    %c0_i32 = arith.constant 0 : i32
    %c0_i32_0 = arith.constant 0 : i32
    %c0_i32_1 = arith.constant 0 : i32
    return %c0_i32, %c0_i32_0 : i32, i32
  }
  func.func @transform_4(%arg0: i32) -> (i32, i32) {
    %c0_i32 = arith.constant 0 : i32
    %c0_i32_0 = arith.constant 0 : i32
    %c0_i32_1 = arith.constant 0 : i32
    return %c0_i32, %c0_i32_0 : i32, i32
  }
  func.func @transform_5(%arg0: i32) -> (i32, i32) {
    %c0_i32 = arith.constant 0 : i32
    %c0_i32_0 = arith.constant 0 : i32
    %c0_i32_1 = arith.constant 0 : i32
    return %c0_i32, %c0_i32_0 : i32, i32
  }
  func.func @transform_6(%arg0: i32) -> (i32, i32) {
    %c0_i32 = arith.constant 0 : i32
    %c0_i32_0 = arith.constant 0 : i32
    %c0_i32_1 = arith.constant 0 : i32
    return %c0_i32, %c0_i32_0 : i32, i32
  }
  func.func @transform_7(%arg0: i32) -> (i32, i32) {
    %c0_i32 = arith.constant 0 : i32
    %c0_i32_0 = arith.constant 0 : i32
    return %arg0, %c0_i32 : i32, i32
  }
}

</mosaic_0001>

<llo_original>
// kernel: tpu_custom_call.1
$region0: #{tpu_custom_call.1}
  #allocation0 [shape = 'u32[]', space=smem, size = 0x4, offset = 0x4, fixed_abs, tag = 'smem constant byte address 0x4 - core index']
  #allocation1 [shape = 'u32[144,128]{1,0:T(1,128)}', space=vmem, size = 0x12000, scoped, tag = 'internal scratch']
  %s0 = inlined_call_operand.hbm [shape: f32[2,1028], index: 0, kind: input, shape index: {}]
  %s1 = inlined_call_operand.hbm [shape: bf16[1028,1024], index: 1, kind: input, shape index: {}]
  %s2 = inlined_call_operand.hbm [shape: f32[1,1024], index: 2, kind: input, shape index: {}]
  %s3 = inlined_call_operand.hbm [shape: bf16[1024,512], index: 3, kind: input, shape index: {}]
  %s4 = inlined_call_operand.hbm [shape: f32[1,512], index: 4, kind: input, shape index: {}]
  %s5 = inlined_call_operand.hbm [shape: bf16[512,128], index: 5, kind: input, shape index: {}]
  %s6 = inlined_call_operand.hbm [shape: f32[1,128], index: 6, kind: input, shape index: {}]
  %s7 = inlined_call_operand.hbm [shape: f32[2,128], index: 7, kind: output, shape index: {}]
  %s8 = sld [smem:[#allocation0]]
  $region66: #{tpu_custom_call.1} parent=0
    _
  %s10 = ssub.s32 1, %s8
  %s11 = scalar_select 0, %s10, %s8
  $region1: #{tpu_custom_call.1} parent=0
    #allocation2 [shape = 'u8[9216]{0}', space=vmem, size = 0x2400, scoped, tag = 'input window, operand 0, single buffered']
    #allocation3 [shape = 's32[1]{0}', space=sflag, size = 0x4, scoped, tag = 'scoped memory for tpu_custom_call.1']
    #allocation4 [shape = 's32[1]{0}', space=sflag, size = 0x4, scoped, tag = 'scoped memory for tpu_custom_call.1']
    #allocation5 [shape = 'u8[2113536]{0}', space=vmem, size = 0x204000, scoped, tag = 'input window, operand 1, single buffered']
    #allocation6 [shape = 's32[1]{0}', space=sflag, size = 0x4, scoped, tag = 'scoped memory for tpu_custom_call.1']
    #allocation7 [shape = 'u8[4096]{0}', space=vmem, size = 0x1000, scoped, tag = 'input window, operand 2, single buffered']
    #allocation8 [shape = 'u8[1048576]{0}', space=vmem, size = 0x100000, scoped, tag = 'input window, operand 3, single buffered']
    #allocation9 [shape = 's32[1]{0}', space=sflag, size = 0x4, scoped, tag = 'scoped memory for tpu_custom_call.1']
    #allocation10 [shape = 'u8[2048]{0}', space=vmem, size = 0x800, scoped, tag = 'input window, operand 4, single buffered']
    #allocation11 [shape = 'u8[131072]{0}', space=vmem, size = 0x20000, scoped, tag = 'input window, operand 5, single buffered']
    #allocation12 [shape = 's32[1]{0}', space=sflag, size = 0x4, scoped, tag = 'scoped memory for tpu_custom_call.1']
    #allocation13 [shape = 'u8[512]{0}', space=vmem, size = 0x400, scoped, tag = 'input window, operand 6, single buffered']
    #allocation14 [shape = 'u8[1024]{0}', space=vmem, size = 0x400, scoped, tag = 'output window, operand 0, single buffered']
    %12 = vsyncpa [#allocation3], 0
    %13 = vsyncpa [#allocation6], 0
    %14 = vsyncpa [#allocation9], 0
    %15 = vsyncpa [#allocation12], 0
    %16 = vsyncpa [#allocation4], 0
    // Predicated region
    $region2: #{tpu_custom_call.1} parent=1 // pred_check
      _
    $region3: #{tpu_custom_call.1} parent=1 // pred_check_branch
      %18 = sbr.rel (0) target = $region5
    $region4: #{tpu_custom_call.1} parent=1 // pred_region
      %s20 = ssub.s32 288, 288
      %21 = vsyncadd [#allocation3], %s20
      %s23 = sshll.u32 [#allocation2], 4
      %s24 = int_to_ptr.vmem [resolvable:$true] %s23
      %26 = dma.hbm_to_vmem [thread:$0]  %s0, 288, %s24, [#allocation3]
    $region5: #{tpu_custom_call.1} parent=1 // pred_fallthru
      _
    // Predicated region
    $region6: #{tpu_custom_call.1} parent=1 // pred_check
      _
    $region7: #{tpu_custom_call.1} parent=1 // pred_check_branch
      %28 = sbr.rel (0) target = $region9
    $region8: #{tpu_custom_call.1} parent=1 // pred_region
      %s30 = ssub.s32 66048, 66048
      %31 = vsyncadd [#allocation6], %s30
      %s32 = sshll.u32 [#allocation5], 4
      %s33 = int_to_ptr.vmem [resolvable:$true] %s32
      %38 = dma.hbm_to_vmem [thread:$0]  %s1, 66048, %s33, [#allocation6], 512, 512, 32
    $region9: #{tpu_custom_call.1} parent=1 // pred_fallthru
      _
    // Predicated region
    $region10: #{tpu_custom_call.1} parent=1 // pred_check
      _
    $region11: #{tpu_custom_call.1} parent=1 // pred_check_branch
      %40 = sbr.rel (0) target = $region13
    $region12: #{tpu_custom_call.1} parent=1 // pred_region
      %s42 = ssub.s32 128, 128
      %43 = vsyncadd [#allocation6], %s42
      %s45 = sshll.u32 [#allocation7], 4
      %s46 = int_to_ptr.vmem [resolvable:$true] %s45
      %48 = dma.hbm_to_vmem [thread:$0]  %s2, 128, %s46, [#allocation6]
    $region13: #{tpu_custom_call.1} parent=1 // pred_fallthru
      _
    // Predicated region
    $region14: #{tpu_custom_call.1} parent=1 // pred_check
      _
    $region15: #{tpu_custom_call.1} parent=1 // pred_check_branch
      %50 = sbr.rel (0) target = $region17
    $region16: #{tpu_custom_call.1} parent=1 // pred_region
      %s52 = ssub.s32 32768, 32768
      %53 = vsyncadd [#allocation9], %s52
      %s54 = sshll.u32 [#allocation8], 4
      %s55 = int_to_ptr.vmem [resolvable:$true] %s54
      %60 = dma.hbm_to_vmem [thread:$0]  %s3, 32768, %s55, [#allocation9], 256, 256, 16
    $region17: #{tpu_custom_call.1} parent=1 // pred_fallthru
      _
    // Predicated region
    $region18: #{tpu_custom_call.1} parent=1 // pred_check
      _
    $region19: #{tpu_custom_call.1} parent=1 // pred_check_branch
      %62 = sbr.rel (0) target = $region21
    $region20: #{tpu_custom_call.1} parent=1 // pred_region
      %s64 = ssub.s32 64, 64
      %65 = vsyncadd [#allocation9], %s64
      %s67 = sshll.u32 [#allocation10], 4
      %s68 = int_to_ptr.vmem [resolvable:$true] %s67
      %70 = dma.hbm_to_vmem [thread:$0]  %s4, 64, %s68, [#allocation9]
    $region21: #{tpu_custom_call.1} parent=1 // pred_fallthru
      _
    // Predicated region
    $region22: #{tpu_custom_call.1} parent=1 // pred_check
      _
    $region23: #{tpu_custom_call.1} parent=1 // pred_check_branch
      %72 = sbr.rel (0) target = $region25
    $region24: #{tpu_custom_call.1} parent=1 // pred_region
      %s74 = ssub.s32 4096, 4096
      %75 = vsyncadd [#allocation12], %s74
      %s76 = sshll.u32 [#allocation11], 4
      %s77 = int_to_ptr.vmem [resolvable:$true] %s76
      %82 = dma.hbm_to_vmem [thread:$0]  %s5, 4096, %s77, [#allocation12], 64, 64, 4
    $region25: #{tpu_custom_call.1} parent=1 // pred_fallthru
      _
    // Predicated region
    $region26: #{tpu_custom_call.1} parent=1 // pred_check
      _
    $region27: #{tpu_custom_call.1} parent=1 // pred_check_branch
      %84 = sbr.rel (0) target = $region29
    $region28: #{tpu_custom_call.1} parent=1 // pred_region
      %s86 = ssub.s32 16, 16
      %87 = vsyncadd [#allocation12], %s86
      %s89 = sshll.u32 [#allocation13], 4
      %s90 = int_to_ptr.vmem [resolvable:$true] %s89
      %92 = dma.hbm_to_vmem [thread:$0]  %s6, 16, %s90, [#allocation12]
    $region29: #{tpu_custom_call.1} parent=1 // pred_fallthru
      _
    // Predicated region
    $region30: #{tpu_custom_call.1} parent=1 // pred_check
      _
    $region31: #{tpu_custom_call.1} parent=1 // pred_check_branch
      %94 = sbr.rel (0) target = $region33
    $region32: #{tpu_custom_call.1} parent=1 // pred_region
      %95 = dma.done [#allocation3], 288
    $region33: #{tpu_custom_call.1} parent=1 // pred_fallthru
      _
    // Predicated region
    $region34: #{tpu_custom_call.1} parent=1 // pred_check
      _
    $region35: #{tpu_custom_call.1} parent=1 // pred_check_branch
      %97 = sbr.rel (0) target = $region37
    $region36: #{tpu_custom_call.1} parent=1 // pred_region
      %98 = dma.done [#allocation6], 66048
    $region37: #{tpu_custom_call.1} parent=1 // pred_fallthru
      _
    // Predicated region
    $region38: #{tpu_custom_call.1} parent=1 // pred_check
      _
    $region39: #{tpu_custom_call.1} parent=1 // pred_check_branch
      %100 = sbr.rel (0) target = $region41
    $region40: #{tpu_custom_call.1} parent=1 // pred_region
      %101 = dma.done [#allocation6], 128
    $region41: #{tpu_custom_call.1} parent=1 // pred_fallthru
      _
    // Predicated region
    $region42: #{tpu_custom_call.1} parent=1 // pred_check
      _
    $region43: #{tpu_custom_call.1} parent=1 // pred_check_branch
      %103 = sbr.rel (0) target = $region45
    $region44: #{tpu_custom_call.1} parent=1 // pred_region
      %104 = dma.done [#allocation9], 32768
    $region45: #{tpu_custom_call.1} parent=1 // pred_fallthru
      _
    // Predicated region
    $region46: #{tpu_custom_call.1} parent=1 // pred_check
      _
    $region47: #{tpu_custom_call.1} parent=1 // pred_check_branch
      %106 = sbr.rel (0) target = $region49
    $region48: #{tpu_custom_call.1} parent=1 // pred_region
      %107 = dma.done [#allocation9], 64
    $region49: #{tpu_custom_call.1} parent=1 // pred_fallthru
      _
    // Predicated region
    $region50: #{tpu_custom_call.1} parent=1 // pred_check
      _
    $region51: #{tpu_custom_call.1} parent=1 // pred_check_branch
      %109 = sbr.rel (0) target = $region53
    $region52: #{tpu_custom_call.1} parent=1 // pred_region
      %110 = dma.done [#allocation12], 4096
    $region53: #{tpu_custom_call.1} parent=1 // pred_fallthru
      _
    // Predicated region
    $region54: #{tpu_custom_call.1} parent=1 // pred_check
      _
    $region55: #{tpu_custom_call.1} parent=1 // pred_check_branch
      %112 = sbr.rel (0) target = $region57
    $region56: #{tpu_custom_call.1} parent=1 // pred_region
      %113 = dma.done [#allocation12], 16
    $region57: #{tpu_custom_call.1} parent=1 // pred_fallthru
      _
    %v115 = vld [vmem:[#allocation2] sm:$0xff]
    %v116 = vld [vmem:[#allocation2 + $0x8] sm:$0xff]
    %v117 = vld [vmem:[#allocation2 + $0x10] sm:$0x3]
    %v121 = vcombine.high %v115, %v115
    %v123 = vunpack.c.l.s4 1983009808
    %v124 = vunpack.c.0.s8 %v123
    %v125 = vlaneseq
    %v126 = vshrl.u32 %v125, 7
    %v127 = vsub.s32 %v124, %v126
    %v128 = vrot.slane %v115, %v127
    %v130 = vunpack.c.l.s4 1983009808
    %v131 = vunpack.c.0.s8 %v130
    %v132 = vlaneseq
    %v133 = vshrl.u32 %v132, 7
    %v134 = vsub.s32 %v131, %v133
    %v135 = vrot.slane %v121, %v134
    %v136 = vcombine.high %v128, %v128
    %v137 = vcombine.high %v135, %v135
    %v138 = vcombine.high %v116, %v116
    %v140 = vunpack.c.l.s4 1983009808
    %v141 = vunpack.c.0.s8 %v140
    %v142 = vlaneseq
    %v143 = vshrl.u32 %v142, 7
    %v144 = vsub.s32 %v141, %v143
    %v145 = vrot.slane %v116, %v144
    %v147 = vunpack.c.l.s4 1983009808
    %v148 = vunpack.c.0.s8 %v147
    %v149 = vlaneseq
    %v150 = vshrl.u32 %v149, 7
    %v151 = vsub.s32 %v148, %v150
    %v152 = vrot.slane %v138, %v151
    %v153 = vcombine.high %v145, %v145
    %v154 = vcombine.high %v152, %v152
    %v156 = vunpack.c.l.s4 1983009808
    %v157 = vunpack.c.0.s8 %v156
    %v158 = vlaneseq
    %v159 = vshrl.u32 %v158, 7
    %v160 = vsub.s32 %v157, %v159
    %v161 = vrot.slane %v117, %v160
    %v171 = vpack.c.bf16 %v128, %v128
    %v172 = vpack.c.bf16 %v136, %v136
    %v173 = vpack.c.bf16 %v135, %v135
    %v174 = vpack.c.bf16 %v137, %v137
    %v175 = vpack.c.bf16 %v145, %v145
    %v176 = vpack.c.bf16 %v153, %v153
    %v177 = vpack.c.bf16 %v152, %v152
    %v178 = vpack.c.bf16 %v154, %v154
    %v179 = vpack.c.bf16 %v161, %v161
    %v180 = vld [vmem:[#allocation5] sm:$0xff]
    %v181 = vld [vmem:[#allocation5 + $0x8] sm:$0xff]
    %v182 = vld [vmem:[#allocation5 + $0x10] sm:$0xff]
    %v183 = vld [vmem:[#allocation5 + $0x18] sm:$0xff]
    %v184 = vld [vmem:[#allocation5 + $0x20] sm:$0xff]
    %v185 = vld [vmem:[#allocation5 + $0x28] sm:$0xff]
    %v186 = vld [vmem:[#allocation5 + $0x30] sm:$0xff]
    %v187 = vld [vmem:[#allocation5 + $0x38] sm:$0xff]
    %v188 = vld [vmem:[#allocation5 + $0x40] sm:$0xff]
    %v189 = vld [vmem:[#allocation5 + $0x48] sm:$0xff]
    %v190 = vld [vmem:[#allocation5 + $0x50] sm:$0xff]
    %v191 = vld [vmem:[#allocation5 + $0x58] sm:$0xff]
    %v192 = vld [vmem:[#allocation5 + $0x60] sm:$0xff]
    %v193 = vld [vmem:[#allocation5 + $0x68] sm:$0xff]
    %v194 = vld [vmem:[#allocation5 + $0x70] sm:$0xff]
    %v195 = vld [vmem:[#allocation5 + $0x78] sm:$0xff]
    %v196 = vld [vmem:[#allocation5 + $0x80] sm:$0xff]
    %v197 = vld [vmem:[#allocation5 + $0x88] sm:$0xff]
    %v198 = vld [vmem:[#allocation5 + $0x90] sm:$0xff]
    %v199 = vld [vmem:[#allocation5 + $0x98] sm:$0xff]
    %v200 = vld [vmem:[#allocation5 + $0xa0] sm:$0xff]
    %v201 = vld [vmem:[#allocation5 + $0xa8] sm:$0xff]
    %v202 = vld [vmem:[#allocation5 + $0xb0] sm:$0xff]
    %v203 = vld [vmem:[#allocation5 + $0xb8] sm:$0xff]
    %v204 = vld [vmem:[#allocation5 + $0xc0] sm:$0xff]
    %v205 = vld [vmem:[#allocation5 + $0xc8] sm:$0xff]
    %v206 = vld [vmem:[#allocation5 + $0xd0] sm:$0xff]
    %v207 = vld [vmem:[#allocation5 + $0xd8] sm:$0xff]
    %v208 = vld [vmem:[#allocation5 + $0xe0] sm:$0xff]
    %v209 = vld [vmem:[#allocation5 + $0xe8] sm:$0xff]
    %v210 = vld [vmem:[#allocation5 + $0xf0] sm:$0xff]
    %v211 = vld [vmem:[#allocation5 + $0xf8] sm:$0xff]
    %v212 = vld [vmem:[#allocation5 + $0x100] sm:$0xff]
    %v213 = vld [vmem:[#allocation5 + $0x108] sm:$0xff]
    %v214 = vld [vmem:[#allocation5 + $0x110] sm:$0xff]
    %v215 = vld [vmem:[#allocation5 + $0x118] sm:$0xff]
    %v216 = vld [vmem:[#allocation5 + $0x120] sm:$0xff]
    %v217 = vld [vmem:[#allocation5 + $0x128] sm:$0xff]
    %v218 = vld [vmem:[#allocation5 + $0x130] sm:$0xff]
    %v219 = vld [vmem:[#allocation5 + $0x138] sm:$0xff]
    %v220 = vld [vmem:[#allocation5 + $0x140] sm:$0xff]
    %v221 = vld [vmem:[#allocation5 + $0x148] sm:$0xff]
    %v222 = vld [vmem:[#allocation5 + $0x150] sm:$0xff]
    %v223 = vld [vmem:[#allocation5 + $0x158] sm:$0xff]
    %v224 = vld [vmem:[#allocation5 + $0x160] sm:$0xff]
    %v225 = vld [vmem:[#allocation5 + $0x168] sm:$0xff]
    %v226 = vld [vmem:[#allocation5 + $0x170] sm:$0xff]
    %v227 = vld [vmem:[#allocation5 + $0x178] sm:$0xff]
    %v228 = vld [vmem:[#allocation5 + $0x180] sm:$0xff]
    %v229 = vld [vmem:[#allocation5 + $0x188] sm:$0xff]
    %v230 = vld [vmem:[#allocation5 + $0x190] sm:$0xff]
    %v231 = vld [vmem:[#allocation5 + $0x198] sm:$0xff]
    %v232 = vld [vmem:[#allocation5 + $0x1a0] sm:$0xff]
    %v233 = vld [vmem:[#allocation5 + $0x1a8] sm:$0xff]
    %v234 = vld [vmem:[#allocation5 + $0x1b0] sm:$0xff]
    %v235 = vld [vmem:[#allocation5 + $0x1b8] sm:$0xff]
    %v236 = vld [vmem:[#allocation5 + $0x1c0] sm:$0xff]
    %v237 = vld [vmem:[#allocation5 + $0x1c8] sm:$0xff]
    %v238 = vld [vmem:[#allocation5 + $0x1d0] sm:$0xff]
    %v239 = vld [vmem:[#allocation5 + $0x1d8] sm:$0xff]
    %v240 = vld [vmem:[#allocation5 + $0x1e0] sm:$0xff]
    %v241 = vld [vmem:[#allocation5 + $0x1e8] sm:$0xff]
    %v242 = vld [vmem:[#allocation5 + $0x1f0] sm:$0xff]
    %v243 = vld [vmem:[#allocation5 + $0x1f8] sm:$0xff]
    %v244 = vld [vmem:[#allocation5 + $0x200] sm:$0xff]
    %v245 = vld [vmem:[#allocation5 + $0x208] sm:$0xff]
    %v246 = vld [vmem:[#allocation5 + $0x210] sm:$0xff]
    %v247 = vld [vmem:[#allocation5 + $0x218] sm:$0xff]
    %v248 = vld [vmem:[#allocation5 + $0x220] sm:$0xff]
    %v249 = vld [vmem:[#allocation5 + $0x228] sm:$0xff]
    %v250 = vld [vmem:[#allocation5 + $0x230] sm:$0xff]
    %v251 = vld [vmem:[#allocation5 + $0x238] sm:$0xff]
    %v252 = vld [vmem:[#allocation5 + $0x240] sm:$0xff]
    %v253 = vld [vmem:[#allocation5 + $0x248] sm:$0xff]
    %v254 = vld [vmem:[#allocation5 + $0x250] sm:$0xff]
    %v255 = vld [vmem:[#allocation5 + $0x258] sm:$0xff]
    %v256 = vld [vmem:[#allocation5 + $0x260] sm:$0xff]
    %v257 = vld [vmem:[#allocation5 + $0x268] sm:$0xff]
    %v258 = vld [vmem:[#allocation5 + $0x270] sm:$0xff]
    %v259 = vld [vmem:[#allocation5 + $0x278] sm:$0xff]
    %v260 = vld [vmem:[#allocation5 + $0x280] sm:$0xff]
    %v261 = vld [vmem:[#allocation5 + $0x288] sm:$0xff]
    %v262 = vld [vmem:[#allocation5 + $0x290] sm:$0xff]
    %v263 = vld [vmem:[#allocation5 + $0x298] sm:$0xff]
    %v264 = vld [vmem:[#allocation5 + $0x2a0] sm:$0xff]
    %v265 = vld [vmem:[#allocation5 + $0x2a8] sm:$0xff]
    %v266 = vld [vmem:[#allocation5 + $0x2b0] sm:$0xff]
    %v267 = vld [vmem:[#allocation5 + $0x2b8] sm:$0xff]
    %v268 = vld [vmem:[#allocation5 + $0x2c0] sm:$0xff]
    %v269 = vld [vmem:[#allocation5 + $0x2c8] sm:$0xff]
    %v270 = vld [vmem:[#allocation5 + $0x2d0] sm:$0xff]
    %v271 = vld [vmem:[#allocation5 + $0x2d8] sm:$0xff]
    %v272 = vld [vmem:[#allocation5 + $0x2e0] sm:$0xff]
    %v273 = vld [vmem:[#allocation5 + $0x2e8] sm:$0xff]
    %v274 = vld [vmem:[#allocation5 + $0x2f0] sm:$0xff]
    %v275 = vld [vmem:[#allocation5 + $0x2f8] sm:$0xff]
    %v276 = vld [vmem:[#allocation5 + $0x300] sm:$0xff]
    %v277 = vld [vmem:[#allocation5 + $0x308] sm:$0xff]
    %v278 = vld [vmem:[#allocation5 + $0x310] sm:$0xff]
    %v279 = vld [vmem:[#allocation5 + $0x318] sm:$0xff]
    %v280 = vld [vmem:[#allocation5 + $0x320] sm:$0xff]
    %v281 = vld [vmem:[#allocation5 + $0x328] sm:$0xff]
    %v282 = vld [vmem:[#allocation5 + $0x330] sm:$0xff]
    %v283 = vld [vmem:[#allocation5 + $0x338] sm:$0xff]
    %v284 = vld [vmem:[#allocation5 + $0x340] sm:$0xff]
    %v285 = vld [vmem:[#allocation5 + $0x348] sm:$0xff]
    %v286 = vld [vmem:[#allocation5 + $0x350] sm:$0xff]
    %v287 = vld [vmem:[#allocation5 + $0x358] sm:$0xff]
    %v288 = vld [vmem:[#allocation5 + $0x360] sm:$0xff]
    %v289 = vld [vmem:[#allocation5 + $0x368] sm:$0xff]
    %v290 = vld [vmem:[#allocation5 + $0x370] sm:$0xff]
    %v291 = vld [vmem:[#allocation5 + $0x378] sm:$0xff]
    %v292 = vld [vmem:[#allocation5 + $0x380] sm:$0xff]
    %v293 = vld [vmem:[#allocation5 + $0x388] sm:$0xff]
    %v294 = vld [vmem:[#allocation5 + $0x390] sm:$0xff]
    %v295 = vld [vmem:[#allocation5 + $0x398] sm:$0xff]
    %v296 = vld [vmem:[#allocation5 + $0x3a0] sm:$0xff]
    %v297 = vld [vmem:[#allocation5 + $0x3a8] sm:$0xff]
    %v298 = vld [vmem:[#allocation5 + $0x3b0] sm:$0xff]
    %v299 = vld [vmem:[#allocation5 + $0x3b8] sm:$0xff]
    %v300 = vld [vmem:[#allocation5 + $0x3c0] sm:$0xff]
    %v301 = vld [vmem:[#allocation5 + $0x3c8] sm:$0xff]
    %v302 = vld [vmem:[#allocation5 + $0x3d0] sm:$0xff]
    %v303 = vld [vmem:[#allocation5 + $0x3d8] sm:$0xff]
    %v304 = vld [vmem:[#allocation5 + $0x3e0] sm:$0xff]
    %v305 = vld [vmem:[#allocation5 + $0x3e8] sm:$0xff]
    %v306 = vld [vmem:[#allocation5 + $0x3f0] sm:$0xff]
    %v307 = vld [vmem:[#allocation5 + $0x3f8] sm:$0xff]
    %v308 = vld [vmem:[#allocation5 + $0x400] sm:$0xff]
    %v309 = vld [vmem:[#allocation5 + $0x408] sm:$0xff]
    %v310 = vld [vmem:[#allocation5 + $0x410] sm:$0xff]
    %v311 = vld [vmem:[#allocation5 + $0x418] sm:$0xff]
    %v312 = vld [vmem:[#allocation5 + $0x420] sm:$0xff]
    %v313 = vld [vmem:[#allocation5 + $0x428] sm:$0xff]
    %v314 = vld [vmem:[#allocation5 + $0x430] sm:$0xff]
    %v315 = vld [vmem:[#allocation5 + $0x438] sm:$0xff]
    %v316 = vld [vmem:[#allocation5 + $0x440] sm:$0xff]
    %v317 = vld [vmem:[#allocation5 + $0x448] sm:$0xff]
    %v318 = vld [vmem:[#allocation5 + $0x450] sm:$0xff]
    %v319 = vld [vmem:[#allocation5 + $0x458] sm:$0xff]
    %v320 = vld [vmem:[#allocation5 + $0x460] sm:$0xff]
    %v321 = vld [vmem:[#allocation5 + $0x468] sm:$0xff]
    %v322 = vld [vmem:[#allocation5 + $0x470] sm:$0xff]
    %v323 = vld [vmem:[#allocation5 + $0x478] sm:$0xff]
    %v324 = vld [vmem:[#allocation5 + $0x480] sm:$0xff]
    %v325 = vld [vmem:[#allocation5 + $0x488] sm:$0xff]
    %v326 = vld [vmem:[#allocation5 + $0x490] sm:$0xff]
    %v327 = vld [vmem:[#allocation5 + $0x498] sm:$0xff]
    %v328 = vld [vmem:[#allocation5 + $0x4a0] sm:$0xff]
    %v329 = vld [vmem:[#allocation5 + $0x4a8] sm:$0xff]
    %v330 = vld [vmem:[#allocation5 + $0x4b0] sm:$0xff]
    %v331 = vld [vmem:[#allocation5 + $0x4b8] sm:$0xff]
    %v332 = vld [vmem:[#allocation5 + $0x4c0] sm:$0xff]
    %v333 = vld [vmem:[#allocation5 + $0x4c8] sm:$0xff]
    %v334 = vld [vmem:[#allocation5 + $0x4d0] sm:$0xff]
    %v335 = vld [vmem:[#allocation5 + $0x4d8] sm:$0xff]
    %v336 = vld [vmem:[#allocation5 + $0x4e0] sm:$0xff]
    %v337 = vld [vmem:[#allocation5 + $0x4e8] sm:$0xff]
    %v338 = vld [vmem:[#allocation5 + $0x4f0] sm:$0xff]
    %v339 = vld [vmem:[#allocation5 + $0x4f8] sm:$0xff]
    %v340 = vld [vmem:[#allocation5 + $0x500] sm:$0xff]
    %v341 = vld [vmem:[#allocation5 + $0x508] sm:$0xff]
    %v342 = vld [vmem:[#allocation5 + $0x510] sm:$0xff]
    %v343 = vld [vmem:[#allocation5 + $0x518] sm:$0xff]
    %v344 = vld [vmem:[#allocation5 + $0x520] sm:$0xff]
    %v345 = vld [vmem:[#allocation5 + $0x528] sm:$0xff]
    %v346 = vld [vmem:[#allocation5 + $0x530] sm:$0xff]
    %v347 = vld [vmem:[#allocation5 + $0x538] sm:$0xff]
    %v348 = vld [vmem:[#allocation5 + $0x540] sm:$0xff]
    %v349 = vld [vmem:[#allocation5 + $0x548] sm:$0xff]
    %v350 = vld [vmem:[#allocation5 + $0x550] sm:$0xff]
    %v351 = vld [vmem:[#allocation5 + $0x558] sm:$0xff]
    %v352 = vld [vmem:[#allocation5 + $0x560] sm:$0xff]
    %v353 = vld [vmem:[#allocation5 + $0x568] sm:$0xff]
    %v354 = vld [vmem:[#allocation5 + $0x570] sm:$0xff]
    %v355 = vld [vmem:[#allocation5 + $0x578] sm:$0xff]
    %v356 = vld [vmem:[#allocation5 + $0x580] sm:$0xff]
    %v357 = vld [vmem:[#allocation5 + $0x588] sm:$0xff]
    %v358 = vld [vmem:[#allocation5 + $0x590] sm:$0xff]
    %v359 = vld [vmem:[#allocation5 + $0x598] sm:$0xff]
    %v360 = vld [vmem:[#allocation5 + $0x5a0] sm:$0xff]
    %v361 = vld [vmem:[#allocation5 + $0x5a8] sm:$0xff]
    %v362 = vld [vmem:[#allocation5 + $0x5b0] sm:$0xff]
    %v363 = vld [vmem:[#allocation5 + $0x5b8] sm:$0xff]
    %v364 = vld [vmem:[#allocation5 + $0x5c0] sm:$0xff]
    %v365 = vld [vmem:[#allocation5 + $0x5c8] sm:$0xff]
    %v366 = vld [vmem:[#allocation5 + $0x5d0] sm:$0xff]
    %v367 = vld [vmem:[#allocation5 + $0x5d8] sm:$0xff]
    %v368 = vld [vmem:[#allocation5 + $0x5e0] sm:$0xff]
    %v369 = vld [vmem:[#allocation5 + $0x5e8] sm:$0xff]
    %v370 = vld [vmem:[#allocation5 + $0x5f0] sm:$0xff]
    %v371 = vld [vmem:[#allocation5 + $0x5f8] sm:$0xff]
    %v372 = vld [vmem:[#allocation5 + $0x600] sm:$0xff]
    %v373 = vld [vmem:[#allocation5 + $0x608] sm:$0xff]
    %v374 = vld [vmem:[#allocation5 + $0x610] sm:$0xff]
    %v375 = vld [vmem:[#allocation5 + $0x618] sm:$0xff]
    %v376 = vld [vmem:[#allocation5 + $0x620] sm:$0xff]
    %v377 = vld [vmem:[#allocation5 + $0x628] sm:$0xff]
    %v378 = vld [vmem:[#allocation5 + $0x630] sm:$0xff]
    %v379 = vld [vmem:[#allocation5 + $0x638] sm:$0xff]
    %v380 = vld [vmem:[#allocation5 + $0x640] sm:$0xff]
    %v381 = vld [vmem:[#allocation5 + $0x648] sm:$0xff]
    %v382 = vld [vmem:[#allocation5 + $0x650] sm:$0xff]
    %v383 = vld [vmem:[#allocation5 + $0x658] sm:$0xff]
    %v384 = vld [vmem:[#allocation5 + $0x660] sm:$0xff]
    %v385 = vld [vmem:[#allocation5 + $0x668] sm:$0xff]
    %v386 = vld [vmem:[#allocation5 + $0x670] sm:$0xff]
    %v387 = vld [vmem:[#allocation5 + $0x678] sm:$0xff]
    %v388 = vld [vmem:[#allocation5 + $0x680] sm:$0xff]
    %v389 = vld [vmem:[#allocation5 + $0x688] sm:$0xff]
    %v390 = vld [vmem:[#allocation5 + $0x690] sm:$0xff]
    %v391 = vld [vmem:[#allocation5 + $0x698] sm:$0xff]
    %v392 = vld [vmem:[#allocation5 + $0x6a0] sm:$0xff]
    %v393 = vld [vmem:[#allocation5 + $0x6a8] sm:$0xff]
    %v394 = vld [vmem:[#allocation5 + $0x6b0] sm:$0xff]
    %v395 = vld [vmem:[#allocation5 + $0x6b8] sm:$0xff]
    %v396 = vld [vmem:[#allocation5 + $0x6c0] sm:$0xff]
    %v397 = vld [vmem:[#allocation5 + $0x6c8] sm:$0xff]
    %v398 = vld [vmem:[#allocation5 + $0x6d0] sm:$0xff]
    %v399 = vld [vmem:[#allocation5 + $0x6d8] sm:$0xff]
    %v400 = vld [vmem:[#allocation5 + $0x6e0] sm:$0xff]
    %v401 = vld [vmem:[#allocation5 + $0x6e8] sm:$0xff]
    %v402 = vld [vmem:[#allocation5 + $0x6f0] sm:$0xff]
    %v403 = vld [vmem:[#allocation5 + $0x6f8] sm:$0xff]
    %v404 = vld [vmem:[#allocation5 + $0x700] sm:$0xff]
    %v405 = vld [vmem:[#allocation5 + $0x708] sm:$0xff]
    %v406 = vld [vmem:[#allocation5 + $0x710] sm:$0xff]
    %v407 = vld [vmem:[#allocation5 + $0x718] sm:$0xff]
    %v408 = vld [vmem:[#allocation5 + $0x720] sm:$0xff]
    %v409 = vld [vmem:[#allocation5 + $0x728] sm:$0xff]
    %v410 = vld [vmem:[#allocation5 + $0x730] sm:$0xff]
    %v411 = vld [vmem:[#allocation5 + $0x738] sm:$0xff]
    %v412 = vld [vmem:[#allocation5 + $0x740] sm:$0xff]
    %v413 = vld [vmem:[#allocation5 + $0x748] sm:$0xff]
    %v414 = vld [vmem:[#allocation5 + $0x750] sm:$0xff]
    %v415 = vld [vmem:[#allocation5 + $0x758] sm:$0xff]
    %v416 = vld [vmem:[#allocation5 + $0x760] sm:$0xff]
    %v417 = vld [vmem:[#allocation5 + $0x768] sm:$0xff]
    %v418 = vld [vmem:[#allocation5 + $0x770] sm:$0xff]
    %v419 = vld [vmem:[#allocation5 + $0x778] sm:$0xff]
    %v420 = vld [vmem:[#allocation5 + $0x780] sm:$0xff]
    %v421 = vld [vmem:[#allocation5 + $0x788] sm:$0xff]
    %v422 = vld [vmem:[#allocation5 + $0x790] sm:$0xff]
    %v423 = vld [vmem:[#allocation5 + $0x798] sm:$0xff]
    %v424 = vld [vmem:[#allocation5 + $0x7a0] sm:$0xff]
    %v425 = vld [vmem:[#allocation5 + $0x7a8] sm:$0xff]
    %v426 = vld [vmem:[#allocation5 + $0x7b0] sm:$0xff]
    %v427 = vld [vmem:[#allocation5 + $0x7b8] sm:$0xff]
    %v428 = vld [vmem:[#allocation5 + $0x7c0] sm:$0xff]
    %v429 = vld [vmem:[#allocation5 + $0x7c8] sm:$0xff]
    %v430 = vld [vmem:[#allocation5 + $0x7d0] sm:$0xff]
    %v431 = vld [vmem:[#allocation5 + $0x7d8] sm:$0xff]
    %v432 = vld [vmem:[#allocation5 + $0x7e0] sm:$0xff]
    %v433 = vld [vmem:[#allocation5 + $0x7e8] sm:$0xff]
    %v434 = vld [vmem:[#allocation5 + $0x7f0] sm:$0xff]
    %v435 = vld [vmem:[#allocation5 + $0x7f8] sm:$0xff]
    %v436 = vld [vmem:[#allocation5 + $0x800] sm:$0xff]
    %v437 = vld [vmem:[#allocation5 + $0x808] sm:$0xff]
    %v438 = vld [vmem:[#allocation5 + $0x810] sm:$0xff]
    %v439 = vld [vmem:[#allocation5 + $0x818] sm:$0xff]
    %v440 = vld [vmem:[#allocation5 + $0x820] sm:$0xff]
    %v441 = vld [vmem:[#allocation5 + $0x828] sm:$0xff]
    %v442 = vld [vmem:[#allocation5 + $0x830] sm:$0xff]
    %v443 = vld [vmem:[#allocation5 + $0x838] sm:$0xff]
    %v444 = vld [vmem:[#allocation5 + $0x840] sm:$0xff]
    %v445 = vld [vmem:[#allocation5 + $0x848] sm:$0xff]
    %v446 = vld [vmem:[#allocation5 + $0x850] sm:$0xff]
    %v447 = vld [vmem:[#allocation5 + $0x858] sm:$0xff]
    %v448 = vld [vmem:[#allocation5 + $0x860] sm:$0xff]
    %v449 = vld [vmem:[#allocation5 + $0x868] sm:$0xff]
    %v450 = vld [vmem:[#allocation5 + $0x870] sm:$0xff]
    %v451 = vld [vmem:[#allocation5 + $0x878] sm:$0xff]
    %v452 = vld [vmem:[#allocation5 + $0x880] sm:$0xff]
    %v453 = vld [vmem:[#allocation5 + $0x888] sm:$0xff]
    %v454 = vld [vmem:[#allocation5 + $0x890] sm:$0xff]
    %v455 = vld [vmem:[#allocation5 + $0x898] sm:$0xff]
    %v456 = vld [vmem:[#allocation5 + $0x8a0] sm:$0xff]
    %v457 = vld [vmem:[#allocation5 + $0x8a8] sm:$0xff]
    %v458 = vld [vmem:[#allocation5 + $0x8b0] sm:$0xff]
    %v459 = vld [vmem:[#allocation5 + $0x8b8] sm:$0xff]
    %v460 = vld [vmem:[#allocation5 + $0x8c0] sm:$0xff]
    %v461 = vld [vmem:[#allocation5 + $0x8c8] sm:$0xff]
    %v462 = vld [vmem:[#allocation5 + $0x8d0] sm:$0xff]
    %v463 = vld [vmem:[#allocation5 + $0x8d8] sm:$0xff]
    %v464 = vld [vmem:[#allocation5 + $0x8e0] sm:$0xff]
    %v465 = vld [vmem:[#allocation5 + $0x8e8] sm:$0xff]
    %v466 = vld [vmem:[#allocation5 + $0x8f0] sm:$0xff]
    %v467 = vld [vmem:[#allocation5 + $0x8f8] sm:$0xff]
    %v468 = vld [vmem:[#allocation5 + $0x900] sm:$0xff]
    %v469 = vld [vmem:[#allocation5 + $0x908] sm:$0xff]
    %v470 = vld [vmem:[#allocation5 + $0x910] sm:$0xff]
    %v471 = vld [vmem:[#allocation5 + $0x918] sm:$0xff]
    %v472 = vld [vmem:[#allocation5 + $0x920] sm:$0xff]
    %v473 = vld [vmem:[#allocation5 + $0x928] sm:$0xff]
    %v474 = vld [vmem:[#allocation5 + $0x930] sm:$0xff]
    %v475 = vld [vmem:[#allocation5 + $0x938] sm:$0xff]
    %v476 = vld [vmem:[#allocation5 + $0x940] sm:$0xff]
    %v477 = vld [vmem:[#allocation5 + $0x948] sm:$0xff]
    %v478 = vld [vmem:[#allocation5 + $0x950] sm:$0xff]
    %v479 = vld [vmem:[#allocation5 + $0x958] sm:$0xff]
    %v480 = vld [vmem:[#allocation5 + $0x960] sm:$0xff]
    %v481 = vld [vmem:[#allocation5 + $0x968] sm:$0xff]
    %v482 = vld [vmem:[#allocation5 + $0x970] sm:$0xff]
    %v483 = vld [vmem:[#allocation5 + $0x978] sm:$0xff]
    %v484 = vld [vmem:[#allocation5 + $0x980] sm:$0xff]
    %v485 = vld [vmem:[#allocation5 + $0x988] sm:$0xff]
    %v486 = vld [vmem:[#allocation5 + $0x990] sm:$0xff]
    %v487 = vld [vmem:[#allocation5 + $0x998] sm:$0xff]
    %v488 = vld [vmem:[#allocation5 + $0x9a0] sm:$0xff]
    %v489 = vld [vmem:[#allocation5 + $0x9a8] sm:$0xff]
    %v490 = vld [vmem:[#allocation5 + $0x9b0] sm:$0xff]
    %v491 = vld [vmem:[#allocation5 + $0x9b8] sm:$0xff]
    %v492 = vld [vmem:[#allocation5 + $0x9c0] sm:$0xff]
    %v493 = vld [vmem:[#allocation5 + $0x9c8] sm:$0xff]
    %v494 = vld [vmem:[#allocation5 + $0x9d0] sm:$0xff]
    %v495 = vld [vmem:[#allocation5 + $0x9d8] sm:$0xff]
    %v496 = vld [vmem:[#allocation5 + $0x9e0] sm:$0xff]
    %v497 = vld [vmem:[#allocation5 + $0x9e8] sm:$0xff]
    %v498 = vld [vmem:[#allocation5 + $0x9f0] sm:$0xff]
    %v499 = vld [vmem:[#allocation5 + $0x9f8] sm:$0xff]
    %v500 = vld [vmem:[#allocation5 + $0xa00] sm:$0xff]
    %v501 = vld [vmem:[#allocation5 + $0xa08] sm:$0xff]
    %v502 = vld [vmem:[#allocation5 + $0xa10] sm:$0xff]
    %v503 = vld [vmem:[#allocation5 + $0xa18] sm:$0xff]
    %v504 = vld [vmem:[#allocation5 + $0xa20] sm:$0xff]
    %v505 = vld [vmem:[#allocation5 + $0xa28] sm:$0xff]
    %v506 = vld [vmem:[#allocation5 + $0xa30] sm:$0xff]
    %v507 = vld [vmem:[#allocation5 + $0xa38] sm:$0xff]
    %v508 = vld [vmem:[#allocation5 + $0xa40] sm:$0xff]
    %v509 = vld [vmem:[#allocation5 + $0xa48] sm:$0xff]
    %v510 = vld [vmem:[#allocation5 + $0xa50] sm:$0xff]
    %v511 = vld [vmem:[#allocation5 + $0xa58] sm:$0xff]
    %v512 = vld [vmem:[#allocation5 + $0xa60] sm:$0xff]
    %v513 = vld [vmem:[#allocation5 + $0xa68] sm:$0xff]
    %v514 = vld [vmem:[#allocation5 + $0xa70] sm:$0xff]
    %v515 = vld [vmem:[#allocation5 + $0xa78] sm:$0xff]
    %v516 = vld [vmem:[#allocation5 + $0xa80] sm:$0xff]
    %v517 = vld [vmem:[#allocation5 + $0xa88] sm:$0xff]
    %v518 = vld [vmem:[#allocation5 + $0xa90] sm:$0xff]
    %v519 = vld [vmem:[#allocation5 + $0xa98] sm:$0xff]
    %v520 = vld [vmem:[#allocation5 + $0xaa0] sm:$0xff]
    %v521 = vld [vmem:[#allocation5 + $0xaa8] sm:$0xff]
    %v522 = vld [vmem:[#allocation5 + $0xab0] sm:$0xff]
    %v523 = vld [vmem:[#allocation5 + $0xab8] sm:$0xff]
    %v524 = vld [vmem:[#allocation5 + $0xac0] sm:$0xff]
    %v525 = vld [vmem:[#allocation5 + $0xac8] sm:$0xff]
    %v526 = vld [vmem:[#allocation5 + $0xad0] sm:$0xff]
    %v527 = vld [vmem:[#allocation5 + $0xad8] sm:$0xff]
    %v528 = vld [vmem:[#allocation5 + $0xae0] sm:$0xff]
    %v529 = vld [vmem:[#allocation5 + $0xae8] sm:$0xff]
    %v530 = vld [vmem:[#allocation5 + $0xaf0] sm:$0xff]
    %v531 = vld [vmem:[#allocation5 + $0xaf8] sm:$0xff]
    %v532 = vld [vmem:[#allocation5 + $0xb00] sm:$0xff]
    %v533 = vld [vmem:[#allocation5 + $0xb08] sm:$0xff]
    %v534 = vld [vmem:[#allocation5 + $0xb10] sm:$0xff]
    %v535 = vld [vmem:[#allocation5 + $0xb18] sm:$0xff]
    %v536 = vld [vmem:[#allocation5 + $0xb20] sm:$0xff]
    %v537 = vld [vmem:[#allocation5 + $0xb28] sm:$0xff]
    %v538 = vld [vmem:[#allocation5 + $0xb30] sm:$0xff]
    %v539 = vld [vmem:[#allocation5 + $0xb38] sm:$0xff]
    %v540 = vld [vmem:[#allocation5 + $0xb40] sm:$0xff]
    %v541 = vld [vmem:[#allocation5 + $0xb48] sm:$0xff]
    %v542 = vld [vmem:[#allocation5 + $0xb50] sm:$0xff]
    %v543 = vld [vmem:[#allocation5 + $0xb58] sm:$0xff]
    %v544 = vld [vmem:[#allocation5 + $0xb60] sm:$0xff]
    %v545 = vld [vmem:[#allocation5 + $0xb68] sm:$0xff]
    %v546 = vld [vmem:[#allocation5 + $0xb70] sm:$0xff]
    %v547 = vld [vmem:[#allocation5 + $0xb78] sm:$0xff]
    %v548 = vld [vmem:[#allocation5 + $0xb80] sm:$0xff]
    %v549 = vld [vmem:[#allocation5 + $0xb88] sm:$0xff]
    %v550 = vld [vmem:[#allocation5 + $0xb90] sm:$0xff]
    %v551 = vld [vmem:[#allocation5 + $0xb98] sm:$0xff]
    %v552 = vld [vmem:[#allocation5 + $0xba0] sm:$0xff]
    %v553 = vld [vmem:[#allocation5 + $0xba8] sm:$0xff]
    %v554 = vld [vmem:[#allocation5 + $0xbb0] sm:$0xff]
    %v555 = vld [vmem:[#allocation5 + $0xbb8] sm:$0xff]
    %v556 = vld [vmem:[#allocation5 + $0xbc0] sm:$0xff]
    %v557 = vld [vmem:[#allocation5 + $0xbc8] sm:$0xff]
    %v558 = vld [vmem:[#allocation5 + $0xbd0] sm:$0xff]
    %v559 = vld [vmem:[#allocation5 + $0xbd8] sm:$0xff]
    %v560 = vld [vmem:[#allocation5 + $0xbe0] sm:$0xff]
    %v561 = vld [vmem:[#allocation5 + $0xbe8] sm:$0xff]
    %v562 = vld [vmem:[#allocation5 + $0xbf0] sm:$0xff]
    %v563 = vld [vmem:[#allocation5 + $0xbf8] sm:$0xff]
    %v564 = vld [vmem:[#allocation5 + $0xc00] sm:$0xff]
    %v565 = vld [vmem:[#allocation5 + $0xc08] sm:$0xff]
    %v566 = vld [vmem:[#allocation5 + $0xc10] sm:$0xff]
    %v567 = vld [vmem:[#allocation5 + $0xc18] sm:$0xff]
    %v568 = vld [vmem:[#allocation5 + $0xc20] sm:$0xff]
    %v569 = vld [vmem:[#allocation5 + $0xc28] sm:$0xff]
    %v570 = vld [vmem:[#allocation5 + $0xc30] sm:$0xff]
    %v571 = vld [vmem:[#allocation5 + $0xc38] sm:$0xff]
    %v572 = vld [vmem:[#allocation5 + $0xc40] sm:$0xff]
    %v573 = vld [vmem:[#allocation5 + $0xc48] sm:$0xff]
    %v574 = vld [vmem:[#allocation5 + $0xc50] sm:$0xff]
    %v575 = vld [vmem:[#allocation5 + $0xc58] sm:$0xff]
    %v576 = vld [vmem:[#allocation5 + $0xc60] sm:$0xff]
    %v577 = vld [vmem:[#allocation5 + $0xc68] sm:$0xff]
    %v578 = vld [vmem:[#allocation5 + $0xc70] sm:$0xff]
    %v579 = vld [vmem:[#allocation5 + $0xc78] sm:$0xff]
    %v580 = vld [vmem:[#allocation5 + $0xc80] sm:$0xff]
    %v581 = vld [vmem:[#allocation5 + $0xc88] sm:$0xff]
    %v582 = vld [vmem:[#allocation5 + $0xc90] sm:$0xff]
    %v583 = vld [vmem:[#allocation5 + $0xc98] sm:$0xff]
    %v584 = vld [vmem:[#allocation5 + $0xca0] sm:$0xff]
    %v585 = vld [vmem:[#allocation5 + $0xca8] sm:$0xff]
    %v586 = vld [vmem:[#allocation5 + $0xcb0] sm:$0xff]
    %v587 = vld [vmem:[#allocation5 + $0xcb8] sm:$0xff]
    %v588 = vld [vmem:[#allocation5 + $0xcc0] sm:$0xff]
    %v589 = vld [vmem:[#allocation5 + $0xcc8] sm:$0xff]
    %v590 = vld [vmem:[#allocation5 + $0xcd0] sm:$0xff]
    %v591 = vld [vmem:[#allocation5 + $0xcd8] sm:$0xff]
    %v592 = vld [vmem:[#allocation5 + $0xce0] sm:$0xff]
    %v593 = vld [vmem:[#allocation5 + $0xce8] sm:$0xff]
    %v594 = vld [vmem:[#allocation5 + $0xcf0] sm:$0xff]
    %v595 = vld [vmem:[#allocation5 + $0xcf8] sm:$0xff]
    %v596 = vld [vmem:[#allocation5 + $0xd00] sm:$0xff]
    %v597 = vld [vmem:[#allocation5 + $0xd08] sm:$0xff]
    %v598 = vld [vmem:[#allocation5 + $0xd10] sm:$0xff]
    %v599 = vld [vmem:[#allocation5 + $0xd18] sm:$0xff]
    %v600 = vld [vmem:[#allocation5 + $0xd20] sm:$0xff]
    %v601 = vld [vmem:[#allocation5 + $0xd28] sm:$0xff]
    %v602 = vld [vmem:[#allocation5 + $0xd30] sm:$0xff]
    %v603 = vld [vmem:[#allocation5 + $0xd38] sm:$0xff]
    %v604 = vld [vmem:[#allocation5 + $0xd40] sm:$0xff]
    %v605 = vld [vmem:[#allocation5 + $0xd48] sm:$0xff]
    %v606 = vld [vmem:[#allocation5 + $0xd50] sm:$0xff]
    %v607 = vld [vmem:[#allocation5 + $0xd58] sm:$0xff]
    %v608 = vld [vmem:[#allocation5 + $0xd60] sm:$0xff]
    %v609 = vld [vmem:[#allocation5 + $0xd68] sm:$0xff]
    %v610 = vld [vmem:[#allocation5 + $0xd70] sm:$0xff]
    %v611 = vld [vmem:[#allocation5 + $0xd78] sm:$0xff]
    %v612 = vld [vmem:[#allocation5 + $0xd80] sm:$0xff]
    %v613 = vld [vmem:[#allocation5 + $0xd88] sm:$0xff]
    %v614 = vld [vmem:[#allocation5 + $0xd90] sm:$0xff]
    %v615 = vld [vmem:[#allocation5 + $0xd98] sm:$0xff]
    %v616 = vld [vmem:[#allocation5 + $0xda0] sm:$0xff]
    %v617 = vld [vmem:[#allocation5 + $0xda8] sm:$0xff]
    %v618 = vld [vmem:[#allocation5 + $0xdb0] sm:$0xff]
    %v619 = vld [vmem:[#allocation5 + $0xdb8] sm:$0xff]
    %v620 = vld [vmem:[#allocation5 + $0xdc0] sm:$0xff]
    %v621 = vld [vmem:[#allocation5 + $0xdc8] sm:$0xff]
    %v622 = vld [vmem:[#allocation5 + $0xdd0] sm:$0xff]
    %v623 = vld [vmem:[#allocation5 + $0xdd8] sm:$0xff]
    %v624 = vld [vmem:[#allocation5 + $0xde0] sm:$0xff]
    %v625 = vld [vmem:[#allocation5 + $0xde8] sm:$0xff]
    %v626 = vld [vmem:[#allocation5 + $0xdf0] sm:$0xff]
    %v627 = vld [vmem:[#allocation5 + $0xdf8] sm:$0xff]
    %v628 = vld [vmem:[#allocation5 + $0xe00] sm:$0xff]
    %v629 = vld [vmem:[#allocation5 + $0xe08] sm:$0xff]
    %v630 = vld [vmem:[#allocation5 + $0xe10] sm:$0xff]
    %v631 = vld [vmem:[#allocation5 + $0xe18] sm:$0xff]
    %v632 = vld [vmem:[#allocation5 + $0xe20] sm:$0xff]
    %v633 = vld [vmem:[#allocation5 + $0xe28] sm:$0xff]
    %v634 = vld [vmem:[#allocation5 + $0xe30] sm:$0xff]
    %v635 = vld [vmem:[#allocation5 + $0xe38] sm:$0xff]
    %v636 = vld [vmem:[#allocation5 + $0xe40] sm:$0xff]
    %v637 = vld [vmem:[#allocation5 + $0xe48] sm:$0xff]
    %v638 = vld [vmem:[#allocation5 + $0xe50] sm:$0xff]
    %v639 = vld [vmem:[#allocation5 + $0xe58] sm:$0xff]
    %v640 = vld [vmem:[#allocation5 + $0xe60] sm:$0xff]
    %v641 = vld [vmem:[#allocation5 + $0xe68] sm:$0xff]
    %v642 = vld [vmem:[#allocation5 + $0xe70] sm:$0xff]
    %v643 = vld [vmem:[#allocation5 + $0xe78] sm:$0xff]
    %v644 = vld [vmem:[#allocation5 + $0xe80] sm:$0xff]
    %v645 = vld [vmem:[#allocation5 + $0xe88] sm:$0xff]
    %v646 = vld [vmem:[#allocation5 + $0xe90] sm:$0xff]
    %v647 = vld [vmem:[#allocation5 + $0xe98] sm:$0xff]
    %v648 = vld [vmem:[#allocation5 + $0xea0] sm:$0xff]
    %v649 = vld [vmem:[#allocation5 + $0xea8] sm:$0xff]
    %v650 = vld [vmem:[#allocation5 + $0xeb0] sm:$0xff]
    %v651 = vld [vmem:[#allocation5 + $0xeb8] sm:$0xff]
    %v652 = vld [vmem:[#allocation5 + $0xec0] sm:$0xff]
    %v653 = vld [vmem:[#allocation5 + $0xec8] sm:$0xff]
    %v654 = vld [vmem:[#allocation5 + $0xed0] sm:$0xff]
    %v655 = vld [vmem:[#allocation5 + $0xed8] sm:$0xff]
    %v656 = vld [vmem:[#allocation5 + $0xee0] sm:$0xff]
    %v657 = vld [vmem:[#allocation5 + $0xee8] sm:$0xff]
    %v658 = vld [vmem:[#allocation5 + $0xef0] sm:$0xff]
    %v659 = vld [vmem:[#allocation5 + $0xef8] sm:$0xff]
    %v660 = vld [vmem:[#allocation5 + $0xf00] sm:$0xff]
    %v661 = vld [vmem:[#allocation5 + $0xf08] sm:$0xff]
    %v662 = vld [vmem:[#allocation5 + $0xf10] sm:$0xff]
    %v663 = vld [vmem:[#allocation5 + $0xf18] sm:$0xff]
    %v664 = vld [vmem:[#allocation5 + $0xf20] sm:$0xff]
    %v665 = vld [vmem:[#allocation5 + $0xf28] sm:$0xff]
    %v666 = vld [vmem:[#allocation5 + $0xf30] sm:$0xff]
    %v667 = vld [vmem:[#allocation5 + $0xf38] sm:$0xff]
    %v668 = vld [vmem:[#allocation5 + $0xf40] sm:$0xff]
    %v669 = vld [vmem:[#allocation5 + $0xf48] sm:$0xff]
    %v670 = vld [vmem:[#allocation5 + $0xf50] sm:$0xff]
    %v671 = vld [vmem:[#allocation5 + $0xf58] sm:$0xff]
    %v672 = vld [vmem:[#allocation5 + $0xf60] sm:$0xff]
    %v673 = vld [vmem:[#allocation5 + $0xf68] sm:$0xff]
    %v674 = vld [vmem:[#allocation5 + $0xf70] sm:$0xff]
    %v675 = vld [vmem:[#allocation5 + $0xf78] sm:$0xff]
    %v676 = vld [vmem:[#allocation5 + $0xf80] sm:$0xff]
    %v677 = vld [vmem:[#allocation5 + $0xf88] sm:$0xff]
    %v678 = vld [vmem:[#allocation5 + $0xf90] sm:$0xff]
    %v679 = vld [vmem:[#allocation5 + $0xf98] sm:$0xff]
    %v680 = vld [vmem:[#allocation5 + $0xfa0] sm:$0xff]
    %v681 = vld [vmem:[#allocation5 + $0xfa8] sm:$0xff]
    %v682 = vld [vmem:[#allocation5 + $0xfb0] sm:$0xff]
    %v683 = vld [vmem:[#allocation5 + $0xfb8] sm:$0xff]
    %v684 = vld [vmem:[#allocation5 + $0xfc0] sm:$0xff]
    %v685 = vld [vmem:[#allocation5 + $0xfc8] sm:$0xff]
    %v686 = vld [vmem:[#allocation5 + $0xfd0] sm:$0xff]
    %v687 = vld [vmem:[#allocation5 + $0xfd8] sm:$0xff]
    %v688 = vld [vmem:[#allocation5 + $0xfe0] sm:$0xff]
    %v689 = vld [vmem:[#allocation5 + $0xfe8] sm:$0xff]
    %v690 = vld [vmem:[#allocation5 + $0xff0] sm:$0xff]
    %v691 = vld [vmem:[#allocation5 + $0xff8] sm:$0xff]
    %v692 = vld [vmem:[#allocation5 + $0x1000] sm:$0x33]
    %v693 = vld [vmem:[#allocation5 + $0x1008] sm:$0x33]
    %v694 = vld [vmem:[#allocation5 + $0x1010] sm:$0x33]
    %v695 = vld [vmem:[#allocation5 + $0x1018] sm:$0x33]
    %v696 = vld [vmem:[#allocation7] sm:$0xff]
    %v698 = vlaneseq
    %v699 = vshrl.u32 %v698, 7
    %v700 = vsub.s32 0, %v699
    %v701 = vrot.slane %v696, %v700
    %v702 = vlaneseq
    %v703 = vshrl.u32 %v702, 7
    %v704 = vsub.s32 1, %v703
    %v705 = vrot.slane %v696, %v704
    %v706 = vlaneseq
    %v707 = vshrl.u32 %v706, 7
    %v708 = vsub.s32 2, %v707
    %v709 = vrot.slane %v696, %v708
    %v710 = vlaneseq
    %v711 = vshrl.u32 %v710, 7
    %v712 = vsub.s32 3, %v711
    %v713 = vrot.slane %v696, %v712
    %v714 = vlaneseq
    %v715 = vshrl.u32 %v714, 7
    %v716 = vsub.s32 4, %v715
    %v717 = vrot.slane %v696, %v716
    %v718 = vlaneseq
    %v719 = vshrl.u32 %v718, 7
    %v720 = vsub.s32 5, %v719
    %v721 = vrot.slane %v696, %v720
    %v722 = vlaneseq
    %v723 = vshrl.u32 %v722, 7
    %v724 = vsub.s32 6, %v723
    %v725 = vrot.slane %v696, %v724
    %v726 = vlaneseq
    %v727 = vshrl.u32 %v726, 7
    %v728 = vsub.s32 7, %v727
    %v729 = vrot.slane %v696, %v728
    %v1254 = vunpack.c.l.b16 %v180
    %v1255 = vunpack.c.h.b16 %v180
    %v1256 = vunpack.c.l.b16 %v181
    %v1257 = vunpack.c.h.b16 %v181
    %v1258 = vunpack.c.l.b16 %v182
    %v1259 = vunpack.c.h.b16 %v182
    %v1260 = vunpack.c.l.b16 %v183
    %v1261 = vunpack.c.h.b16 %v183
    %v1262 = vunpack.c.l.b16 %v184
    %v1263 = vunpack.c.h.b16 %v184
    %v1264 = vunpack.c.l.b16 %v185
    %v1265 = vunpack.c.h.b16 %v185
    %v1266 = vunpack.c.l.b16 %v186
    %v1267 = vunpack.c.h.b16 %v186
    %v1268 = vunpack.c.l.b16 %v187
    %v1269 = vunpack.c.h.b16 %v187
    %v1270 = vunpack.c.l.b16 %v188
    %v1271 = vunpack.c.h.b16 %v188
    %v1272 = vunpack.c.l.b16 %v189
    %v1273 = vunpack.c.h.b16 %v189
    %v1274 = vunpack.c.l.b16 %v190
    %v1275 = vunpack.c.h.b16 %v190
    %v1276 = vunpack.c.l.b16 %v191
    %v1277 = vunpack.c.h.b16 %v191
    %v1278 = vunpack.c.l.b16 %v192
    %v1279 = vunpack.c.h.b16 %v192
    %v1280 = vunpack.c.l.b16 %v193
    %v1281 = vunpack.c.h.b16 %v193
    %v1282 = vunpack.c.l.b16 %v194
    %v1283 = vunpack.c.h.b16 %v194
    %v1284 = vunpack.c.l.b16 %v195
    %v1285 = vunpack.c.h.b16 %v195
    %v1286 = vunpack.c.l.b16 %v196
    %v1287 = vunpack.c.h.b16 %v196
    %v1288 = vunpack.c.l.b16 %v197
    %v1289 = vunpack.c.h.b16 %v197
    %v1290 = vunpack.c.l.b16 %v198
    %v1291 = vunpack.c.h.b16 %v198
    %v1292 = vunpack.c.l.b16 %v199
    %v1293 = vunpack.c.h.b16 %v199
    %v1294 = vunpack.c.l.b16 %v200
    %v1295 = vunpack.c.h.b16 %v200
    %v1296 = vunpack.c.l.b16 %v201
    %v1297 = vunpack.c.h.b16 %v201
    %v1298 = vunpack.c.l.b16 %v202
    %v1299 = vunpack.c.h.b16 %v202
    %v1300 = vunpack.c.l.b16 %v203
    %v1301 = vunpack.c.h.b16 %v203
    %v1302 = vunpack.c.l.b16 %v204
    %v1303 = vunpack.c.h.b16 %v204
    %v1304 = vunpack.c.l.b16 %v205
    %v1305 = vunpack.c.h.b16 %v205
    %v1306 = vunpack.c.l.b16 %v206
    %v1307 = vunpack.c.h.b16 %v206
    %v1308 = vunpack.c.l.b16 %v207
    %v1309 = vunpack.c.h.b16 %v207
    %v1310 = vunpack.c.l.b16 %v208
    %v1311 = vunpack.c.h.b16 %v208
    %v1312 = vunpack.c.l.b16 %v209
    %v1313 = vunpack.c.h.b16 %v209
    %v1314 = vunpack.c.l.b16 %v210
    %v1315 = vunpack.c.h.b16 %v210
    %v1316 = vunpack.c.l.b16 %v211
    %v1317 = vunpack.c.h.b16 %v211
    %v1318 = vunpack.c.l.b16 %v212
    %v1319 = vunpack.c.h.b16 %v212
    %v1320 = vunpack.c.l.b16 %v213
    %v1321 = vunpack.c.h.b16 %v213
    %v1322 = vunpack.c.l.b16 %v214
    %v1323 = vunpack.c.h.b16 %v214
    %v1324 = vunpack.c.l.b16 %v215
    %v1325 = vunpack.c.h.b16 %v215
    %v1326 = vunpack.c.l.b16 %v216
    %v1327 = vunpack.c.h.b16 %v216
    %v1328 = vunpack.c.l.b16 %v217
    %v1329 = vunpack.c.h.b16 %v217
    %v1330 = vunpack.c.l.b16 %v218
    %v1331 = vunpack.c.h.b16 %v218
    %v1332 = vunpack.c.l.b16 %v219
    %v1333 = vunpack.c.h.b16 %v219
    %v1334 = vunpack.c.l.b16 %v220
    %v1335 = vunpack.c.h.b16 %v220
    %v1336 = vunpack.c.l.b16 %v221
    %v1337 = vunpack.c.h.b16 %v221
    %v1338 = vunpack.c.l.b16 %v222
    %v1339 = vunpack.c.h.b16 %v222
    %v1340 = vunpack.c.l.b16 %v223
    %v1341 = vunpack.c.h.b16 %v223
    %v1342 = vunpack.c.l.b16 %v224
    %v1343 = vunpack.c.h.b16 %v224
    %v1344 = vunpack.c.l.b16 %v225
    %v1345 = vunpack.c.h.b16 %v225
    %v1346 = vunpack.c.l.b16 %v226
    %v1347 = vunpack.c.h.b16 %v226
    %v1348 = vunpack.c.l.b16 %v227
    %v1349 = vunpack.c.h.b16 %v227
    %v1350 = vunpack.c.l.b16 %v228
    %v1351 = vunpack.c.h.b16 %v228
    %v1352 = vunpack.c.l.b16 %v229
    %v1353 = vunpack.c.h.b16 %v229
    %v1354 = vunpack.c.l.b16 %v230
    %v1355 = vunpack.c.h.b16 %v230
    %v1356 = vunpack.c.l.b16 %v231
    %v1357 = vunpack.c.h.b16 %v231
    %v1358 = vunpack.c.l.b16 %v232
    %v1359 = vunpack.c.h.b16 %v232
    %v1360 = vunpack.c.l.b16 %v233
    %v1361 = vunpack.c.h.b16 %v233
    %v1362 = vunpack.c.l.b16 %v234
    %v1363 = vunpack.c.h.b16 %v234
    %v1364 = vunpack.c.l.b16 %v235
    %v1365 = vunpack.c.h.b16 %v235
    %v1366 = vunpack.c.l.b16 %v236
    %v1367 = vunpack.c.h.b16 %v236
    %v1368 = vunpack.c.l.b16 %v237
    %v1369 = vunpack.c.h.b16 %v237
    %v1370 = vunpack.c.l.b16 %v238
    %v1371 = vunpack.c.h.b16 %v238
    %v1372 = vunpack.c.l.b16 %v239
    %v1373 = vunpack.c.h.b16 %v239
    %v1374 = vunpack.c.l.b16 %v240
    %v1375 = vunpack.c.h.b16 %v240
    %v1376 = vunpack.c.l.b16 %v241
    %v1377 = vunpack.c.h.b16 %v241
    %v1378 = vunpack.c.l.b16 %v242
    %v1379 = vunpack.c.h.b16 %v242
    %v1380 = vunpack.c.l.b16 %v243
    %v1381 = vunpack.c.h.b16 %v243
    %v1382 = vunpack.c.l.b16 %v244
    %v1383 = vunpack.c.h.b16 %v244
    %v1384 = vunpack.c.l.b16 %v245
    %v1385 = vunpack.c.h.b16 %v245
    %v1386 = vunpack.c.l.b16 %v246
    %v1387 = vunpack.c.h.b16 %v246
    %v1388 = vunpack.c.l.b16 %v247
    %v1389 = vunpack.c.h.b16 %v247
    %v1390 = vunpack.c.l.b16 %v248
    %v1391 = vunpack.c.h.b16 %v248
    %v1392 = vunpack.c.l.b16 %v249
    %v1393 = vunpack.c.h.b16 %v249
    %v1394 = vunpack.c.l.b16 %v250
    %v1395 = vunpack.c.h.b16 %v250
    %v1396 = vunpack.c.l.b16 %v251
    %v1397 = vunpack.c.h.b16 %v251
    %v1398 = vunpack.c.l.b16 %v252
    %v1399 = vunpack.c.h.b16 %v252
    %v1400 = vunpack.c.l.b16 %v253
    %v1401 = vunpack.c.h.b16 %v253
    %v1402 = vunpack.c.l.b16 %v254
    %v1403 = vunpack.c.h.b16 %v254
    %v1404 = vunpack.c.l.b16 %v255
    %v1405 = vunpack.c.h.b16 %v255
    %v1406 = vunpack.c.l.b16 %v256
    %v1407 = vunpack.c.h.b16 %v256
    %v1408 = vunpack.c.l.b16 %v257
    %v1409 = vunpack.c.h.b16 %v257
    %v1410 = vunpack.c.l.b16 %v258
    %v1411 = vunpack.c.h.b16 %v258
    %v1412 = vunpack.c.l.b16 %v259
    %v1413 = vunpack.c.h.b16 %v259
    %v1414 = vunpack.c.l.b16 %v260
    %v1415 = vunpack.c.h.b16 %v260
    %v1416 = vunpack.c.l.b16 %v261
    %v1417 = vunpack.c.h.b16 %v261
    %v1418 = vunpack.c.l.b16 %v262
    %v1419 = vunpack.c.h.b16 %v262
    %v1420 = vunpack.c.l.b16 %v263
    %v1421 = vunpack.c.h.b16 %v263
    %v1422 = vunpack.c.l.b16 %v264
    %v1423 = vunpack.c.h.b16 %v264
    %v1424 = vunpack.c.l.b16 %v265
    %v1425 = vunpack.c.h.b16 %v265
    %v1426 = vunpack.c.l.b16 %v266
    %v1427 = vunpack.c.h.b16 %v266
    %v1428 = vunpack.c.l.b16 %v267
    %v1429 = vunpack.c.h.b16 %v267
    %v1430 = vunpack.c.l.b16 %v268
    %v1431 = vunpack.c.h.b16 %v268
    %v1432 = vunpack.c.l.b16 %v269
    %v1433 = vunpack.c.h.b16 %v269
    %v1434 = vunpack.c.l.b16 %v270
    %v1435 = vunpack.c.h.b16 %v270
    %v1436 = vunpack.c.l.b16 %v271
    %v1437 = vunpack.c.h.b16 %v271
    %v1438 = vunpack.c.l.b16 %v272
    %v1439 = vunpack.c.h.b16 %v272
    %v1440 = vunpack.c.l.b16 %v273
    %v1441 = vunpack.c.h.b16 %v273
    %v1442 = vunpack.c.l.b16 %v274
    %v1443 = vunpack.c.h.b16 %v274
    %v1444 = vunpack.c.l.b16 %v275
    %v1445 = vunpack.c.h.b16 %v275
    %v1446 = vunpack.c.l.b16 %v276
    %v1447 = vunpack.c.h.b16 %v276
    %v1448 = vunpack.c.l.b16 %v277
    %v1449 = vunpack.c.h.b16 %v277
    %v1450 = vunpack.c.l.b16 %v278
    %v1451 = vunpack.c.h.b16 %v278
    %v1452 = vunpack.c.l.b16 %v279
    %v1453 = vunpack.c.h.b16 %v279
    %v1454 = vunpack.c.l.b16 %v280
    %v1455 = vunpack.c.h.b16 %v280
    %v1456 = vunpack.c.l.b16 %v281
    %v1457 = vunpack.c.h.b16 %v281
    %v1458 = vunpack.c.l.b16 %v282
    %v1459 = vunpack.c.h.b16 %v282
    %v1460 = vunpack.c.l.b16 %v283
    %v1461 = vunpack.c.h.b16 %v283
    %v1462 = vunpack.c.l.b16 %v284
    %v1463 = vunpack.c.h.b16 %v284
    %v1464 = vunpack.c.l.b16 %v285
    %v1465 = vunpack.c.h.b16 %v285
    %v1466 = vunpack.c.l.b16 %v286
    %v1467 = vunpack.c.h.b16 %v286
    %v1468 = vunpack.c.l.b16 %v287
    %v1469 = vunpack.c.h.b16 %v287
    %v1470 = vunpack.c.l.b16 %v288
    %v1471 = vunpack.c.h.b16 %v288
    %v1472 = vunpack.c.l.b16 %v289
    %v1473 = vunpack.c.h.b16 %v289
    %v1474 = vunpack.c.l.b16 %v290
    %v1475 = vunpack.c.h.b16 %v290
    %v1476 = vunpack.c.l.b16 %v291
    %v1477 = vunpack.c.h.b16 %v291
    %v1478 = vunpack.c.l.b16 %v292
    %v1479 = vunpack.c.h.b16 %v292
    %v1480 = vunpack.c.l.b16 %v293
    %v1481 = vunpack.c.h.b16 %v293
    %v1482 = vunpack.c.l.b16 %v294
    %v1483 = vunpack.c.h.b16 %v294
    %v1484 = vunpack.c.l.b16 %v295
    %v1485 = vunpack.c.h.b16 %v295
    %v1486 = vunpack.c.l.b16 %v296
    %v1487 = vunpack.c.h.b16 %v296
    %v1488 = vunpack.c.l.b16 %v297
    %v1489 = vunpack.c.h.b16 %v297
    %v1490 = vunpack.c.l.b16 %v298
    %v1491 = vunpack.c.h.b16 %v298
    %v1492 = vunpack.c.l.b16 %v299
    %v1493 = vunpack.c.h.b16 %v299
    %v1494 = vunpack.c.l.b16 %v300
    %v1495 = vunpack.c.h.b16 %v300
    %v1496 = vunpack.c.l.b16 %v301
    %v1497 = vunpack.c.h.b16 %v301
    %v1498 = vunpack.c.l.b16 %v302
    %v1499 = vunpack.c.h.b16 %v302
    %v1500 = vunpack.c.l.b16 %v303
    %v1501 = vunpack.c.h.b16 %v303
    %v1502 = vunpack.c.l.b16 %v304
    %v1503 = vunpack.c.h.b16 %v304
    %v1504 = vunpack.c.l.b16 %v305
    %v1505 = vunpack.c.h.b16 %v305
    %v1506 = vunpack.c.l.b16 %v306
    %v1507 = vunpack.c.h.b16 %v306
    %v1508 = vunpack.c.l.b16 %v307
    %v1509 = vunpack.c.h.b16 %v307
    %v1510 = vunpack.c.l.b16 %v308
    %v1511 = vunpack.c.h.b16 %v308
    %v1512 = vunpack.c.l.b16 %v309
    %v1513 = vunpack.c.h.b16 %v309
    %v1514 = vunpack.c.l.b16 %v310
    %v1515 = vunpack.c.h.b16 %v310
    %v1516 = vunpack.c.l.b16 %v311
    %v1517 = vunpack.c.h.b16 %v311
    %v1518 = vunpack.c.l.b16 %v312
    %v1519 = vunpack.c.h.b16 %v312
    %v1520 = vunpack.c.l.b16 %v313
    %v1521 = vunpack.c.h.b16 %v313
    %v1522 = vunpack.c.l.b16 %v314
    %v1523 = vunpack.c.h.b16 %v314
    %v1524 = vunpack.c.l.b16 %v315
    %v1525 = vunpack.c.h.b16 %v315
    %v1526 = vunpack.c.l.b16 %v316
    %v1527 = vunpack.c.h.b16 %v316
    %v1528 = vunpack.c.l.b16 %v317
    %v1529 = vunpack.c.h.b16 %v317
    %v1530 = vunpack.c.l.b16 %v318
    %v1531 = vunpack.c.h.b16 %v318
    %v1532 = vunpack.c.l.b16 %v319
    %v1533 = vunpack.c.h.b16 %v319
    %v1534 = vunpack.c.l.b16 %v320
    %v1535 = vunpack.c.h.b16 %v320
    %v1536 = vunpack.c.l.b16 %v321
    %v1537 = vunpack.c.h.b16 %v321
    %v1538 = vunpack.c.l.b16 %v322
    %v1539 = vunpack.c.h.b16 %v322
    %v1540 = vunpack.c.l.b16 %v323
    %v1541 = vunpack.c.h.b16 %v323
    %v1542 = vunpack.c.l.b16 %v324
    %v1543 = vunpack.c.h.b16 %v324
    %v1544 = vunpack.c.l.b16 %v325
    %v1545 = vunpack.c.h.b16 %v325
    %v1546 = vunpack.c.l.b16 %v326
    %v1547 = vunpack.c.h.b16 %v326
    %v1548 = vunpack.c.l.b16 %v327
    %v1549 = vunpack.c.h.b16 %v327
    %v1550 = vunpack.c.l.b16 %v328
    %v1551 = vunpack.c.h.b16 %v328
    %v1552 = vunpack.c.l.b16 %v329
    %v1553 = vunpack.c.h.b16 %v329
    %v1554 = vunpack.c.l.b16 %v330
    %v1555 = vunpack.c.h.b16 %v330
    %v1556 = vunpack.c.l.b16 %v331
    %v1557 = vunpack.c.h.b16 %v331
    %v1558 = vunpack.c.l.b16 %v332
    %v1559 = vunpack.c.h.b16 %v332
    %v1560 = vunpack.c.l.b16 %v333
    %v1561 = vunpack.c.h.b16 %v333
    %v1562 = vunpack.c.l.b16 %v334
    %v1563 = vunpack.c.h.b16 %v334
    %v1564 = vunpack.c.l.b16 %v335
    %v1565 = vunpack.c.h.b16 %v335
    %v1566 = vunpack.c.l.b16 %v336
    %v1567 = vunpack.c.h.b16 %v336
    %v1568 = vunpack.c.l.b16 %v337
    %v1569 = vunpack.c.h.b16 %v337
    %v1570 = vunpack.c.l.b16 %v338
    %v1571 = vunpack.c.h.b16 %v338
    %v1572 = vunpack.c.l.b16 %v339
    %v1573 = vunpack.c.h.b16 %v339
    %v1574 = vunpack.c.l.b16 %v340
    %v1575 = vunpack.c.h.b16 %v340
    %v1576 = vunpack.c.l.b16 %v341
    %v1577 = vunpack.c.h.b16 %v341
    %v1578 = vunpack.c.l.b16 %v342
    %v1579 = vunpack.c.h.b16 %v342
    %v1580 = vunpack.c.l.b16 %v343
    %v1581 = vunpack.c.h.b16 %v343
    %v1582 = vunpack.c.l.b16 %v344
    %v1583 = vunpack.c.h.b16 %v344
    %v1584 = vunpack.c.l.b16 %v345
    %v1585 = vunpack.c.h.b16 %v345
    %v1586 = vunpack.c.l.b16 %v346
    %v1587 = vunpack.c.h.b16 %v346
    %v1588 = vunpack.c.l.b16 %v347
    %v1589 = vunpack.c.h.b16 %v347
    %v1590 = vunpack.c.l.b16 %v348
    %v1591 = vunpack.c.h.b16 %v348
    %v1592 = vunpack.c.l.b16 %v349
    %v1593 = vunpack.c.h.b16 %v349
    %v1594 = vunpack.c.l.b16 %v350
    %v1595 = vunpack.c.h.b16 %v350
    %v1596 = vunpack.c.l.b16 %v351
    %v1597 = vunpack.c.h.b16 %v351
    %v1598 = vunpack.c.l.b16 %v352
    %v1599 = vunpack.c.h.b16 %v352
    %v1600 = vunpack.c.l.b16 %v353
    %v1601 = vunpack.c.h.b16 %v353
    %v1602 = vunpack.c.l.b16 %v354
    %v1603 = vunpack.c.h.b16 %v354
    %v1604 = vunpack.c.l.b16 %v355
    %v1605 = vunpack.c.h.b16 %v355
    %v1606 = vunpack.c.l.b16 %v356
    %v1607 = vunpack.c.h.b16 %v356
    %v1608 = vunpack.c.l.b16 %v357
    %v1609 = vunpack.c.h.b16 %v357
    %v1610 = vunpack.c.l.b16 %v358
    %v1611 = vunpack.c.h.b16 %v358
    %v1612 = vunpack.c.l.b16 %v359
    %v1613 = vunpack.c.h.b16 %v359
    %v1614 = vunpack.c.l.b16 %v360
    %v1615 = vunpack.c.h.b16 %v360
    %v1616 = vunpack.c.l.b16 %v361
    %v1617 = vunpack.c.h.b16 %v361
    %v1618 = vunpack.c.l.b16 %v362
    %v1619 = vunpack.c.h.b16 %v362
    %v1620 = vunpack.c.l.b16 %v363
    %v1621 = vunpack.c.h.b16 %v363
    %v1622 = vunpack.c.l.b16 %v364
    %v1623 = vunpack.c.h.b16 %v364
    %v1624 = vunpack.c.l.b16 %v365
    %v1625 = vunpack.c.h.b16 %v365
    %v1626 = vunpack.c.l.b16 %v366
    %v1627 = vunpack.c.h.b16 %v366
    %v1628 = vunpack.c.l.b16 %v367
    %v1629 = vunpack.c.h.b16 %v367
    %v1630 = vunpack.c.l.b16 %v368
    %v1631 = vunpack.c.h.b16 %v368
    %v1632 = vunpack.c.l.b16 %v369
    %v1633 = vunpack.c.h.b16 %v369
    %v1634 = vunpack.c.l.b16 %v370
    %v1635 = vunpack.c.h.b16 %v370
    %v1636 = vunpack.c.l.b16 %v371
    %v1637 = vunpack.c.h.b16 %v371
    %v1638 = vunpack.c.l.b16 %v372
    %v1639 = vunpack.c.h.b16 %v372
    %v1640 = vunpack.c.l.b16 %v373
    %v1641 = vunpack.c.h.b16 %v373
    %v1642 = vunpack.c.l.b16 %v374
    %v1643 = vunpack.c.h.b16 %v374
    %v1644 = vunpack.c.l.b16 %v375
    %v1645 = vunpack.c.h.b16 %v375
    %v1646 = vunpack.c.l.b16 %v376
    %v1647 = vunpack.c.h.b16 %v376
    %v1648 = vunpack.c.l.b16 %v377
    %v1649 = vunpack.c.h.b16 %v377
    %v1650 = vunpack.c.l.b16 %v378
    %v1651 = vunpack.c.h.b16 %v378
    %v1652 = vunpack.c.l.b16 %v379
    %v1653 = vunpack.c.h.b16 %v379
    %v1654 = vunpack.c.l.b16 %v380
    %v1655 = vunpack.c.h.b16 %v380
    %v1656 = vunpack.c.l.b16 %v381
    %v1657 = vunpack.c.h.b16 %v381
    %v1658 = vunpack.c.l.b16 %v382
    %v1659 = vunpack.c.h.b16 %v382
    %v1660 = vunpack.c.l.b16 %v383
    %v1661 = vunpack.c.h.b16 %v383
    %v1662 = vunpack.c.l.b16 %v384
    %v1663 = vunpack.c.h.b16 %v384
    %v1664 = vunpack.c.l.b16 %v385
    %v1665 = vunpack.c.h.b16 %v385
    %v1666 = vunpack.c.l.b16 %v386
    %v1667 = vunpack.c.h.b16 %v386
    %v1668 = vunpack.c.l.b16 %v387
    %v1669 = vunpack.c.h.b16 %v387
    %v1670 = vunpack.c.l.b16 %v388
    %v1671 = vunpack.c.h.b16 %v388
    %v1672 = vunpack.c.l.b16 %v389
    %v1673 = vunpack.c.h.b16 %v389
    %v1674 = vunpack.c.l.b16 %v390
    %v1675 = vunpack.c.h.b16 %v390
    %v1676 = vunpack.c.l.b16 %v391
    %v1677 = vunpack.c.h.b16 %v391
    %v1678 = vunpack.c.l.b16 %v392
    %v1679 = vunpack.c.h.b16 %v392
    %v1680 = vunpack.c.l.b16 %v393
    %v1681 = vunpack.c.h.b16 %v393
    %v1682 = vunpack.c.l.b16 %v394
    %v1683 = vunpack.c.h.b16 %v394
    %v1684 = vunpack.c.l.b16 %v395
    %v1685 = vunpack.c.h.b16 %v395
    %v1686 = vunpack.c.l.b16 %v396
    %v1687 = vunpack.c.h.b16 %v396
    %v1688 = vunpack.c.l.b16 %v397
    %v1689 = vunpack.c.h.b16 %v397
    %v1690 = vunpack.c.l.b16 %v398
    %v1691 = vunpack.c.h.b16 %v398
    %v1692 = vunpack.c.l.b16 %v399
    %v1693 = vunpack.c.h.b16 %v399
    %v1694 = vunpack.c.l.b16 %v400
    %v1695 = vunpack.c.h.b16 %v400
    %v1696 = vunpack.c.l.b16 %v401
    %v1697 = vunpack.c.h.b16 %v401
    %v1698 = vunpack.c.l.b16 %v402
    %v1699 = vunpack.c.h.b16 %v402
    %v1700 = vunpack.c.l.b16 %v403
    %v1701 = vunpack.c.h.b16 %v403
    %v1702 = vunpack.c.l.b16 %v404
    %v1703 = vunpack.c.h.b16 %v404
    %v1704 = vunpack.c.l.b16 %v405
    %v1705 = vunpack.c.h.b16 %v405
    %v1706 = vunpack.c.l.b16 %v406
    %v1707 = vunpack.c.h.b16 %v406
    %v1708 = vunpack.c.l.b16 %v407
    %v1709 = vunpack.c.h.b16 %v407
    %v1710 = vunpack.c.l.b16 %v408
    %v1711 = vunpack.c.h.b16 %v408
    %v1712 = vunpack.c.l.b16 %v409
    %v1713 = vunpack.c.h.b16 %v409
    %v1714 = vunpack.c.l.b16 %v410
    %v1715 = vunpack.c.h.b16 %v410
    %v1716 = vunpack.c.l.b16 %v411
    %v1717 = vunpack.c.h.b16 %v411
    %v1718 = vunpack.c.l.b16 %v412
    %v1719 = vunpack.c.h.b16 %v412
    %v1720 = vunpack.c.l.b16 %v413
    %v1721 = vunpack.c.h.b16 %v413
    %v1722 = vunpack.c.l.b16 %v414
    %v1723 = vunpack.c.h.b16 %v414
    %v1724 = vunpack.c.l.b16 %v415
    %v1725 = vunpack.c.h.b16 %v415
    %v1726 = vunpack.c.l.b16 %v416
    %v1727 = vunpack.c.h.b16 %v416
    %v1728 = vunpack.c.l.b16 %v417
    %v1729 = vunpack.c.h.b16 %v417
    %v1730 = vunpack.c.l.b16 %v418
    %v1731 = vunpack.c.h.b16 %v418
    %v1732 = vunpack.c.l.b16 %v419
    %v1733 = vunpack.c.h.b16 %v419
    %v1734 = vunpack.c.l.b16 %v420
    %v1735 = vunpack.c.h.b16 %v420
    %v1736 = vunpack.c.l.b16 %v421
    %v1737 = vunpack.c.h.b16 %v421
    %v1738 = vunpack.c.l.b16 %v422
    %v1739 = vunpack.c.h.b16 %v422
    %v1740 = vunpack.c.l.b16 %v423
    %v1741 = vunpack.c.h.b16 %v423
    %v1742 = vunpack.c.l.b16 %v424
    %v1743 = vunpack.c.h.b16 %v424
    %v1744 = vunpack.c.l.b16 %v425
    %v1745 = vunpack.c.h.b16 %v425
    %v1746 = vunpack.c.l.b16 %v426
    %v1747 = vunpack.c.h.b16 %v426
    %v1748 = vunpack.c.l.b16 %v427
    %v1749 = vunpack.c.h.b16 %v427
    %v1750 = vunpack.c.l.b16 %v428
    %v1751 = vunpack.c.h.b16 %v428
    %v1752 = vunpack.c.l.b16 %v429
    %v1753 = vunpack.c.h.b16 %v429
    %v1754 = vunpack.c.l.b16 %v430
    %v1755 = vunpack.c.h.b16 %v430
    %v1756 = vunpack.c.l.b16 %v431
    %v1757 = vunpack.c.h.b16 %v431
    %v1758 = vunpack.c.l.b16 %v432
    %v1759 = vunpack.c.h.b16 %v432
    %v1760 = vunpack.c.l.b16 %v433
    %v1761 = vunpack.c.h.b16 %v433
    %v1762 = vunpack.c.l.b16 %v434
    %v1763 = vunpack.c.h.b16 %v434
    %v1764 = vunpack.c.l.b16 %v435
    %v1765 = vunpack.c.h.b16 %v435
    %v1766 = vunpack.c.l.b16 %v436
    %v1767 = vunpack.c.h.b16 %v436
    %v1768 = vunpack.c.l.b16 %v437
    %v1769 = vunpack.c.h.b16 %v437
    %v1770 = vunpack.c.l.b16 %v438
    %v1771 = vunpack.c.h.b16 %v438
    %v1772 = vunpack.c.l.b16 %v439
    %v1773 = vunpack.c.h.b16 %v439
    %v1774 = vunpack.c.l.b16 %v440
    %v1775 = vunpack.c.h.b16 %v440
    %v1776 = vunpack.c.l.b16 %v441
    %v1777 = vunpack.c.h.b16 %v441
    %v1778 = vunpack.c.l.b16 %v442
    %v1779 = vunpack.c.h.b16 %v442
    %v1780 = vunpack.c.l.b16 %v443
    %v1781 = vunpack.c.h.b16 %v443
    %v1782 = vunpack.c.l.b16 %v444
    %v1783 = vunpack.c.h.b16 %v444
    %v1784 = vunpack.c.l.b16 %v445
    %v1785 = vunpack.c.h.b16 %v445
    %v1786 = vunpack.c.l.b16 %v446
    %v1787 = vunpack.c.h.b16 %v446
    %v1788 = vunpack.c.l.b16 %v447
    %v1789 = vunpack.c.h.b16 %v447
    %v1790 = vunpack.c.l.b16 %v448
    %v1791 = vunpack.c.h.b16 %v448
    %v1792 = vunpack.c.l.b16 %v449
    %v1793 = vunpack.c.h.b16 %v449
    %v1794 = vunpack.c.l.b16 %v450
    %v1795 = vunpack.c.h.b16 %v450
    %v1796 = vunpack.c.l.b16 %v451
    %v1797 = vunpack.c.h.b16 %v451
    %v1798 = vunpack.c.l.b16 %v452
    %v1799 = vunpack.c.h.b16 %v452
    %v1800 = vunpack.c.l.b16 %v453
    %v1801 = vunpack.c.h.b16 %v453
    %v1802 = vunpack.c.l.b16 %v454
    %v1803 = vunpack.c.h.b16 %v454
    %v1804 = vunpack.c.l.b16 %v455
    %v1805 = vunpack.c.h.b16 %v455
    %v1806 = vunpack.c.l.b16 %v456
    %v1807 = vunpack.c.h.b16 %v456
    %v1808 = vunpack.c.l.b16 %v457
    %v1809 = vunpack.c.h.b16 %v457
    %v1810 = vunpack.c.l.b16 %v458
    %v1811 = vunpack.c.h.b16 %v458
    %v1812 = vunpack.c.l.b16 %v459
    %v1813 = vunpack.c.h.b16 %v459
    %v1814 = vunpack.c.l.b16 %v460
    %v1815 = vunpack.c.h.b16 %v460
    %v1816 = vunpack.c.l.b16 %v461
    %v1817 = vunpack.c.h.b16 %v461
    %v1818 = vunpack.c.l.b16 %v462
    %v1819 = vunpack.c.h.b16 %v462
    %v1820 = vunpack.c.l.b16 %v463
    %v1821 = vunpack.c.h.b16 %v463
    %v1822 = vunpack.c.l.b16 %v464
    %v1823 = vunpack.c.h.b16 %v464
    %v1824 = vunpack.c.l.b16 %v465
    %v1825 = vunpack.c.h.b16 %v465
    %v1826 = vunpack.c.l.b16 %v466
    %v1827 = vunpack.c.h.b16 %v466
    %v1828 = vunpack.c.l.b16 %v467
    %v1829 = vunpack.c.h.b16 %v467
    %v1830 = vunpack.c.l.b16 %v468
    %v1831 = vunpack.c.h.b16 %v468
    %v1832 = vunpack.c.l.b16 %v469
    %v1833 = vunpack.c.h.b16 %v469
    %v1834 = vunpack.c.l.b16 %v470
    %v1835 = vunpack.c.h.b16 %v470
    %v1836 = vunpack.c.l.b16 %v471
    %v1837 = vunpack.c.h.b16 %v471
    %v1838 = vunpack.c.l.b16 %v472
    %v1839 = vunpack.c.h.b16 %v472
    %v1840 = vunpack.c.l.b16 %v473
    %v1841 = vunpack.c.h.b16 %v473
    %v1842 = vunpack.c.l.b16 %v474
    %v1843 = vunpack.c.h.b16 %v474
    %v1844 = vunpack.c.l.b16 %v475
    %v1845 = vunpack.c.h.b16 %v475
    %v1846 = vunpack.c.l.b16 %v476
    %v1847 = vunpack.c.h.b16 %v476
    %v1848 = vunpack.c.l.b16 %v477
    %v1849 = vunpack.c.h.b16 %v477
    %v1850 = vunpack.c.l.b16 %v478
    %v1851 = vunpack.c.h.b16 %v478
    %v1852 = vunpack.c.l.b16 %v479
    %v1853 = vunpack.c.h.b16 %v479
    %v1854 = vunpack.c.l.b16 %v480
    %v1855 = vunpack.c.h.b16 %v480
    %v1856 = vunpack.c.l.b16 %v481
    %v1857 = vunpack.c.h.b16 %v481
    %v1858 = vunpack.c.l.b16 %v482
    %v1859 = vunpack.c.h.b16 %v482
    %v1860 = vunpack.c.l.b16 %v483
    %v1861 = vunpack.c.h.b16 %v483
    %v1862 = vunpack.c.l.b16 %v484
    %v1863 = vunpack.c.h.b16 %v484
    %v1864 = vunpack.c.l.b16 %v485
    %v1865 = vunpack.c.h.b16 %v485
    %v1866 = vunpack.c.l.b16 %v486
    %v1867 = vunpack.c.h.b16 %v486
    %v1868 = vunpack.c.l.b16 %v487
    %v1869 = vunpack.c.h.b16 %v487
    %v1870 = vunpack.c.l.b16 %v488
    %v1871 = vunpack.c.h.b16 %v488
    %v1872 = vunpack.c.l.b16 %v489
    %v1873 = vunpack.c.h.b16 %v489
    %v1874 = vunpack.c.l.b16 %v490
    %v1875 = vunpack.c.h.b16 %v490
    %v1876 = vunpack.c.l.b16 %v491
    %v1877 = vunpack.c.h.b16 %v491
    %v1878 = vunpack.c.l.b16 %v492
    %v1879 = vunpack.c.h.b16 %v492
    %v1880 = vunpack.c.l.b16 %v493
    %v1881 = vunpack.c.h.b16 %v493
    %v1882 = vunpack.c.l.b16 %v494
    %v1883 = vunpack.c.h.b16 %v494
    %v1884 = vunpack.c.l.b16 %v495
    %v1885 = vunpack.c.h.b16 %v495
    %v1886 = vunpack.c.l.b16 %v496
    %v1887 = vunpack.c.h.b16 %v496
    %v1888 = vunpack.c.l.b16 %v497
    %v1889 = vunpack.c.h.b16 %v497
    %v1890 = vunpack.c.l.b16 %v498
    %v1891 = vunpack.c.h.b16 %v498
    %v1892 = vunpack.c.l.b16 %v499
    %v1893 = vunpack.c.h.b16 %v499
    %v1894 = vunpack.c.l.b16 %v500
    %v1895 = vunpack.c.h.b16 %v500
    %v1896 = vunpack.c.l.b16 %v501
    %v1897 = vunpack.c.h.b16 %v501
    %v1898 = vunpack.c.l.b16 %v502
    %v1899 = vunpack.c.h.b16 %v502
    %v1900 = vunpack.c.l.b16 %v503
    %v1901 = vunpack.c.h.b16 %v503
    %v1902 = vunpack.c.l.b16 %v504
    %v1903 = vunpack.c.h.b16 %v504
    %v1904 = vunpack.c.l.b16 %v505
    %v1905 = vunpack.c.h.b16 %v505
    %v1906 = vunpack.c.l.b16 %v506
    %v1907 = vunpack.c.h.b16 %v506
    %v1908 = vunpack.c.l.b16 %v507
    %v1909 = vunpack.c.h.b16 %v507
    %v1910 = vunpack.c.l.b16 %v508
    %v1911 = vunpack.c.h.b16 %v508
    %v1912 = vunpack.c.l.b16 %v509
    %v1913 = vunpack.c.h.b16 %v509
    %v1914 = vunpack.c.l.b16 %v510
    %v1915 = vunpack.c.h.b16 %v510
    %v1916 = vunpack.c.l.b16 %v511
    %v1917 = vunpack.c.h.b16 %v511
    %v1918 = vunpack.c.l.b16 %v512
    %v1919 = vunpack.c.h.b16 %v512
    %v1920 = vunpack.c.l.b16 %v513
    %v1921 = vunpack.c.h.b16 %v513
    %v1922 = vunpack.c.l.b16 %v514
    %v1923 = vunpack.c.h.b16 %v514
    %v1924 = vunpack.c.l.b16 %v515
    %v1925 = vunpack.c.h.b16 %v515
    %v1926 = vunpack.c.l.b16 %v516
    %v1927 = vunpack.c.h.b16 %v516
    %v1928 = vunpack.c.l.b16 %v517
    %v1929 = vunpack.c.h.b16 %v517
    %v1930 = vunpack.c.l.b16 %v518
    %v1931 = vunpack.c.h.b16 %v518
    %v1932 = vunpack.c.l.b16 %v519
    %v1933 = vunpack.c.h.b16 %v519
    %v1934 = vunpack.c.l.b16 %v520
    %v1935 = vunpack.c.h.b16 %v520
    %v1936 = vunpack.c.l.b16 %v521
    %v1937 = vunpack.c.h.b16 %v521
    %v1938 = vunpack.c.l.b16 %v522
    %v1939 = vunpack.c.h.b16 %v522
    %v1940 = vunpack.c.l.b16 %v523
    %v1941 = vunpack.c.h.b16 %v523
    %v1942 = vunpack.c.l.b16 %v524
    %v1943 = vunpack.c.h.b16 %v524
    %v1944 = vunpack.c.l.b16 %v525
    %v1945 = vunpack.c.h.b16 %v525
    %v1946 = vunpack.c.l.b16 %v526
    %v1947 = vunpack.c.h.b16 %v526
    %v1948 = vunpack.c.l.b16 %v527
    %v1949 = vunpack.c.h.b16 %v527
    %v1950 = vunpack.c.l.b16 %v528
    %v1951 = vunpack.c.h.b16 %v528
    %v1952 = vunpack.c.l.b16 %v529
    %v1953 = vunpack.c.h.b16 %v529
    %v1954 = vunpack.c.l.b16 %v530
    %v1955 = vunpack.c.h.b16 %v530
    %v1956 = vunpack.c.l.b16 %v531
    %v1957 = vunpack.c.h.b16 %v531
    %v1958 = vunpack.c.l.b16 %v532
    %v1959 = vunpack.c.h.b16 %v532
    %v1960 = vunpack.c.l.b16 %v533
    %v1961 = vunpack.c.h.b16 %v533
    %v1962 = vunpack.c.l.b16 %v534
    %v1963 = vunpack.c.h.b16 %v534
    %v1964 = vunpack.c.l.b16 %v535
    %v1965 = vunpack.c.h.b16 %v535
    %v1966 = vunpack.c.l.b16 %v536
    %v1967 = vunpack.c.h.b16 %v536
    %v1968 = vunpack.c.l.b16 %v537
    %v1969 = vunpack.c.h.b16 %v537
    %v1970 = vunpack.c.l.b16 %v538
    %v1971 = vunpack.c.h.b16 %v538
    %v1972 = vunpack.c.l.b16 %v539
    %v1973 = vunpack.c.h.b16 %v539
    %v1974 = vunpack.c.l.b16 %v540
    %v1975 = vunpack.c.h.b16 %v540
    %v1976 = vunpack.c.l.b16 %v541
    %v1977 = vunpack.c.h.b16 %v541
    %v1978 = vunpack.c.l.b16 %v542
    %v1979 = vunpack.c.h.b16 %v542
    %v1980 = vunpack.c.l.b16 %v543
    %v1981 = vunpack.c.h.b16 %v543
    %v1982 = vunpack.c.l.b16 %v544
    %v1983 = vunpack.c.h.b16 %v544
    %v1984 = vunpack.c.l.b16 %v545
    %v1985 = vunpack.c.h.b16 %v545
    %v1986 = vunpack.c.l.b16 %v546
    %v1987 = vunpack.c.h.b16 %v546
    %v1988 = vunpack.c.l.b16 %v547
    %v1989 = vunpack.c.h.b16 %v547
    %v1990 = vunpack.c.l.b16 %v548
    %v1991 = vunpack.c.h.b16 %v548
    %v1992 = vunpack.c.l.b16 %v549
    %v1993 = vunpack.c.h.b16 %v549
    %v1994 = vunpack.c.l.b16 %v550
    %v1995 = vunpack.c.h.b16 %v550
    %v1996 = vunpack.c.l.b16 %v551
    %v1997 = vunpack.c.h.b16 %v551
    %v1998 = vunpack.c.l.b16 %v552
    %v1999 = vunpack.c.h.b16 %v552
    %v2000 = vunpack.c.l.b16 %v553
    %v2001 = vunpack.c.h.b16 %v553
    %v2002 = vunpack.c.l.b16 %v554
    %v2003 = vunpack.c.h.b16 %v554
    %v2004 = vunpack.c.l.b16 %v555
    %v2005 = vunpack.c.h.b16 %v555
    %v2006 = vunpack.c.l.b16 %v556
    %v2007 = vunpack.c.h.b16 %v556
    %v2008 = vunpack.c.l.b16 %v557
    %v2009 = vunpack.c.h.b16 %v557
    %v2010 = vunpack.c.l.b16 %v558
    %v2011 = vunpack.c.h.b16 %v558
    %v2012 = vunpack.c.l.b16 %v559
    %v2013 = vunpack.c.h.b16 %v559
    %v2014 = vunpack.c.l.b16 %v560
    %v2015 = vunpack.c.h.b16 %v560
    %v2016 = vunpack.c.l.b16 %v561
    %v2017 = vunpack.c.h.b16 %v561
    %v2018 = vunpack.c.l.b16 %v562
    %v2019 = vunpack.c.h.b16 %v562
    %v2020 = vunpack.c.l.b16 %v563
    %v2021 = vunpack.c.h.b16 %v563
    %v2022 = vunpack.c.l.b16 %v564
    %v2023 = vunpack.c.h.b16 %v564
    %v2024 = vunpack.c.l.b16 %v565
    %v2025 = vunpack.c.h.b16 %v565
    %v2026 = vunpack.c.l.b16 %v566
    %v2027 = vunpack.c.h.b16 %v566
    %v2028 = vunpack.c.l.b16 %v567
    %v2029 = vunpack.c.h.b16 %v567
    %v2030 = vunpack.c.l.b16 %v568
    %v2031 = vunpack.c.h.b16 %v568
    %v2032 = vunpack.c.l.b16 %v569
    %v2033 = vunpack.c.h.b16 %v569
    %v2034 = vunpack.c.l.b16 %v570
    %v2035 = vunpack.c.h.b16 %v570
    %v2036 = vunpack.c.l.b16 %v571
    %v2037 = vunpack.c.h.b16 %v571
    %v2038 = vunpack.c.l.b16 %v572
    %v2039 = vunpack.c.h.b16 %v572
    %v2040 = vunpack.c.l.b16 %v573
    %v2041 = vunpack.c.h.b16 %v573
    %v2042 = vunpack.c.l.b16 %v574
    %v2043 = vunpack.c.h.b16 %v574
    %v2044 = vunpack.c.l.b16 %v575
    %v2045 = vunpack.c.h.b16 %v575
    %v2046 = vunpack.c.l.b16 %v576
    %v2047 = vunpack.c.h.b16 %v576
    %v2048 = vunpack.c.l.b16 %v577
    %v2049 = vunpack.c.h.b16 %v577
    %v2050 = vunpack.c.l.b16 %v578
    %v2051 = vunpack.c.h.b16 %v578
    %v2052 = vunpack.c.l.b16 %v579
    %v2053 = vunpack.c.h.b16 %v579
    %v2054 = vunpack.c.l.b16 %v580
    %v2055 = vunpack.c.h.b16 %v580
    %v2056 = vunpack.c.l.b16 %v581
    %v2057 = vunpack.c.h.b16 %v581
    %v2058 = vunpack.c.l.b16 %v582
    %v2059 = vunpack.c.h.b16 %v582
    %v2060 = vunpack.c.l.b16 %v583
    %v2061 = vunpack.c.h.b16 %v583
    %v2062 = vunpack.c.l.b16 %v584
    %v2063 = vunpack.c.h.b16 %v584
    %v2064 = vunpack.c.l.b16 %v585
    %v2065 = vunpack.c.h.b16 %v585
    %v2066 = vunpack.c.l.b16 %v586
    %v2067 = vunpack.c.h.b16 %v586
    %v2068 = vunpack.c.l.b16 %v587
    %v2069 = vunpack.c.h.b16 %v587
    %v2070 = vunpack.c.l.b16 %v588
    %v2071 = vunpack.c.h.b16 %v588
    %v2072 = vunpack.c.l.b16 %v589
    %v2073 = vunpack.c.h.b16 %v589
    %v2074 = vunpack.c.l.b16 %v590
    %v2075 = vunpack.c.h.b16 %v590
    %v2076 = vunpack.c.l.b16 %v591
    %v2077 = vunpack.c.h.b16 %v591
    %v2078 = vunpack.c.l.b16 %v592
    %v2079 = vunpack.c.h.b16 %v592
    %v2080 = vunpack.c.l.b16 %v593
    %v2081 = vunpack.c.h.b16 %v593
    %v2082 = vunpack.c.l.b16 %v594
    %v2083 = vunpack.c.h.b16 %v594
    %v2084 = vunpack.c.l.b16 %v595
    %v2085 = vunpack.c.h.b16 %v595
    %v2086 = vunpack.c.l.b16 %v596
    %v2087 = vunpack.c.h.b16 %v596
    %v2088 = vunpack.c.l.b16 %v597
    %v2089 = vunpack.c.h.b16 %v597
    %v2090 = vunpack.c.l.b16 %v598
    %v2091 = vunpack.c.h.b16 %v598
    %v2092 = vunpack.c.l.b16 %v599
    %v2093 = vunpack.c.h.b16 %v599
    %v2094 = vunpack.c.l.b16 %v600
    %v2095 = vunpack.c.h.b16 %v600
    %v2096 = vunpack.c.l.b16 %v601
    %v2097 = vunpack.c.h.b16 %v601
    %v2098 = vunpack.c.l.b16 %v602
    %v2099 = vunpack.c.h.b16 %v602
    %v2100 = vunpack.c.l.b16 %v603
    %v2101 = vunpack.c.h.b16 %v603
    %v2102 = vunpack.c.l.b16 %v604
    %v2103 = vunpack.c.h.b16 %v604
    %v2104 = vunpack.c.l.b16 %v605
    %v2105 = vunpack.c.h.b16 %v605
    %v2106 = vunpack.c.l.b16 %v606
    %v2107 = vunpack.c.h.b16 %v606
    %v2108 = vunpack.c.l.b16 %v607
    %v2109 = vunpack.c.h.b16 %v607
    %v2110 = vunpack.c.l.b16 %v608
    %v2111 = vunpack.c.h.b16 %v608
    %v2112 = vunpack.c.l.b16 %v609
    %v2113 = vunpack.c.h.b16 %v609
    %v2114 = vunpack.c.l.b16 %v610
    %v2115 = vunpack.c.h.b16 %v610
    %v2116 = vunpack.c.l.b16 %v611
    %v2117 = vunpack.c.h.b16 %v611
    %v2118 = vunpack.c.l.b16 %v612
    %v2119 = vunpack.c.h.b16 %v612
    %v2120 = vunpack.c.l.b16 %v613
    %v2121 = vunpack.c.h.b16 %v613
    %v2122 = vunpack.c.l.b16 %v614
    %v2123 = vunpack.c.h.b16 %v614
    %v2124 = vunpack.c.l.b16 %v615
    %v2125 = vunpack.c.h.b16 %v615
    %v2126 = vunpack.c.l.b16 %v616
    %v2127 = vunpack.c.h.b16 %v616
    %v2128 = vunpack.c.l.b16 %v617
    %v2129 = vunpack.c.h.b16 %v617
    %v2130 = vunpack.c.l.b16 %v618
    %v2131 = vunpack.c.h.b16 %v618
    %v2132 = vunpack.c.l.b16 %v619
    %v2133 = vunpack.c.h.b16 %v619
    %v2134 = vunpack.c.l.b16 %v620
    %v2135 = vunpack.c.h.b16 %v620
    %v2136 = vunpack.c.l.b16 %v621
    %v2137 = vunpack.c.h.b16 %v621
    %v2138 = vunpack.c.l.b16 %v622
    %v2139 = vunpack.c.h.b16 %v622
    %v2140 = vunpack.c.l.b16 %v623
    %v2141 = vunpack.c.h.b16 %v623
    %v2142 = vunpack.c.l.b16 %v624
    %v2143 = vunpack.c.h.b16 %v624
    %v2144 = vunpack.c.l.b16 %v625
    %v2145 = vunpack.c.h.b16 %v625
    %v2146 = vunpack.c.l.b16 %v626
    %v2147 = vunpack.c.h.b16 %v626
    %v2148 = vunpack.c.l.b16 %v627
    %v2149 = vunpack.c.h.b16 %v627
    %v2150 = vunpack.c.l.b16 %v628
    %v2151 = vunpack.c.h.b16 %v628
    %v2152 = vunpack.c.l.b16 %v629
    %v2153 = vunpack.c.h.b16 %v629
    %v2154 = vunpack.c.l.b16 %v630
    %v2155 = vunpack.c.h.b16 %v630
    %v2156 = vunpack.c.l.b16 %v631
    %v2157 = vunpack.c.h.b16 %v631
    %v2158 = vunpack.c.l.b16 %v632
    %v2159 = vunpack.c.h.b16 %v632
    %v2160 = vunpack.c.l.b16 %v633
    %v2161 = vunpack.c.h.b16 %v633
    %v2162 = vunpack.c.l.b16 %v634
    %v2163 = vunpack.c.h.b16 %v634
    %v2164 = vunpack.c.l.b16 %v635
    %v2165 = vunpack.c.h.b16 %v635
    %v2166 = vunpack.c.l.b16 %v636
    %v2167 = vunpack.c.h.b16 %v636
    %v2168 = vunpack.c.l.b16 %v637
    %v2169 = vunpack.c.h.b16 %v637
    %v2170 = vunpack.c.l.b16 %v638
    %v2171 = vunpack.c.h.b16 %v638
    %v2172 = vunpack.c.l.b16 %v639
    %v2173 = vunpack.c.h.b16 %v639
    %v2174 = vunpack.c.l.b16 %v640
    %v2175 = vunpack.c.h.b16 %v640
    %v2176 = vunpack.c.l.b16 %v641
    %v2177 = vunpack.c.h.b16 %v641
    %v2178 = vunpack.c.l.b16 %v642
    %v2179 = vunpack.c.h.b16 %v642
    %v2180 = vunpack.c.l.b16 %v643
    %v2181 = vunpack.c.h.b16 %v643
    %v2182 = vunpack.c.l.b16 %v644
    %v2183 = vunpack.c.h.b16 %v644
    %v2184 = vunpack.c.l.b16 %v645
    %v2185 = vunpack.c.h.b16 %v645
    %v2186 = vunpack.c.l.b16 %v646
    %v2187 = vunpack.c.h.b16 %v646
    %v2188 = vunpack.c.l.b16 %v647
    %v2189 = vunpack.c.h.b16 %v647
    %v2190 = vunpack.c.l.b16 %v648
    %v2191 = vunpack.c.h.b16 %v648
    %v2192 = vunpack.c.l.b16 %v649
    %v2193 = vunpack.c.h.b16 %v649
    %v2194 = vunpack.c.l.b16 %v650
    %v2195 = vunpack.c.h.b16 %v650
    %v2196 = vunpack.c.l.b16 %v651
    %v2197 = vunpack.c.h.b16 %v651
    %v2198 = vunpack.c.l.b16 %v652
    %v2199 = vunpack.c.h.b16 %v652
    %v2200 = vunpack.c.l.b16 %v653
    %v2201 = vunpack.c.h.b16 %v653
    %v2202 = vunpack.c.l.b16 %v654
    %v2203 = vunpack.c.h.b16 %v654
    %v2204 = vunpack.c.l.b16 %v655
    %v2205 = vunpack.c.h.b16 %v655
    %v2206 = vunpack.c.l.b16 %v656
    %v2207 = vunpack.c.h.b16 %v656
    %v2208 = vunpack.c.l.b16 %v657
    %v2209 = vunpack.c.h.b16 %v657
    %v2210 = vunpack.c.l.b16 %v658
    %v2211 = vunpack.c.h.b16 %v658
    %v2212 = vunpack.c.l.b16 %v659
    %v2213 = vunpack.c.h.b16 %v659
    %v2214 = vunpack.c.l.b16 %v660
    %v2215 = vunpack.c.h.b16 %v660
    %v2216 = vunpack.c.l.b16 %v661
    %v2217 = vunpack.c.h.b16 %v661
    %v2218 = vunpack.c.l.b16 %v662
    %v2219 = vunpack.c.h.b16 %v662
    %v2220 = vunpack.c.l.b16 %v663
    %v2221 = vunpack.c.h.b16 %v663
    %v2222 = vunpack.c.l.b16 %v664
    %v2223 = vunpack.c.h.b16 %v664
    %v2224 = vunpack.c.l.b16 %v665
    %v2225 = vunpack.c.h.b16 %v665
    %v2226 = vunpack.c.l.b16 %v666
    %v2227 = vunpack.c.h.b16 %v666
    %v2228 = vunpack.c.l.b16 %v667
    %v2229 = vunpack.c.h.b16 %v667
    %v2230 = vunpack.c.l.b16 %v668
    %v2231 = vunpack.c.h.b16 %v668
    %v2232 = vunpack.c.l.b16 %v669
    %v2233 = vunpack.c.h.b16 %v669
    %v2234 = vunpack.c.l.b16 %v670
    %v2235 = vunpack.c.h.b16 %v670
    %v2236 = vunpack.c.l.b16 %v671
    %v2237 = vunpack.c.h.b16 %v671
    %v2238 = vunpack.c.l.b16 %v672
    %v2239 = vunpack.c.h.b16 %v672
    %v2240 = vunpack.c.l.b16 %v673
    %v2241 = vunpack.c.h.b16 %v673
    %v2242 = vunpack.c.l.b16 %v674
    %v2243 = vunpack.c.h.b16 %v674
    %v2244 = vunpack.c.l.b16 %v675
    %v2245 = vunpack.c.h.b16 %v675
    %v2246 = vunpack.c.l.b16 %v676
    %v2247 = vunpack.c.h.b16 %v676
    %v2248 = vunpack.c.l.b16 %v677
    %v2249 = vunpack.c.h.b16 %v677
    %v2250 = vunpack.c.l.b16 %v678
    %v2251 = vunpack.c.h.b16 %v678
    %v2252 = vunpack.c.l.b16 %v679
    %v2253 = vunpack.c.h.b16 %v679
    %v2254 = vunpack.c.l.b16 %v680
    %v2255 = vunpack.c.h.b16 %v680
    %v2256 = vunpack.c.l.b16 %v681
    %v2257 = vunpack.c.h.b16 %v681
    %v2258 = vunpack.c.l.b16 %v682
    %v2259 = vunpack.c.h.b16 %v682
    %v2260 = vunpack.c.l.b16 %v683
    %v2261 = vunpack.c.h.b16 %v683
    %v2262 = vunpack.c.l.b16 %v684
    %v2263 = vunpack.c.h.b16 %v684
    %v2264 = vunpack.c.l.b16 %v685
    %v2265 = vunpack.c.h.b16 %v685
    %v2266 = vunpack.c.l.b16 %v686
    %v2267 = vunpack.c.h.b16 %v686
    %v2268 = vunpack.c.l.b16 %v687
    %v2269 = vunpack.c.h.b16 %v687
    %v2270 = vunpack.c.l.b16 %v688
    %v2271 = vunpack.c.h.b16 %v688
    %v2272 = vunpack.c.l.b16 %v689
    %v2273 = vunpack.c.h.b16 %v689
    %v2274 = vunpack.c.l.b16 %v690
    %v2275 = vunpack.c.h.b16 %v690
    %v2276 = vunpack.c.l.b16 %v691
    %v2277 = vunpack.c.h.b16 %v691
    %v2278 = vunpack.c.l.b16 %v692
    %v2279 = vunpack.c.h.b16 %v692
    %v2280 = vunpack.c.l.b16 %v693
    %v2281 = vunpack.c.h.b16 %v693
    %v2282 = vunpack.c.l.b16 %v694
    %v2283 = vunpack.c.h.b16 %v694
    %v2284 = vunpack.c.l.b16 %v695
    %v2285 = vunpack.c.h.b16 %v695
    %v2286 = vpack.c.b16 %v1262, %v1254
    %v2287 = vpack.c.b16 %v1263, %v1255
    %v2288 = vpack.c.b16 %v1264, %v1256
    %v2289 = vpack.c.b16 %v1265, %v1257
    %v2290 = vpack.c.b16 %v1266, %v1258
    %v2291 = vpack.c.b16 %v1267, %v1259
    %v2292 = vpack.c.b16 %v1268, %v1260
    %v2293 = vpack.c.b16 %v1269, %v1261
    %v2294 = vpack.c.b16 %v1278, %v1270
    %v2295 = vpack.c.b16 %v1279, %v1271
    %v2296 = vpack.c.b16 %v1280, %v1272
    %v2297 = vpack.c.b16 %v1281, %v1273
    %v2298 = vpack.c.b16 %v1282, %v1274
    %v2299 = vpack.c.b16 %v1283, %v1275
    %v2300 = vpack.c.b16 %v1284, %v1276
    %v2301 = vpack.c.b16 %v1285, %v1277
    %v2302 = vpack.c.b16 %v1294, %v1286
    %v2303 = vpack.c.b16 %v1295, %v1287
    %v2304 = vpack.c.b16 %v1296, %v1288
    %v2305 = vpack.c.b16 %v1297, %v1289
    %v2306 = vpack.c.b16 %v1298, %v1290
    %v2307 = vpack.c.b16 %v1299, %v1291
    %v2308 = vpack.c.b16 %v1300, %v1292
    %v2309 = vpack.c.b16 %v1301, %v1293
    %v2310 = vpack.c.b16 %v1310, %v1302
    %v2311 = vpack.c.b16 %v1311, %v1303
    %v2312 = vpack.c.b16 %v1312, %v1304
    %v2313 = vpack.c.b16 %v1313, %v1305
    %v2314 = vpack.c.b16 %v1314, %v1306
    %v2315 = vpack.c.b16 %v1315, %v1307
    %v2316 = vpack.c.b16 %v1316, %v1308
    %v2317 = vpack.c.b16 %v1317, %v1309
    %v2318 = vpack.c.b16 %v1326, %v1318
    %v2319 = vpack.c.b16 %v1327, %v1319
    %v2320 = vpack.c.b16 %v1328, %v1320
    %v2321 = vpack.c.b16 %v1329, %v1321
    %v2322 = vpack.c.b16 %v1330, %v1322
    %v2323 = vpack.c.b16 %v1331, %v1323
    %v2324 = vpack.c.b16 %v1332, %v1324
    %v2325 = vpack.c.b16 %v1333, %v1325
    %v2326 = vpack.c.b16 %v1342, %v1334
    %v2327 = vpack.c.b16 %v1343, %v1335
    %v2328 = vpack.c.b16 %v1344, %v1336
    %v2329 = vpack.c.b16 %v1345, %v1337
    %v2330 = vpack.c.b16 %v1346, %v1338
    %v2331 = vpack.c.b16 %v1347, %v1339
    %v2332 = vpack.c.b16 %v1348, %v1340
    %v2333 = vpack.c.b16 %v1349, %v1341
    %v2334 = vpack.c.b16 %v1358, %v1350
    %v2335 = vpack.c.b16 %v1359, %v1351
    %v2336 = vpack.c.b16 %v1360, %v1352
    %v2337 = vpack.c.b16 %v1361, %v1353
    %v2338 = vpack.c.b16 %v1362, %v1354
    %v2339 = vpack.c.b16 %v1363, %v1355
    %v2340 = vpack.c.b16 %v1364, %v1356
    %v2341 = vpack.c.b16 %v1365, %v1357
    %v2342 = vpack.c.b16 %v1374, %v1366
    %v2343 = vpack.c.b16 %v1375, %v1367
    %v2344 = vpack.c.b16 %v1376, %v1368
    %v2345 = vpack.c.b16 %v1377, %v1369
    %v2346 = vpack.c.b16 %v1378, %v1370
    %v2347 = vpack.c.b16 %v1379, %v1371
    %v2348 = vpack.c.b16 %v1380, %v1372
    %v2349 = vpack.c.b16 %v1381, %v1373
    %v2350 = vpack.c.b16 %v1390, %v1382
    %v2351 = vpack.c.b16 %v1391, %v1383
    %v2352 = vpack.c.b16 %v1392, %v1384
    %v2353 = vpack.c.b16 %v1393, %v1385
    %v2354 = vpack.c.b16 %v1394, %v1386
    %v2355 = vpack.c.b16 %v1395, %v1387
    %v2356 = vpack.c.b16 %v1396, %v1388
    %v2357 = vpack.c.b16 %v1397, %v1389
    %v2358 = vpack.c.b16 %v1406, %v1398
    %v2359 = vpack.c.b16 %v1407, %v1399
    %v2360 = vpack.c.b16 %v1408, %v1400
    %v2361 = vpack.c.b16 %v1409, %v1401
    %v2362 = vpack.c.b16 %v1410, %v1402
    %v2363 = vpack.c.b16 %v1411, %v1403
    %v2364 = vpack.c.b16 %v1412, %v1404
    %v2365 = vpack.c.b16 %v1413, %v1405
    %v2366 = vpack.c.b16 %v1422, %v1414
    %v2367 = vpack.c.b16 %v1423, %v1415
    %v2368 = vpack.c.b16 %v1424, %v1416
    %v2369 = vpack.c.b16 %v1425, %v1417
    %v2370 = vpack.c.b16 %v1426, %v1418
    %v2371 = vpack.c.b16 %v1427, %v1419
    %v2372 = vpack.c.b16 %v1428, %v1420
    %v2373 = vpack.c.b16 %v1429, %v1421
    %v2374 = vpack.c.b16 %v1438, %v1430
    %v2375 = vpack.c.b16 %v1439, %v1431
    %v2376 = vpack.c.b16 %v1440, %v1432
    %v2377 = vpack.c.b16 %v1441, %v1433
    %v2378 = vpack.c.b16 %v1442, %v1434
    %v2379 = vpack.c.b16 %v1443, %v1435
    %v2380 = vpack.c.b16 %v1444, %v1436
    %v2381 = vpack.c.b16 %v1445, %v1437
    %v2382 = vpack.c.b16 %v1454, %v1446
    %v2383 = vpack.c.b16 %v1455, %v1447
    %v2384 = vpack.c.b16 %v1456, %v1448
    %v2385 = vpack.c.b16 %v1457, %v1449
    %v2386 = vpack.c.b16 %v1458, %v1450
    %v2387 = vpack.c.b16 %v1459, %v1451
    %v2388 = vpack.c.b16 %v1460, %v1452
    %v2389 = vpack.c.b16 %v1461, %v1453
    %v2390 = vpack.c.b16 %v1470, %v1462
    %v2391 = vpack.c.b16 %v1471, %v1463
    %v2392 = vpack.c.b16 %v1472, %v1464
    %v2393 = vpack.c.b16 %v1473, %v1465
    %v2394 = vpack.c.b16 %v1474, %v1466
    %v2395 = vpack.c.b16 %v1475, %v1467
    %v2396 = vpack.c.b16 %v1476, %v1468
    %v2397 = vpack.c.b16 %v1477, %v1469
    %v2398 = vpack.c.b16 %v1486, %v1478
    %v2399 = vpack.c.b16 %v1487, %v1479
    %v2400 = vpack.c.b16 %v1488, %v1480
    %v2401 = vpack.c.b16 %v1489, %v1481
    %v2402 = vpack.c.b16 %v1490, %v1482
    %v2403 = vpack.c.b16 %v1491, %v1483
    %v2404 = vpack.c.b16 %v1492, %v1484
    %v2405 = vpack.c.b16 %v1493, %v1485
    %v2406 = vpack.c.b16 %v1502, %v1494
    %v2407 = vpack.c.b16 %v1503, %v1495
    %v2408 = vpack.c.b16 %v1504, %v1496
    %v2409 = vpack.c.b16 %v1505, %v1497
    %v2410 = vpack.c.b16 %v1506, %v1498
    %v2411 = vpack.c.b16 %v1507, %v1499
    %v2412 = vpack.c.b16 %v1508, %v1500
    %v2413 = vpack.c.b16 %v1509, %v1501
    %v2414 = vpack.c.b16 %v1518, %v1510
    %v2415 = vpack.c.b16 %v1519, %v1511
    %v2416 = vpack.c.b16 %v1520, %v1512
    %v2417 = vpack.c.b16 %v1521, %v1513
    %v2418 = vpack.c.b16 %v1522, %v1514
    %v2419 = vpack.c.b16 %v1523, %v1515
    %v2420 = vpack.c.b16 %v1524, %v1516
    %v2421 = vpack.c.b16 %v1525, %v1517
    %v2422 = vpack.c.b16 %v1534, %v1526
    %v2423 = vpack.c.b16 %v1535, %v1527
    %v2424 = vpack.c.b16 %v1536, %v1528
    %v2425 = vpack.c.b16 %v1537, %v1529
    %v2426 = vpack.c.b16 %v1538, %v1530
    %v2427 = vpack.c.b16 %v1539, %v1531
    %v2428 = vpack.c.b16 %v1540, %v1532
    %v2429 = vpack.c.b16 %v1541, %v1533
    %v2430 = vpack.c.b16 %v1550, %v1542
    %v2431 = vpack.c.b16 %v1551, %v1543
    %v2432 = vpack.c.b16 %v1552, %v1544
    %v2433 = vpack.c.b16 %v1553, %v1545
    %v2434 = vpack.c.b16 %v1554, %v1546
    %v2435 = vpack.c.b16 %v1555, %v1547
    %v2436 = vpack.c.b16 %v1556, %v1548
    %v2437 = vpack.c.b16 %v1557, %v1549
    %v2438 = vpack.c.b16 %v1566, %v1558
    %v2439 = vpack.c.b16 %v1567, %v1559
    %v2440 = vpack.c.b16 %v1568, %v1560
    %v2441 = vpack.c.b16 %v1569, %v1561
    %v2442 = vpack.c.b16 %v1570, %v1562
    %v2443 = vpack.c.b16 %v1571, %v1563
    %v2444 = vpack.c.b16 %v1572, %v1564
    %v2445 = vpack.c.b16 %v1573, %v1565
    %v2446 = vpack.c.b16 %v1582, %v1574
    %v2447 = vpack.c.b16 %v1583, %v1575
    %v2448 = vpack.c.b16 %v1584, %v1576
    %v2449 = vpack.c.b16 %v1585, %v1577
    %v2450 = vpack.c.b16 %v1586, %v1578
    %v2451 = vpack.c.b16 %v1587, %v1579
    %v2452 = vpack.c.b16 %v1588, %v1580
    %v2453 = vpack.c.b16 %v1589, %v1581
    %v2454 = vpack.c.b16 %v1598, %v1590
    %v2455 = vpack.c.b16 %v1599, %v1591
    %v2456 = vpack.c.b16 %v1600, %v1592
    %v2457 = vpack.c.b16 %v1601, %v1593
    %v2458 = vpack.c.b16 %v1602, %v1594
    %v2459 = vpack.c.b16 %v1603, %v1595
    %v2460 = vpack.c.b16 %v1604, %v1596
    %v2461 = vpack.c.b16 %v1605, %v1597
    %v2462 = vpack.c.b16 %v1614, %v1606
    %v2463 = vpack.c.b16 %v1615, %v1607
    %v2464 = vpack.c.b16 %v1616, %v1608
    %v2465 = vpack.c.b16 %v1617, %v1609
    %v2466 = vpack.c.b16 %v1618, %v1610
    %v2467 = vpack.c.b16 %v1619, %v1611
    %v2468 = vpack.c.b16 %v1620, %v1612
    %v2469 = vpack.c.b16 %v1621, %v1613
    %v2470 = vpack.c.b16 %v1630, %v1622
    %v2471 = vpack.c.b16 %v1631, %v1623
    %v2472 = vpack.c.b16 %v1632, %v1624
    %v2473 = vpack.c.b16 %v1633, %v1625
    %v2474 = vpack.c.b16 %v1634, %v1626
    %v2475 = vpack.c.b16 %v1635, %v1627
    %v2476 = vpack.c.b16 %v1636, %v1628
    %v2477 = vpack.c.b16 %v1637, %v1629
    %v2478 = vpack.c.b16 %v1646, %v1638
    %v2479 = vpack.c.b16 %v1647, %v1639
    %v2480 = vpack.c.b16 %v1648, %v1640
    %v2481 = vpack.c.b16 %v1649, %v1641
    %v2482 = vpack.c.b16 %v1650, %v1642
    %v2483 = vpack.c.b16 %v1651, %v1643
    %v2484 = vpack.c.b16 %v1652, %v1644
    %v2485 = vpack.c.b16 %v1653, %v1645
    %v2486 = vpack.c.b16 %v1662, %v1654
    %v2487 = vpack.c.b16 %v1663, %v1655
    %v2488 = vpack.c.b16 %v1664, %v1656
    %v2489 = vpack.c.b16 %v1665, %v1657
    %v2490 = vpack.c.b16 %v1666, %v1658
    %v2491 = vpack.c.b16 %v1667, %v1659
    %v2492 = vpack.c.b16 %v1668, %v1660
    %v2493 = vpack.c.b16 %v1669, %v1661
    %v2494 = vpack.c.b16 %v1678, %v1670
    %v2495 = vpack.c.b16 %v1679, %v1671
    %v2496 = vpack.c.b16 %v1680, %v1672
    %v2497 = vpack.c.b16 %v1681, %v1673
    %v2498 = vpack.c.b16 %v1682, %v1674
    %v2499 = vpack.c.b16 %v1683, %v1675
    %v2500 = vpack.c.b16 %v1684, %v1676
    %v2501 = vpack.c.b16 %v1685, %v1677
    %v2502 = vpack.c.b16 %v1694, %v1686
    %v2503 = vpack.c.b16 %v1695, %v1687
    %v2504 = vpack.c.b16 %v1696, %v1688
    %v2505 = vpack.c.b16 %v1697, %v1689
    %v2506 = vpack.c.b16 %v1698, %v1690
    %v2507 = vpack.c.b16 %v1699, %v1691
    %v2508 = vpack.c.b16 %v1700, %v1692
    %v2509 = vpack.c.b16 %v1701, %v1693
    %v2510 = vpack.c.b16 %v1710, %v1702
    %v2511 = vpack.c.b16 %v1711, %v1703
    %v2512 = vpack.c.b16 %v1712, %v1704
    %v2513 = vpack.c.b16 %v1713, %v1705
    %v2514 = vpack.c.b16 %v1714, %v1706
    %v2515 = vpack.c.b16 %v1715, %v1707
    %v2516 = vpack.c.b16 %v1716, %v1708
    %v2517 = vpack.c.b16 %v1717, %v1709
    %v2518 = vpack.c.b16 %v1726, %v1718
    %v2519 = vpack.c.b16 %v1727, %v1719
    %v2520 = vpack.c.b16 %v1728, %v1720
    %v2521 = vpack.c.b16 %v1729, %v1721
    %v2522 = vpack.c.b16 %v1730, %v1722
    %v2523 = vpack.c.b16 %v1731, %v1723
    %v2524 = vpack.c.b16 %v1732, %v1724
    %v2525 = vpack.c.b16 %v1733, %v1725
    %v2526 = vpack.c.b16 %v1742, %v1734
    %v2527 = vpack.c.b16 %v1743, %v1735
    %v2528 = vpack.c.b16 %v1744, %v1736
    %v2529 = vpack.c.b16 %v1745, %v1737
    %v2530 = vpack.c.b16 %v1746, %v1738
    %v2531 = vpack.c.b16 %v1747, %v1739
    %v2532 = vpack.c.b16 %v1748, %v1740
    %v2533 = vpack.c.b16 %v1749, %v1741
    %v2534 = vpack.c.b16 %v1758, %v1750
    %v2535 = vpack.c.b16 %v1759, %v1751
    %v2536 = vpack.c.b16 %v1760, %v1752
    %v2537 = vpack.c.b16 %v1761, %v1753
    %v2538 = vpack.c.b16 %v1762, %v1754
    %v2539 = vpack.c.b16 %v1763, %v1755
    %v2540 = vpack.c.b16 %v1764, %v1756
    %v2541 = vpack.c.b16 %v1765, %v1757
    %v2542 = vpack.c.b16 %v1774, %v1766
    %v2543 = vpack.c.b16 %v1775, %v1767
    %v2544 = vpack.c.b16 %v1776, %v1768
    %v2545 = vpack.c.b16 %v1777, %v1769
    %v2546 = vpack.c.b16 %v1778, %v1770
    %v2547 = vpack.c.b16 %v1779, %v1771
    %v2548 = vpack.c.b16 %v1780, %v1772
    %v2549 = vpack.c.b16 %v1781, %v1773
    %v2550 = vpack.c.b16 %v1790, %v1782
    %v2551 = vpack.c.b16 %v1791, %v1783
    %v2552 = vpack.c.b16 %v1792, %v1784
    %v2553 = vpack.c.b16 %v1793, %v1785
    %v2554 = vpack.c.b16 %v1794, %v1786
    %v2555 = vpack.c.b16 %v1795, %v1787
    %v2556 = vpack.c.b16 %v1796, %v1788
    %v2557 = vpack.c.b16 %v1797, %v1789
    %v2558 = vpack.c.b16 %v1806, %v1798
    %v2559 = vpack.c.b16 %v1807, %v1799
    %v2560 = vpack.c.b16 %v1808, %v1800
    %v2561 = vpack.c.b16 %v1809, %v1801
    %v2562 = vpack.c.b16 %v1810, %v1802
    %v2563 = vpack.c.b16 %v1811, %v1803
    %v2564 = vpack.c.b16 %v1812, %v1804
    %v2565 = vpack.c.b16 %v1813, %v1805
    %v2566 = vpack.c.b16 %v1822, %v1814
    %v2567 = vpack.c.b16 %v1823, %v1815
    %v2568 = vpack.c.b16 %v1824, %v1816
    %v2569 = vpack.c.b16 %v1825, %v1817
    %v2570 = vpack.c.b16 %v1826, %v1818
    %v2571 = vpack.c.b16 %v1827, %v1819
    %v2572 = vpack.c.b16 %v1828, %v1820
    %v2573 = vpack.c.b16 %v1829, %v1821
    %v2574 = vpack.c.b16 %v1838, %v1830
    %v2575 = vpack.c.b16 %v1839, %v1831
    %v2576 = vpack.c.b16 %v1840, %v1832
    %v2577 = vpack.c.b16 %v1841, %v1833
    %v2578 = vpack.c.b16 %v1842, %v1834
    %v2579 = vpack.c.b16 %v1843, %v1835
    %v2580 = vpack.c.b16 %v1844, %v1836
    %v2581 = vpack.c.b16 %v1845, %v1837
    %v2582 = vpack.c.b16 %v1854, %v1846
    %v2583 = vpack.c.b16 %v1855, %v1847
    %v2584 = vpack.c.b16 %v1856, %v1848
    %v2585 = vpack.c.b16 %v1857, %v1849
    %v2586 = vpack.c.b16 %v1858, %v1850
    %v2587 = vpack.c.b16 %v1859, %v1851
    %v2588 = vpack.c.b16 %v1860, %v1852
    %v2589 = vpack.c.b16 %v1861, %v1853
    %v2590 = vpack.c.b16 %v1870, %v1862
    %v2591 = vpack.c.b16 %v1871, %v1863
    %v2592 = vpack.c.b16 %v1872, %v1864
    %v2593 = vpack.c.b16 %v1873, %v1865
    %v2594 = vpack.c.b16 %v1874, %v1866
    %v2595 = vpack.c.b16 %v1875, %v1867
    %v2596 = vpack.c.b16 %v1876, %v1868
    %v2597 = vpack.c.b16 %v1877, %v1869
    %v2598 = vpack.c.b16 %v1886, %v1878
    %v2599 = vpack.c.b16 %v1887, %v1879
    %v2600 = vpack.c.b16 %v1888, %v1880
    %v2601 = vpack.c.b16 %v1889, %v1881
    %v2602 = vpack.c.b16 %v1890, %v1882
    %v2603 = vpack.c.b16 %v1891, %v1883
    %v2604 = vpack.c.b16 %v1892, %v1884
    %v2605 = vpack.c.b16 %v1893, %v1885
    %v2606 = vpack.c.b16 %v1902, %v1894
    %v2607 = vpack.c.b16 %v1903, %v1895
    %v2608 = vpack.c.b16 %v1904, %v1896
    %v2609 = vpack.c.b16 %v1905, %v1897
    %v2610 = vpack.c.b16 %v1906, %v1898
    %v2611 = vpack.c.b16 %v1907, %v1899
    %v2612 = vpack.c.b16 %v1908, %v1900
    %v2613 = vpack.c.b16 %v1909, %v1901
    %v2614 = vpack.c.b16 %v1918, %v1910
    %v2615 = vpack.c.b16 %v1919, %v1911
    %v2616 = vpack.c.b16 %v1920, %v1912
    %v2617 = vpack.c.b16 %v1921, %v1913
    %v2618 = vpack.c.b16 %v1922, %v1914
    %v2619 = vpack.c.b16 %v1923, %v1915
    %v2620 = vpack.c.b16 %v1924, %v1916
    %v2621 = vpack.c.b16 %v1925, %v1917
    %v2622 = vpack.c.b16 %v1934, %v1926
    %v2623 = vpack.c.b16 %v1935, %v1927
    %v2624 = vpack.c.b16 %v1936, %v1928
    %v2625 = vpack.c.b16 %v1937, %v1929
    %v2626 = vpack.c.b16 %v1938, %v1930
    %v2627 = vpack.c.b16 %v1939, %v1931
    %v2628 = vpack.c.b16 %v1940, %v1932
    %v2629 = vpack.c.b16 %v1941, %v1933
    %v2630 = vpack.c.b16 %v1950, %v1942
    %v2631 = vpack.c.b16 %v1951, %v1943
    %v2632 = vpack.c.b16 %v1952, %v1944
    %v2633 = vpack.c.b16 %v1953, %v1945
    %v2634 = vpack.c.b16 %v1954, %v1946
    %v2635 = vpack.c.b16 %v1955, %v1947
    %v2636 = vpack.c.b16 %v1956, %v1948
    %v2637 = vpack.c.b16 %v1957, %v1949
    %v2638 = vpack.c.b16 %v1966, %v1958
    %v2639 = vpack.c.b16 %v1967, %v1959
    %v2640 = vpack.c.b16 %v1968, %v1960
    %v2641 = vpack.c.b16 %v1969, %v1961
    %v2642 = vpack.c.b16 %v1970, %v1962
    %v2643 = vpack.c.b16 %v1971, %v1963
    %v2644 = vpack.c.b16 %v1972, %v1964
    %v2645 = vpack.c.b16 %v1973, %v1965
    %v2646 = vpack.c.b16 %v1982, %v1974
    %v2647 = vpack.c.b16 %v1983, %v1975
    %v2648 = vpack.c.b16 %v1984, %v1976
    %v2649 = vpack.c.b16 %v1985, %v1977
    %v2650 = vpack.c.b16 %v1986, %v1978
    %v2651 = vpack.c.b16 %v1987, %v1979
    %v2652 = vpack.c.b16 %v1988, %v1980
    %v2653 = vpack.c.b16 %v1989, %v1981
    %v2654 = vpack.c.b16 %v1998, %v1990
    %v2655 = vpack.c.b16 %v1999, %v1991
    %v2656 = vpack.c.b16 %v2000, %v1992
    %v2657 = vpack.c.b16 %v2001, %v1993
    %v2658 = vpack.c.b16 %v2002, %v1994
    %v2659 = vpack.c.b16 %v2003, %v1995
    %v2660 = vpack.c.b16 %v2004, %v1996
    %v2661 = vpack.c.b16 %v2005, %v1997
    %v2662 = vpack.c.b16 %v2014, %v2006
    %v2663 = vpack.c.b16 %v2015, %v2007
    %v2664 = vpack.c.b16 %v2016, %v2008
    %v2665 = vpack.c.b16 %v2017, %v2009
    %v2666 = vpack.c.b16 %v2018, %v2010
    %v2667 = vpack.c.b16 %v2019, %v2011
    %v2668 = vpack.c.b16 %v2020, %v2012
    %v2669 = vpack.c.b16 %v2021, %v2013
    %v2670 = vpack.c.b16 %v2030, %v2022
    %v2671 = vpack.c.b16 %v2031, %v2023
    %v2672 = vpack.c.b16 %v2032, %v2024
    %v2673 = vpack.c.b16 %v2033, %v2025
    %v2674 = vpack.c.b16 %v2034, %v2026
    %v2675 = vpack.c.b16 %v2035, %v2027
    %v2676 = vpack.c.b16 %v2036, %v2028
    %v2677 = vpack.c.b16 %v2037, %v2029
    %v2678 = vpack.c.b16 %v2046, %v2038
    %v2679 = vpack.c.b16 %v2047, %v2039
    %v2680 = vpack.c.b16 %v2048, %v2040
    %v2681 = vpack.c.b16 %v2049, %v2041
    %v2682 = vpack.c.b16 %v2050, %v2042
    %v2683 = vpack.c.b16 %v2051, %v2043
    %v2684 = vpack.c.b16 %v2052, %v2044
    %v2685 = vpack.c.b16 %v2053, %v2045
    %v2686 = vpack.c.b16 %v2062, %v2054
    %v2687 = vpack.c.b16 %v2063, %v2055
    %v2688 = vpack.c.b16 %v2064, %v2056
    %v2689 = vpack.c.b16 %v2065, %v2057
    %v2690 = vpack.c.b16 %v2066, %v2058
    %v2691 = vpack.c.b16 %v2067, %v2059
    %v2692 = vpack.c.b16 %v2068, %v2060
    %v2693 = vpack.c.b16 %v2069, %v2061
    %v2694 = vpack.c.b16 %v2078, %v2070
    %v2695 = vpack.c.b16 %v2079, %v2071
    %v2696 = vpack.c.b16 %v2080, %v2072
    %v2697 = vpack.c.b16 %v2081, %v2073
    %v2698 = vpack.c.b16 %v2082, %v2074
    %v2699 = vpack.c.b16 %v2083, %v2075
    %v2700 = vpack.c.b16 %v2084, %v2076
    %v2701 = vpack.c.b16 %v2085, %v2077
    %v2702 = vpack.c.b16 %v2094, %v2086
    %v2703 = vpack.c.b16 %v2095, %v2087
    %v2704 = vpack.c.b16 %v2096, %v2088
    %v2705 = vpack.c.b16 %v2097, %v2089
    %v2706 = vpack.c.b16 %v2098, %v2090
    %v2707 = vpack.c.b16 %v2099, %v2091
    %v2708 = vpack.c.b16 %v2100, %v2092
    %v2709 = vpack.c.b16 %v2101, %v2093
    %v2710 = vpack.c.b16 %v2110, %v2102
    %v2711 = vpack.c.b16 %v2111, %v2103
    %v2712 = vpack.c.b16 %v2112, %v2104
    %v2713 = vpack.c.b16 %v2113, %v2105
    %v2714 = vpack.c.b16 %v2114, %v2106
    %v2715 = vpack.c.b16 %v2115, %v2107
    %v2716 = vpack.c.b16 %v2116, %v2108
    %v2717 = vpack.c.b16 %v2117, %v2109
    %v2718 = vpack.c.b16 %v2126, %v2118
    %v2719 = vpack.c.b16 %v2127, %v2119
    %v2720 = vpack.c.b16 %v2128, %v2120
    %v2721 = vpack.c.b16 %v2129, %v2121
    %v2722 = vpack.c.b16 %v2130, %v2122
    %v2723 = vpack.c.b16 %v2131, %v2123
    %v2724 = vpack.c.b16 %v2132, %v2124
    %v2725 = vpack.c.b16 %v2133, %v2125
    %v2726 = vpack.c.b16 %v2142, %v2134
    %v2727 = vpack.c.b16 %v2143, %v2135
    %v2728 = vpack.c.b16 %v2144, %v2136
    %v2729 = vpack.c.b16 %v2145, %v2137
    %v2730 = vpack.c.b16 %v2146, %v2138
    %v2731 = vpack.c.b16 %v2147, %v2139
    %v2732 = vpack.c.b16 %v2148, %v2140
    %v2733 = vpack.c.b16 %v2149, %v2141
    %v2734 = vpack.c.b16 %v2158, %v2150
    %v2735 = vpack.c.b16 %v2159, %v2151
    %v2736 = vpack.c.b16 %v2160, %v2152
    %v2737 = vpack.c.b16 %v2161, %v2153
    %v2738 = vpack.c.b16 %v2162, %v2154
    %v2739 = vpack.c.b16 %v2163, %v2155
    %v2740 = vpack.c.b16 %v2164, %v2156
    %v2741 = vpack.c.b16 %v2165, %v2157
    %v2742 = vpack.c.b16 %v2174, %v2166
    %v2743 = vpack.c.b16 %v2175, %v2167
    %v2744 = vpack.c.b16 %v2176, %v2168
    %v2745 = vpack.c.b16 %v2177, %v2169
    %v2746 = vpack.c.b16 %v2178, %v2170
    %v2747 = vpack.c.b16 %v2179, %v2171
    %v2748 = vpack.c.b16 %v2180, %v2172
    %v2749 = vpack.c.b16 %v2181, %v2173
    %v2750 = vpack.c.b16 %v2190, %v2182
    %v2751 = vpack.c.b16 %v2191, %v2183
    %v2752 = vpack.c.b16 %v2192, %v2184
    %v2753 = vpack.c.b16 %v2193, %v2185
    %v2754 = vpack.c.b16 %v2194, %v2186
    %v2755 = vpack.c.b16 %v2195, %v2187
    %v2756 = vpack.c.b16 %v2196, %v2188
    %v2757 = vpack.c.b16 %v2197, %v2189
    %v2758 = vpack.c.b16 %v2206, %v2198
    %v2759 = vpack.c.b16 %v2207, %v2199
    %v2760 = vpack.c.b16 %v2208, %v2200
    %v2761 = vpack.c.b16 %v2209, %v2201
    %v2762 = vpack.c.b16 %v2210, %v2202
    %v2763 = vpack.c.b16 %v2211, %v2203
    %v2764 = vpack.c.b16 %v2212, %v2204
    %v2765 = vpack.c.b16 %v2213, %v2205
    %v2766 = vpack.c.b16 %v2222, %v2214
    %v2767 = vpack.c.b16 %v2223, %v2215
    %v2768 = vpack.c.b16 %v2224, %v2216
    %v2769 = vpack.c.b16 %v2225, %v2217
    %v2770 = vpack.c.b16 %v2226, %v2218
    %v2771 = vpack.c.b16 %v2227, %v2219
    %v2772 = vpack.c.b16 %v2228, %v2220
    %v2773 = vpack.c.b16 %v2229, %v2221
    %v2774 = vpack.c.b16 %v2238, %v2230
    %v2775 = vpack.c.b16 %v2239, %v2231
    %v2776 = vpack.c.b16 %v2240, %v2232
    %v2777 = vpack.c.b16 %v2241, %v2233
    %v2778 = vpack.c.b16 %v2242, %v2234
    %v2779 = vpack.c.b16 %v2243, %v2235
    %v2780 = vpack.c.b16 %v2244, %v2236
    %v2781 = vpack.c.b16 %v2245, %v2237
    %v2782 = vpack.c.b16 %v2254, %v2246
    %v2783 = vpack.c.b16 %v2255, %v2247
    %v2784 = vpack.c.b16 %v2256, %v2248
    %v2785 = vpack.c.b16 %v2257, %v2249
    %v2786 = vpack.c.b16 %v2258, %v2250
    %v2787 = vpack.c.b16 %v2259, %v2251
    %v2788 = vpack.c.b16 %v2260, %v2252
    %v2789 = vpack.c.b16 %v2261, %v2253
    %v2790 = vpack.c.b16 %v2270, %v2262
    %v2791 = vpack.c.b16 %v2271, %v2263
    %v2792 = vpack.c.b16 %v2272, %v2264
    %v2793 = vpack.c.b16 %v2273, %v2265
    %v2794 = vpack.c.b16 %v2274, %v2266
    %v2795 = vpack.c.b16 %v2275, %v2267
    %v2796 = vpack.c.b16 %v2276, %v2268
    %v2797 = vpack.c.b16 %v2277, %v2269
    %v2798 = vpack.c.b16 %v2278, %v2278
    %v2799 = vpack.c.b16 %v2279, %v2279
    %v2800 = vpack.c.b16 %v2280, %v2280
    %v2801 = vpack.c.b16 %v2281, %v2281
    %v2802 = vpack.c.b16 %v2282, %v2282
    %v2803 = vpack.c.b16 %v2283, %v2283
    %v2804 = vpack.c.b16 %v2284, %v2284
    %v2805 = vpack.c.b16 %v2285, %v2285
    %vm3318 = vcmask 31744
    %v3320 = vsel %vm3318, %v179, 0
    %vm3322 = vcmask 1041408
    %v3324 = vsel %vm3322, %v2798, 0
    %v3327 = vsel %vm3322, %v2799, 0
    %v3330 = vsel %vm3322, %v2800, 0
    %v3333 = vsel %vm3322, %v2801, 0
    %v3336 = vsel %vm3322, %v2802, 0
    %v3339 = vsel %vm3322, %v2803, 0
    %v3342 = vsel %vm3322, %v2804, 0
    %v3345 = vsel %vm3322, %v2805, 0
    %3347 = vmatprep.subr.bf16.mxu0 %v2287
    %3348 = vmatpush1.bf16.msra.mxu0 %v2286
    %3349 = vmatprep.subr.bf16.mxu0 %v2295
    %3350 = vmatpush1.bf16.msra.mxu0 %v2294
    %3351 = vmatprep.subr.bf16.mxu0 %v2303
    %3352 = vmatpush1.bf16.msra.mxu0 %v2302
    %3353 = vmatprep.subr.bf16.mxu0 %v2311
    %3354 = vmatpush1.bf16.msra.mxu0 %v2310
    %3355 = vmatprep.subr.bf16.mxu0 %v2319
    %3356 = vmatpush1.bf16.msra.mxu0 %v2318
    %3357 = vmatprep.subr.bf16.mxu0 %v2327
    %3358 = vmatpush1.bf16.msra.mxu0 %v2326
    %3359 = vmatprep.subr.bf16.mxu0 %v2335
    %3360 = vmatpush1.bf16.msra.mxu0 %v2334
    %3361 = vmatprep.subr.bf16.mxu0 %v2343
    %3362 = vmatpush1.bf16.msra.mxu0 %v2342
    %3363 = vmatprep.subr.bf16.mxu0 %v2351
    %3364 = vmatpush1.bf16.msra.mxu0 %v2350
    %3365 = vmatprep.subr.bf16.mxu0 %v2359
    %3366 = vmatpush1.bf16.msra.mxu0 %v2358
    %3367 = vmatprep.subr.bf16.mxu0 %v2367
    %3368 = vmatpush1.bf16.msra.mxu0 %v2366
    %3369 = vmatprep.subr.bf16.mxu0 %v2375
    %3370 = vmatpush1.bf16.msra.mxu0 %v2374
    %3371 = vmatprep.subr.bf16.mxu0 %v2383
    %3372 = vmatpush1.bf16.msra.mxu0 %v2382
    %3373 = vmatprep.subr.bf16.mxu0 %v2391
    %3374 = vmatpush1.bf16.msra.mxu0 %v2390
    %3375 = vmatprep.subr.bf16.mxu0 %v2399
    %3376 = vmatpush1.bf16.msra.mxu0 %v2398
    %3377 = vmatprep.subr.bf16.mxu0 %v2407
    %3378 = vmatpush1.bf16.msra.mxu0 %v2406
    %3379 = vmatprep.mubr.bf16.mxu0 %v172
    %3380 = vmatmul.mubr.bf16.gmra.mrb[0].mxu0 %v171
    %v3381 = vpop.f32.mrb[0].mxu0
    %v3382 = vadd.f32 %v701, %v3381
    %v3383 = vpop.f32.mrb[0].mxu0
    %v3384 = vadd.f32 %v705, %v3383
    %v3385 = vpop.f32.mrb[0].mxu0
    %v3386 = vpop.f32.mrb[0].mxu0
    %3387 = vdwg.mxu0
    %3388 = vmatprep.subr.bf16.mxu0 %v2415
    %3389 = vmatpush1.bf16.msra.mxu0 %v2414
    %3390 = vmatprep.subr.bf16.mxu0 %v2423
    %3391 = vmatpush1.bf16.msra.mxu0 %v2422
    %3392 = vmatprep.subr.bf16.mxu0 %v2431
    %3393 = vmatpush1.bf16.msra.mxu0 %v2430
    %3394 = vmatprep.subr.bf16.mxu0 %v2439
    %3395 = vmatpush1.bf16.msra.mxu0 %v2438
    %3396 = vmatprep.subr.bf16.mxu0 %v2447
    %3397 = vmatpush1.bf16.msra.mxu0 %v2446
    %3398 = vmatprep.subr.bf16.mxu0 %v2455
    %3399 = vmatpush1.bf16.msra.mxu0 %v2454
    %3400 = vmatprep.subr.bf16.mxu0 %v2463
    %3401 = vmatpush1.bf16.msra.mxu0 %v2462
    %3402 = vmatprep.subr.bf16.mxu0 %v2471
    %3403 = vmatpush1.bf16.msra.mxu0 %v2470
    %3404 = vmatprep.subr.bf16.mxu0 %v2479
    %3405 = vmatpush1.bf16.msra.mxu0 %v2478
    %3406 = vmatprep.subr.bf16.mxu0 %v2487
    %3407 = vmatpush1.bf16.msra.mxu0 %v2486
    %3408 = vmatprep.subr.bf16.mxu0 %v2495
    %3409 = vmatpush1.bf16.msra.mxu0 %v2494
    %3410 = vmatprep.subr.bf16.mxu0 %v2503
    %3411 = vmatpush1.bf16.msra.mxu0 %v2502
    %3412 = vmatprep.subr.bf16.mxu0 %v2511
    %3413 = vmatpush1.bf16.msra.mxu0 %v2510
    %3414 = vmatprep.subr.bf16.mxu0 %v2519
    %3415 = vmatpush1.bf16.msra.mxu0 %v2518
    %3416 = vmatprep.subr.bf16.mxu0 %v2527
    %3417 = vmatpush1.bf16.msra.mxu0 %v2526
    %3418 = vmatprep.subr.bf16.mxu0 %v2535
    %3419 = vmatpush1.bf16.msra.mxu0 %v2534
    %3420 = vmatprep.mubr.bf16.mxu0 %v174
    %3421 = vmatmul.mubr.bf16.gmra.mrb[0].mxu0 %v173
    %v3422 = vpop.f32.mrb[0].mxu0
    %v3423 = vadd.f32 %v3382, %v3422
    %v3424 = vpop.f32.mrb[0].mxu0
    %v3425 = vadd.f32 %v3384, %v3424
    %v3426 = vpop.f32.mrb[0].mxu0
    %v3427 = vpop.f32.mrb[0].mxu0
    %3428 = vdwg.mxu0
    %3429 = vmatprep.subr.bf16.mxu0 %v2543
    %3430 = vmatpush1.bf16.msra.mxu0 %v2542
    %3431 = vmatprep.subr.bf16.mxu0 %v2551
    %3432 = vmatpush1.bf16.msra.mxu0 %v2550
    %3433 = vmatprep.subr.bf16.mxu0 %v2559
    %3434 = vmatpush1.bf16.msra.mxu0 %v2558
    %3435 = vmatprep.subr.bf16.mxu0 %v2567
    %3436 = vmatpush1.bf16.msra.mxu0 %v2566
    %3437 = vmatprep.subr.bf16.mxu0 %v2575
    %3438 = vmatpush1.bf16.msra.mxu0 %v2574
    %3439 = vmatprep.subr.bf16.mxu0 %v2583
    %3440 = vmatpush1.bf16.msra.mxu0 %v2582
    %3441 = vmatprep.subr.bf16.mxu0 %v2591
    %3442 = vmatpush1.bf16.msra.mxu0 %v2590
    %3443 = vmatprep.subr.bf16.mxu0 %v2599
    %3444 = vmatpush1.bf16.msra.mxu0 %v2598
    %3445 = vmatprep.subr.bf16.mxu0 %v2607
    %3446 = vmatpush1.bf16.msra.mxu0 %v2606
    %3447 = vmatprep.subr.bf16.mxu0 %v2615
    %3448 = vmatpush1.bf16.msra.mxu0 %v2614
    %3449 = vmatprep.subr.bf16.mxu0 %v2623
    %3450 = vmatpush1.bf16.msra.mxu0 %v2622
    %3451 = vmatprep.subr.bf16.mxu0 %v2631
    %3452 = vmatpush1.bf16.msra.mxu0 %v2630
    %3453 = vmatprep.subr.bf16.mxu0 %v2639
    %3454 = vmatpush1.bf16.msra.mxu0 %v2638
    %3455 = vmatprep.subr.bf16.mxu0 %v2647
    %3456 = vmatpush1.bf16.msra.mxu0 %v2646
    %3457 = vmatprep.subr.bf16.mxu0 %v2655
    %3458 = vmatpush1.bf16.msra.mxu0 %v2654
    %3459 = vmatprep.subr.bf16.mxu0 %v2663
    %3460 = vmatpush1.bf16.msra.mxu0 %v2662
    %3461 = vmatprep.mubr.bf16.mxu0 %v176
    %3462 = vmatmul.mubr.bf16.gmra.mrb[0].mxu0 %v175
    %v3463 = vpop.f32.mrb[0].mxu0
    %v3464 = vadd.f32 %v3423, %v3463
    %v3465 = vpop.f32.mrb[0].mxu0
    %v3466 = vadd.f32 %v3425, %v3465
    %v3467 = vpop.f32.mrb[0].mxu0
    %v3468 = vpop.f32.mrb[0].mxu0
    %3469 = vdwg.mxu0
    %3470 = vmatprep.subr.bf16.mxu0 %v2671
    %3471 = vmatpush1.bf16.msra.mxu0 %v2670
    %3472 = vmatprep.subr.bf16.mxu0 %v2679
    %3473 = vmatpush1.bf16.msra.mxu0 %v2678
    %3474 = vmatprep.subr.bf16.mxu0 %v2687
    %3475 = vmatpush1.bf16.msra.mxu0 %v2686
    %3476 = vmatprep.subr.bf16.mxu0 %v2695
    %3477 = vmatpush1.bf16.msra.mxu0 %v2694
    %3478 = vmatprep.subr.bf16.mxu0 %v2703
    %3479 = vmatpush1.bf16.msra.mxu0 %v2702
    %3480 = vmatprep.subr.bf16.mxu0 %v2711
    %3481 = vmatpush1.bf16.msra.mxu0 %v2710
    %3482 = vmatprep.subr.bf16.mxu0 %v2719
    %3483 = vmatpush1.bf16.msra.mxu0 %v2718
    %3484 = vmatprep.subr.bf16.mxu0 %v2727
    %3485 = vmatpush1.bf16.msra.mxu0 %v2726
    %3486 = vmatprep.subr.bf16.mxu0 %v2735
    %3487 = vmatpush1.bf16.msra.mxu0 %v2734
    %3488 = vmatprep.subr.bf16.mxu0 %v2743
    %3489 = vmatpush1.bf16.msra.mxu0 %v2742
    %3490 = vmatprep.subr.bf16.mxu0 %v2751
    %3491 = vmatpush1.bf16.msra.mxu0 %v2750
    %3492 = vmatprep.subr.bf16.mxu0 %v2759
    %3493 = vmatpush1.bf16.msra.mxu0 %v2758
    %3494 = vmatprep.subr.bf16.mxu0 %v2767
    %3495 = vmatpush1.bf16.msra.mxu0 %v2766
    %3496 = vmatprep.subr.bf16.mxu0 %v2775
    %3497 = vmatpush1.bf16.msra.mxu0 %v2774
    %3498 = vmatprep.subr.bf16.mxu0 %v2783
    %3499 = vmatpush1.bf16.msra.mxu0 %v2782
    %3500 = vmatprep.subr.bf16.mxu0 %v2791
    %3501 = vmatpush1.bf16.msra.mxu0 %v2790
    %3502 = vmatprep.mubr.bf16.mxu0 %v178
    %3503 = vmatmul.mubr.bf16.gmra.mrb[0].mxu0 %v177
    %v3504 = vpop.f32.mrb[0].mxu0
    %v3505 = vadd.f32 %v3464, %v3504
    %v3506 = vpop.f32.mrb[0].mxu0
    %v3507 = vadd.f32 %v3466, %v3506
    %v3508 = vpop.f32.mrb[0].mxu0
    %v3509 = vpop.f32.mrb[0].mxu0
    %3510 = vdwg.mxu0
    %3511 = vmatprep.subr.bf16.mxu0 %v3327
    %3512 = vmatpush1.bf16.msra.mxu0 %v3324
    %3513 = vmatprep.subr.bf16.mxu0 0
    %3514 = vmatpush1.bf16.msra.mxu0 0
    %3515 = vmatprep.subr.bf16.mxu0 0
    %3516 = vmatpush1.bf16.msra.mxu0 0
    %3517 = vmatprep.subr.bf16.mxu0 0
    %3518 = vmatpush1.bf16.msra.mxu0 0
    %3519 = vmatprep.subr.bf16.mxu0 0
    %3520 = vmatpush1.bf16.msra.mxu0 0
    %3521 = vmatprep.subr.bf16.mxu0 0
    %3522 = vmatpush1.bf16.msra.mxu0 0
    %3523 = vmatprep.subr.bf16.mxu0 0
    %3524 = vmatpush1.bf16.msra.mxu0 0
    %3525 = vmatprep.subr.bf16.mxu0 0
    %3526 = vmatpush1.bf16.msra.mxu0 0
    %3527 = vmatprep.subr.bf16.mxu0 0
    %3528 = vmatpush1.bf16.msra.mxu0 0
    %3529 = vmatprep.subr.bf16.mxu0 0
    %3530 = vmatpush1.bf16.msra.mxu0 0
    %3531 = vmatprep.subr.bf16.mxu0 0
    %3532 = vmatpush1.bf16.msra.mxu0 0
    %3533 = vmatprep.subr.bf16.mxu0 0
    %3534 = vmatpush1.bf16.msra.mxu0 0
    %3535 = vmatprep.subr.bf16.mxu0 0
    %3536 = vmatpush1.bf16.msra.mxu0 0
    %3537 = vmatprep.subr.bf16.mxu0 0
    %3538 = vmatpush1.bf16.msra.mxu0 0
    %3539 = vmatprep.subr.bf16.mxu0 0
    %3540 = vmatpush1.bf16.msra.mxu0 0
    %3541 = vmatprep.subr.bf16.mxu0 0
    %3542 = vmatpush1.bf16.msra.mxu0 0
    %3543 = vmatprep.mubr.bf16.mxu0 0
    %3544 = vmatmul.mubr.bf16.gmra.mrb[0].mxu0 %v3320
    %v3545 = vpop.f32.mrb[0].mxu0
    %v3546 = vadd.f32 %v3505, %v3545
    %v3547 = vpop.f32.mrb[0].mxu0
    %v3548 = vadd.f32 %v3507, %v3547
    %v3549 = vpop.f32.mrb[0].mxu0
    %v3550 = vpop.f32.mrb[0].mxu0
    %3551 = vdwg.mxu0
    %3552 = vmatprep.subr.bf16.mxu0 %v2289
    %3553 = vmatpush1.bf16.msra.mxu0 %v2288
    %3554 = vmatprep.subr.bf16.mxu0 %v2297
    %3555 = vmatpush1.bf16.msra.mxu0 %v2296
    %3556 = vmatprep.subr.bf16.mxu0 %v2305
    %3557 = vmatpush1.bf16.msra.mxu0 %v2304
    %3558 = vmatprep.subr.bf16.mxu0 %v2313
    %3559 = vmatpush1.bf16.msra.mxu0 %v2312
    %3560 = vmatprep.subr.bf16.mxu0 %v2321
    %3561 = vmatpush1.bf16.msra.mxu0 %v2320
    %3562 = vmatprep.subr.bf16.mxu0 %v2329
    %3563 = vmatpush1.bf16.msra.mxu0 %v2328
    %3564 = vmatprep.subr.bf16.mxu0 %v2337
    %3565 = vmatpush1.bf16.msra.mxu0 %v2336
    %3566 = vmatprep.subr.bf16.mxu0 %v2345
    %3567 = vmatpush1.bf16.msra.mxu0 %v2344
    %3568 = vmatprep.subr.bf16.mxu0 %v2353
    %3569 = vmatpush1.bf16.msra.mxu0 %v2352
    %3570 = vmatprep.subr.bf16.mxu0 %v2361
    %3571 = vmatpush1.bf16.msra.mxu0 %v2360
    %3572 = vmatprep.subr.bf16.mxu0 %v2369
    %3573 = vmatpush1.bf16.msra.mxu0 %v2368
    %3574 = vmatprep.subr.bf16.mxu0 %v2377
    %3575 = vmatpush1.bf16.msra.mxu0 %v2376
    %3576 = vmatprep.subr.bf16.mxu0 %v2385
    %3577 = vmatpush1.bf16.msra.mxu0 %v2384
    %3578 = vmatprep.subr.bf16.mxu0 %v2393
    %3579 = vmatpush1.bf16.msra.mxu0 %v2392
    %3580 = vmatprep.subr.bf16.mxu0 %v2401
    %3581 = vmatpush1.bf16.msra.mxu0 %v2400
    %3582 = vmatprep.subr.bf16.mxu0 %v2409
    %3583 = vmatpush1.bf16.msra.mxu0 %v2408
    %3584 = vmatprep.mubr.bf16.mxu0 %v172
    %3585 = vmatmul.mubr.bf16.gmra.mrb[0].mxu0 %v171
    %v3586 = vpop.f32.mrb[0].mxu0
    %v3587 = vadd.f32 %v709, %v3586
    %v3588 = vpop.f32.mrb[0].mxu0
    %v3589 = vadd.f32 %v713, %v3588
    %v3590 = vpop.f32.mrb[0].mxu0
    %v3591 = vpop.f32.mrb[0].mxu0
    %3592 = vdwg.mxu0
    %3593 = vmatprep.subr.bf16.mxu0 %v2417
    %3594 = vmatpush1.bf16.msra.mxu0 %v2416
    %3595 = vmatprep.subr.bf16.mxu0 %v2425
    %3596 = vmatpush1.bf16.msra.mxu0 %v2424
    %3597 = vmatprep.subr.bf16.mxu0 %v2433
    %3598 = vmatpush1.bf16.msra.mxu0 %v2432
    %3599 = vmatprep.subr.bf16.mxu0 %v2441
    %3600 = vmatpush1.bf16.msra.mxu0 %v2440
    %3601 = vmatprep.subr.bf16.mxu0 %v2449
    %3602 = vmatpush1.bf16.msra.mxu0 %v2448
    %3603 = vmatprep.subr.bf16.mxu0 %v2457
    %3604 = vmatpush1.bf16.msra.mxu0 %v2456
    %3605 = vmatprep.subr.bf16.mxu0 %v2465
    %3606 = vmatpush1.bf16.msra.mxu0 %v2464
    %3607 = vmatprep.subr.bf16.mxu0 %v2473
    %3608 = vmatpush1.bf16.msra.mxu0 %v2472
    %3609 = vmatprep.subr.bf16.mxu0 %v2481
    %3610 = vmatpush1.bf16.msra.mxu0 %v2480
    %3611 = vmatprep.subr.bf16.mxu0 %v2489
    %3612 = vmatpush1.bf16.msra.mxu0 %v2488
    %3613 = vmatprep.subr.bf16.mxu0 %v2497
    %3614 = vmatpush1.bf16.msra.mxu0 %v2496
    %3615 = vmatprep.subr.bf16.mxu0 %v2505
    %3616 = vmatpush1.bf16.msra.mxu0 %v2504
    %3617 = vmatprep.subr.bf16.mxu0 %v2513
    %3618 = vmatpush1.bf16.msra.mxu0 %v2512
    %3619 = vmatprep.subr.bf16.mxu0 %v2521
    %3620 = vmatpush1.bf16.msra.mxu0 %v2520
    %3621 = vmatprep.subr.bf16.mxu0 %v2529
    %3622 = vmatpush1.bf16.msra.mxu0 %v2528
    %3623 = vmatprep.subr.bf16.mxu0 %v2537
    %3624 = vmatpush1.bf16.msra.mxu0 %v2536
    %3625 = vmatprep.mubr.bf16.mxu0 %v174
    %3626 = vmatmul.mubr.bf16.gmra.mrb[0].mxu0 %v173
    %v3627 = vpop.f32.mrb[0].mxu0
    %v3628 = vadd.f32 %v3587, %v3627
    %v3629 = vpop.f32.mrb[0].mxu0
    %v3630 = vadd.f32 %v3589, %v3629
    %v3631 = vpop.f32.mrb[0].mxu0
    %v3632 = vpop.f32.mrb[0].mxu0
    %3633 = vdwg.mxu0
    %3634 = vmatprep.subr.bf16.mxu0 %v2545
    %3635 = vmatpush1.bf16.msra.mxu0 %v2544
    %3636 = vmatprep.subr.bf16.mxu0 %v2553
    %3637 = vmatpush1.bf16.msra.mxu0 %v2552
    %3638 = vmatprep.subr.bf16.mxu0 %v2561
    %3639 = vmatpush1.bf16.msra.mxu0 %v2560
    %3640 = vmatprep.subr.bf16.mxu0 %v2569
    %3641 = vmatpush1.bf16.msra.mxu0 %v2568
    %3642 = vmatprep.subr.bf16.mxu0 %v2577
    %3643 = vmatpush1.bf16.msra.mxu0 %v2576
    %3644 = vmatprep.subr.bf16.mxu0 %v2585
    %3645 = vmatpush1.bf16.msra.mxu0 %v2584
    %3646 = vmatprep.subr.bf16.mxu0 %v2593
    %3647 = vmatpush1.bf16.msra.mxu0 %v2592
    %3648 = vmatprep.subr.bf16.mxu0 %v2601
    %3649 = vmatpush1.bf16.msra.mxu0 %v2600
    %3650 = vmatprep.subr.bf16.mxu0 %v2609
    %3651 = vmatpush1.bf16.msra.mxu0 %v2608
    %3652 = vmatprep.subr.bf16.mxu0 %v2617
    %3653 = vmatpush1.bf16.msra.mxu0 %v2616
    %3654 = vmatprep.subr.bf16.mxu0 %v2625
    %3655 = vmatpush1.bf16.msra.mxu0 %v2624
    %3656 = vmatprep.subr.bf16.mxu0 %v2633
    %3657 = vmatpush1.bf16.msra.mxu0 %v2632
    %3658 = vmatprep.subr.bf16.mxu0 %v2641
    %3659 = vmatpush1.bf16.msra.mxu0 %v2640
    %3660 = vmatprep.subr.bf16.mxu0 %v2649
    %3661 = vmatpush1.bf16.msra.mxu0 %v2648
    %3662 = vmatprep.subr.bf16.mxu0 %v2657
    %3663 = vmatpush1.bf16.msra.mxu0 %v2656
    %3664 = vmatprep.subr.bf16.mxu0 %v2665
    %3665 = vmatpush1.bf16.msra.mxu0 %v2664
    %3666 = vmatprep.mubr.bf16.mxu0 %v176
    %3667 = vmatmul.mubr.bf16.gmra.mrb[0].mxu0 %v175
    %v3668 = vpop.f32.mrb[0].mxu0
    %v3669 = vadd.f32 %v3628, %v3668
    %v3670 = vpop.f32.mrb[0].mxu0
    %v3671 = vadd.f32 %v3630, %v3670
    %v3672 = vpop.f32.mrb[0].mxu0
    %v3673 = vpop.f32.mrb[0].mxu0
    %3674 = vdwg.mxu0
    %3675 = vmatprep.subr.bf16.mxu0 %v2673
    %3676 = vmatpush1.bf16.msra.mxu0 %v2672
    %3677 = vmatprep.subr.bf16.mxu0 %v2681
    %3678 = vmatpush1.bf16.msra.mxu0 %v2680
    %3679 = vmatprep.subr.bf16.mxu0 %v2689
    %3680 = vmatpush1.bf16.msra.mxu0 %v2688
    %3681 = vmatprep.subr.bf16.mxu0 %v2697
    %3682 = vmatpush1.bf16.msra.mxu0 %v2696
    %3683 = vmatprep.subr.bf16.mxu0 %v2705
    %3684 = vmatpush1.bf16.msra.mxu0 %v2704
    %3685 = vmatprep.subr.bf16.mxu0 %v2713
    %3686 = vmatpush1.bf16.msra.mxu0 %v2712
    %3687 = vmatprep.subr.bf16.mxu0 %v2721
    %3688 = vmatpush1.bf16.msra.mxu0 %v2720
    %3689 = vmatprep.subr.bf16.mxu0 %v2729
    %3690 = vmatpush1.bf16.msra.mxu0 %v2728
    %3691 = vmatprep.subr.bf16.mxu0 %v2737
    %3692 = vmatpush1.bf16.msra.mxu0 %v2736
    %3693 = vmatprep.subr.bf16.mxu0 %v2745
    %3694 = vmatpush1.bf16.msra.mxu0 %v2744
    %3695 = vmatprep.subr.bf16.mxu0 %v2753
    %3696 = vmatpush1.bf16.msra.mxu0 %v2752
    %3697 = vmatprep.subr.bf16.mxu0 %v2761
    %3698 = vmatpush1.bf16.msra.mxu0 %v2760
    %3699 = vmatprep.subr.bf16.mxu0 %v2769
    %3700 = vmatpush1.bf16.msra.mxu0 %v2768
    %3701 = vmatprep.subr.bf16.mxu0 %v2777
    %3702 = vmatpush1.bf16.msra.mxu0 %v2776
    %3703 = vmatprep.subr.bf16.mxu0 %v2785
    %3704 = vmatpush1.bf16.msra.mxu0 %v2784
    %3705 = vmatprep.subr.bf16.mxu0 %v2793
    %3706 = vmatpush1.bf16.msra.mxu0 %v2792
    %3707 = vmatprep.mubr.bf16.mxu0 %v178
    %3708 = vmatmul.mubr.bf16.gmra.mrb[0].mxu0 %v177
    %v3709 = vpop.f32.mrb[0].mxu0
    %v3710 = vadd.f32 %v3669, %v3709
    %v3711 = vpop.f32.mrb[0].mxu0
    %v3712 = vadd.f32 %v3671, %v3711
    %v3713 = vpop.f32.mrb[0].mxu0
    %v3714 = vpop.f32.mrb[0].mxu0
    %3715 = vdwg.mxu0
    %3716 = vmatprep.subr.bf16.mxu0 %v3333
    %3717 = vmatpush1.bf16.msra.mxu0 %v3330
    %3718 = vmatprep.subr.bf16.mxu0 0
    %3719 = vmatpush1.bf16.msra.mxu0 0
    %3720 = vmatprep.subr.bf16.mxu0 0
    %3721 = vmatpush1.bf16.msra.mxu0 0
    %3722 = vmatprep.subr.bf16.mxu0 0
    %3723 = vmatpush1.bf16.msra.mxu0 0
    %3724 = vmatprep.subr.bf16.mxu0 0
    %3725 = vmatpush1.bf16.msra.mxu0 0
    %3726 = vmatprep.subr.bf16.mxu0 0
    %3727 = vmatpush1.bf16.msra.mxu0 0
    %3728 = vmatprep.subr.bf16.mxu0 0
    %3729 = vmatpush1.bf16.msra.mxu0 0
    %3730 = vmatprep.subr.bf16.mxu0 0
    %3731 = vmatpush1.bf16.msra.mxu0 0
    %3732 = vmatprep.subr.bf16.mxu0 0
    %3733 = vmatpush1.bf16.msra.mxu0 0
    %3734 = vmatprep.subr.bf16.mxu0 0
    %3735 = vmatpush1.bf16.msra.mxu0 0
    %3736 = vmatprep.subr.bf16.mxu0 0
    %3737 = vmatpush1.bf16.msra.mxu0 0
    %3738 = vmatprep.subr.bf16.mxu0 0
    %3739 = vmatpush1.bf16.msra.mxu0 0
    %3740 = vmatprep.subr.bf16.mxu0 0
    %3741 = vmatpush1.bf16.msra.mxu0 0
    %3742 = vmatprep.subr.bf16.mxu0 0
    %3743 = vmatpush1.bf16.msra.mxu0 0
    %3744 = vmatprep.subr.bf16.mxu0 0
    %3745 = vmatpush1.bf16.msra.mxu0 0
    %3746 = vmatprep.subr.bf16.mxu0 0
    %3747 = vmatpush1.bf16.msra.mxu0 0
    %3748 = vmatprep.mubr.bf16.mxu0 0
    %3749 = vmatmul.mubr.bf16.gmra.mrb[0].mxu0 %v3320
    %v3750 = vpop.f32.mrb[0].mxu0
    %v3751 = vadd.f32 %v3710, %v3750
    %v3752 = vpop.f32.mrb[0].mxu0
    %v3753 = vadd.f32 %v3712, %v3752
    %v3754 = vpop.f32.mrb[0].mxu0
    %v3755 = vpop.f32.mrb[0].mxu0
    %3756 = vdwg.mxu0
    %3757 = vmatprep.subr.bf16.mxu0 %v2291
    %3758 = vmatpush1.bf16.msra.mxu0 %v2290
    %3759 = vmatprep.subr.bf16.mxu0 %v2299
    %3760 = vmatpush1.bf16.msra.mxu0 %v2298
    %3761 = vmatprep.subr.bf16.mxu0 %v2307
    %3762 = vmatpush1.bf16.msra.mxu0 %v2306
    %3763 = vmatprep.subr.bf16.mxu0 %v2315
    %3764 = vmatpush1.bf16.msra.mxu0 %v2314
    %3765 = vmatprep.subr.bf16.mxu0 %v2323
    %3766 = vmatpush1.bf16.msra.mxu0 %v2322
    %3767 = vmatprep.subr.bf16.mxu0 %v2331
    %3768 = vmatpush1.bf16.msra.mxu0 %v2330
    %3769 = vmatprep.subr.bf16.mxu0 %v2339
    %3770 = vmatpush1.bf16.msra.mxu0 %v2338
    %3771 = vmatprep.subr.bf16.mxu0 %v2347
    %3772 = vmatpush1.bf16.msra.mxu0 %v2346
    %3773 = vmatprep.subr.bf16.mxu0 %v2355
    %3774 = vmatpush1.bf16.msra.mxu0 %v2354
    %3775 = vmatprep.subr.bf16.mxu0 %v2363
    %3776 = vmatpush1.bf16.msra.mxu0 %v2362
    %3777 = vmatprep.subr.bf16.mxu0 %v2371
    %3778 = vmatpush1.bf16.msra.mxu0 %v2370
    %3779 = vmatprep.subr.bf16.mxu0 %v2379
    %3780 = vmatpush1.bf16.msra.mxu0 %v2378
    %3781 = vmatprep.subr.bf16.mxu0 %v2387
    %3782 = vmatpush1.bf16.msra.mxu0 %v2386
    %3783 = vmatprep.subr.bf16.mxu0 %v2395
    %3784 = vmatpush1.bf16.msra.mxu0 %v2394
    %3785 = vmatprep.subr.bf16.mxu0 %v2403
    %3786 = vmatpush1.bf16.msra.mxu0 %v2402
    %3787 = vmatprep.subr.bf16.mxu0 %v2411
    %3788 = vmatpush1.bf16.msra.mxu0 %v2410
    %3789 = vmatprep.mubr.bf16.mxu0 %v172
    %3790 = vmatmul.mubr.bf16.gmra.mrb[0].mxu0 %v171
    %v3791 = vpop.f32.mrb[0].mxu0
    %v3792 = vadd.f32 %v717, %v3791
    %v3793 = vpop.f32.mrb[0].mxu0
    %v3794 = vadd.f32 %v721, %v3793
    %v3795 = vpop.f32.mrb[0].mxu0
    %v3796 = vpop.f32.mrb[0].mxu0
    %3797 = vdwg.mxu0
    %3798 = vmatprep.subr.bf16.mxu0 %v2419
    %3799 = vmatpush1.bf16.msra.mxu0 %v2418
    %3800 = vmatprep.subr.bf16.mxu0 %v2427
    %3801 = vmatpush1.bf16.msra.mxu0 %v2426
    %3802 = vmatprep.subr.bf16.mxu0 %v2435
    %3803 = vmatpush1.bf16.msra.mxu0 %v2434
    %3804 = vmatprep.subr.bf16.mxu0 %v2443
    %3805 = vmatpush1.bf16.msra.mxu0 %v2442
    %3806 = vmatprep.subr.bf16.mxu0 %v2451
    %3807 = vmatpush1.bf16.msra.mxu0 %v2450
    %3808 = vmatprep.subr.bf16.mxu0 %v2459
    %3809 = vmatpush1.bf16.msra.mxu0 %v2458
    %3810 = vmatprep.subr.bf16.mxu0 %v2467
    %3811 = vmatpush1.bf16.msra.mxu0 %v2466
    %3812 = vmatprep.subr.bf16.mxu0 %v2475
    %3813 = vmatpush1.bf16.msra.mxu0 %v2474
    %3814 = vmatprep.subr.bf16.mxu0 %v2483
    %3815 = vmatpush1.bf16.msra.mxu0 %v2482
    %3816 = vmatprep.subr.bf16.mxu0 %v2491
    %3817 = vmatpush1.bf16.msra.mxu0 %v2490
    %3818 = vmatprep.subr.bf16.mxu0 %v2499
    %3819 = vmatpush1.bf16.msra.mxu0 %v2498
    %3820 = vmatprep.subr.bf16.mxu0 %v2507
    %3821 = vmatpush1.bf16.msra.mxu0 %v2506
    %3822 = vmatprep.subr.bf16.mxu0 %v2515
    %3823 = vmatpush1.bf16.msra.mxu0 %v2514
    %3824 = vmatprep.subr.bf16.mxu0 %v2523
    %3825 = vmatpush1.bf16.msra.mxu0 %v2522
    %3826 = vmatprep.subr.bf16.mxu0 %v2531
    %3827 = vmatpush1.bf16.msra.mxu0 %v2530
    %3828 = vmatprep.subr.bf16.mxu0 %v2539
    %3829 = vmatpush1.bf16.msra.mxu0 %v2538
    %3830 = vmatprep.mubr.bf16.mxu0 %v174
    %3831 = vmatmul.mubr.bf16.gmra.mrb[0].mxu0 %v173
    %v3832 = vpop.f32.mrb[0].mxu0
    %v3833 = vadd.f32 %v3792, %v3832
    %v3834 = vpop.f32.mrb[0].mxu0
    %v3835 = vadd.f32 %v3794, %v3834
    %v3836 = vpop.f32.mrb[0].mxu0
    %v3837 = vpop.f32.mrb[0].mxu0
    %3838 = vdwg.mxu0
    %3839 = vmatprep.subr.bf16.mxu0 %v2547
    %3840 = vmatpush1.bf16.msra.mxu0 %v2546
    %3841 = vmatprep.subr.bf16.mxu0 %v2555
    %3842 = vmatpush1.bf16.msra.mxu0 %v2554
    %3843 = vmatprep.subr.bf16.mxu0 %v2563
    %3844 = vmatpush1.bf16.msra.mxu0 %v2562
    %3845 = vmatprep.subr.bf16.mxu0 %v2571
    %3846 = vmatpush1.bf16.msra.mxu0 %v2570
    %3847 = vmatprep.subr.bf16.mxu0 %v2579
    %3848 = vmatpush1.bf16.msra.mxu0 %v2578
    %3849 = vmatprep.subr.bf16.mxu0 %v2587
    %3850 = vmatpush1.bf16.msra.mxu0 %v2586
    %3851 = vmatprep.subr.bf16.mxu0 %v2595
    %3852 = vmatpush1.bf16.msra.mxu0 %v2594
    %3853 = vmatprep.subr.bf16.mxu0 %v2603
    %3854 = vmatpush1.bf16.msra.mxu0 %v2602
    %3855 = vmatprep.subr.bf16.mxu0 %v2611
    %3856 = vmatpush1.bf16.msra.mxu0 %v2610
    %3857 = vmatprep.subr.bf16.mxu0 %v2619
    %3858 = vmatpush1.bf16.msra.mxu0 %v2618
    %3859 = vmatprep.subr.bf16.mxu0 %v2627
    %3860 = vmatpush1.bf16.msra.mxu0 %v2626
    %3861 = vmatprep.subr.bf16.mxu0 %v2635
    %3862 = vmatpush1.bf16.msra.mxu0 %v2634
    %3863 = vmatprep.subr.bf16.mxu0 %v2643
    %3864 = vmatpush1.bf16.msra.mxu0 %v2642
    %3865 = vmatprep.subr.bf16.mxu0 %v2651
    %3866 = vmatpush1.bf16.msra.mxu0 %v2650
    %3867 = vmatprep.subr.bf16.mxu0 %v2659
    %3868 = vmatpush1.bf16.msra.mxu0 %v2658
    %3869 = vmatprep.subr.bf16.mxu0 %v2667
    %3870 = vmatpush1.bf16.msra.mxu0 %v2666
    %3871 = vmatprep.mubr.bf16.mxu0 %v176
    %3872 = vmatmul.mubr.bf16.gmra.mrb[0].mxu0 %v175
    %v3873 = vpop.f32.mrb[0].mxu0
    %v3874 = vadd.f32 %v3833, %v3873
    %v3875 = vpop.f32.mrb[0].mxu0
    %v3876 = vadd.f32 %v3835, %v3875
    %v3877 = vpop.f32.mrb[0].mxu0
    %v3878 = vpop.f32.mrb[0].mxu0
    %3879 = vdwg.mxu0
    %3880 = vmatprep.subr.bf16.mxu0 %v2675
    %3881 = vmatpush1.bf16.msra.mxu0 %v2674
    %3882 = vmatprep.subr.bf16.mxu0 %v2683
    %3883 = vmatpush1.bf16.msra.mxu0 %v2682
    %3884 = vmatprep.subr.bf16.mxu0 %v2691
    %3885 = vmatpush1.bf16.msra.mxu0 %v2690
    %3886 = vmatprep.subr.bf16.mxu0 %v2699
    %3887 = vmatpush1.bf16.msra.mxu0 %v2698
    %3888 = vmatprep.subr.bf16.mxu0 %v2707
    %3889 = vmatpush1.bf16.msra.mxu0 %v2706
    %3890 = vmatprep.subr.bf16.mxu0 %v2715
    %3891 = vmatpush1.bf16.msra.mxu0 %v2714
    %3892 = vmatprep.subr.bf16.mxu0 %v2723
    %3893 = vmatpush1.bf16.msra.mxu0 %v2722
    %3894 = vmatprep.subr.bf16.mxu0 %v2731
    %3895 = vmatpush1.bf16.msra.mxu0 %v2730
    %3896 = vmatprep.subr.bf16.mxu0 %v2739
    %3897 = vmatpush1.bf16.msra.mxu0 %v2738
    %3898 = vmatprep.subr.bf16.mxu0 %v2747
    %3899 = vmatpush1.bf16.msra.mxu0 %v2746
    %3900 = vmatprep.subr.bf16.mxu0 %v2755
    %3901 = vmatpush1.bf16.msra.mxu0 %v2754
    %3902 = vmatprep.subr.bf16.mxu0 %v2763
    %3903 = vmatpush1.bf16.msra.mxu0 %v2762
    %3904 = vmatprep.subr.bf16.mxu0 %v2771
    %3905 = vmatpush1.bf16.msra.mxu0 %v2770
    %3906 = vmatprep.subr.bf16.mxu0 %v2779
    %3907 = vmatpush1.bf16.msra.mxu0 %v2778
    %3908 = vmatprep.subr.bf16.mxu0 %v2787
    %3909 = vmatpush1.bf16.msra.mxu0 %v2786
    %3910 = vmatprep.subr.bf16.mxu0 %v2795
    %3911 = vmatpush1.bf16.msra.mxu0 %v2794
    %3912 = vmatprep.mubr.bf16.mxu0 %v178
    %3913 = vmatmul.mubr.bf16.gmra.mrb[0].mxu0 %v177
    %v3914 = vpop.f32.mrb[0].mxu0
    %v3915 = vadd.f32 %v3874, %v3914
    %v3916 = vpop.f32.mrb[0].mxu0
    %v3917 = vadd.f32 %v3876, %v3916
    %v3918 = vpop.f32.mrb[0].mxu0
    %v3919 = vpop.f32.mrb[0].mxu0
    %3920 = vdwg.mxu0
    %3921 = vmatprep.subr.bf16.mxu0 %v3339
    %3922 = vmatpush1.bf16.msra.mxu0 %v3336
    %3923 = vmatprep.subr.bf16.mxu0 0
    %3924 = vmatpush1.bf16.msra.mxu0 0
    %3925 = vmatprep.subr.bf16.mxu0 0
    %3926 = vmatpush1.bf16.msra.mxu0 0
    %3927 = vmatprep.subr.bf16.mxu0 0
    %3928 = vmatpush1.bf16.msra.mxu0 0
    %3929 = vmatprep.subr.bf16.mxu0 0
    %3930 = vmatpush1.bf16.msra.mxu0 0
    %3931 = vmatprep.subr.bf16.mxu0 0
    %3932 = vmatpush1.bf16.msra.mxu0 0
    %3933 = vmatprep.subr.bf16.mxu0 0
    %3934 = vmatpush1.bf16.msra.mxu0 0
    %3935 = vmatprep.subr.bf16.mxu0 0
    %3936 = vmatpush1.bf16.msra.mxu0 0
    %3937 = vmatprep.subr.bf16.mxu0 0
    %3938 = vmatpush1.bf16.msra.mxu0 0
    %3939 = vmatprep.subr.bf16.mxu0 0
    %3940 = vmatpush1.bf16.msra.mxu0 0
    %3941 = vmatprep.subr.bf16.mxu0 0
    %3942 = vmatpush1.bf16.msra.mxu0 0
    %3943 = vmatprep.subr.bf16.mxu0 0
    %3944 = vmatpush1.bf16.msra.mxu0 0
    %3945 = vmatprep.subr.bf16.mxu0 0
    %3946 = vmatpush1.bf16.msra.mxu0 0
    %3947 = vmatprep.subr.bf16.mxu0 0
    %3948 = vmatpush1.bf16.msra.mxu0 0
    %3949 = vmatprep.subr.bf16.mxu0 0
    %3950 = vmatpush1.bf16.msra.mxu0 0
    %3951 = vmatprep.subr.bf16.mxu0 0
    %3952 = vmatpush1.bf16.msra.mxu0 0
    %3953 = vmatprep.mubr.bf16.mxu0 0
    %3954 = vmatmul.mubr.bf16.gmra.mrb[0].mxu0 %v3320
    %v3955 = vpop.f32.mrb[0].mxu0
    %v3956 = vadd.f32 %v3915, %v3955
    %v3957 = vpop.f32.mrb[0].mxu0
    %v3958 = vadd.f32 %v3917, %v3957
    %v3959 = vpop.f32.mrb[0].mxu0
    %v3960 = vpop.f32.mrb[0].mxu0
    %3961 = vdwg.mxu0
    %3962 = vmatprep.subr.bf16.mxu0 %v2293
    %3963 = vmatpush1.bf16.msra.mxu0 %v2292
    %3964 = vmatprep.subr.bf16.mxu0 %v2301
    %3965 = vmatpush1.bf16.msra.mxu0 %v2300
    %3966 = vmatprep.subr.bf16.mxu0 %v2309
    %3967 = vmatpush1.bf16.msra.mxu0 %v2308
    %3968 = vmatprep.subr.bf16.mxu0 %v2317
    %3969 = vmatpush1.bf16.msra.mxu0 %v2316
    %3970 = vmatprep.subr.bf16.mxu0 %v2325
    %3971 = vmatpush1.bf16.msra.mxu0 %v2324
    %3972 = vmatprep.subr.bf16.mxu0 %v2333
    %3973 = vmatpush1.bf16.msra.mxu0 %v2332
    %3974 = vmatprep.subr.bf16.mxu0 %v2341
    %3975 = vmatpush1.bf16.msra.mxu0 %v2340
    %3976 = vmatprep.subr.bf16.mxu0 %v2349
    %3977 = vmatpush1.bf16.msra.mxu0 %v2348
    %3978 = vmatprep.subr.bf16.mxu0 %v2357
    %3979 = vmatpush1.bf16.msra.mxu0 %v2356
    %3980 = vmatprep.subr.bf16.mxu0 %v2365
    %3981 = vmatpush1.bf16.msra.mxu0 %v2364
    %3982 = vmatprep.subr.bf16.mxu0 %v2373
    %3983 = vmatpush1.bf16.msra.mxu0 %v2372
    %3984 = vmatprep.subr.bf16.mxu0 %v2381
    %3985 = vmatpush1.bf16.msra.mxu0 %v2380
    %3986 = vmatprep.subr.bf16.mxu0 %v2389
    %3987 = vmatpush1.bf16.msra.mxu0 %v2388
    %3988 = vmatprep.subr.bf16.mxu0 %v2397
    %3989 = vmatpush1.bf16.msra.mxu0 %v2396
    %3990 = vmatprep.subr.bf16.mxu0 %v2405
    %3991 = vmatpush1.bf16.msra.mxu0 %v2404
    %3992 = vmatprep.subr.bf16.mxu0 %v2413
    %3993 = vmatpush1.bf16.msra.mxu0 %v2412
    %3994 = vmatprep.mubr.bf16.mxu0 %v172
    %3995 = vmatmul.mubr.bf16.gmra.mrb[0].mxu0 %v171
    %v3996 = vpop.f32.mrb[0].mxu0
    %v3997 = vadd.f32 %v725, %v3996
    %v3998 = vpop.f32.mrb[0].mxu0
    %v3999 = vadd.f32 %v729, %v3998
    %v4000 = vpop.f32.mrb[0].mxu0
    %v4001 = vpop.f32.mrb[0].mxu0
    %4002 = vdwg.mxu0
    %4003 = vmatprep.subr.bf16.mxu0 %v2421
    %4004 = vmatpush1.bf16.msra.mxu0 %v2420
    %4005 = vmatprep.subr.bf16.mxu0 %v2429
    %4006 = vmatpush1.bf16.msra.mxu0 %v2428
    %4007 = vmatprep.subr.bf16.mxu0 %v2437
    %4008 = vmatpush1.bf16.msra.mxu0 %v2436
    %4009 = vmatprep.subr.bf16.mxu0 %v2445
    %4010 = vmatpush1.bf16.msra.mxu0 %v2444
    %4011 = vmatprep.subr.bf16.mxu0 %v2453
    %4012 = vmatpush1.bf16.msra.mxu0 %v2452
    %4013 = vmatprep.subr.bf16.mxu0 %v2461
    %4014 = vmatpush1.bf16.msra.mxu0 %v2460
    %4015 = vmatprep.subr.bf16.mxu0 %v2469
    %4016 = vmatpush1.bf16.msra.mxu0 %v2468
    %4017 = vmatprep.subr.bf16.mxu0 %v2477
    %4018 = vmatpush1.bf16.msra.mxu0 %v2476
    %4019 = vmatprep.subr.bf16.mxu0 %v2485
    %4020 = vmatpush1.bf16.msra.mxu0 %v2484
    %4021 = vmatprep.subr.bf16.mxu0 %v2493
    %4022 = vmatpush1.bf16.msra.mxu0 %v2492
    %4023 = vmatprep.subr.bf16.mxu0 %v2501
    %4024 = vmatpush1.bf16.msra.mxu0 %v2500
    %4025 = vmatprep.subr.bf16.mxu0 %v2509
    %4026 = vmatpush1.bf16.msra.mxu0 %v2508
    %4027 = vmatprep.subr.bf16.mxu0 %v2517
    %4028 = vmatpush1.bf16.msra.mxu0 %v2516
    %4029 = vmatprep.subr.bf16.mxu0 %v2525
    %4030 = vmatpush1.bf16.msra.mxu0 %v2524
    %4031 = vmatprep.subr.bf16.mxu0 %v2533
    %4032 = vmatpush1.bf16.msra.mxu0 %v2532
    %4033 = vmatprep.subr.bf16.mxu0 %v2541
    %4034 = vmatpush1.bf16.msra.mxu0 %v2540
    %4035 = vmatprep.mubr.bf16.mxu0 %v174
    %4036 = vmatmul.mubr.bf16.gmra.mrb[0].mxu0 %v173
    %v4037 = vpop.f32.mrb[0].mxu0
    %v4038 = vadd.f32 %v3997, %v4037
    %v4039 = vpop.f32.mrb[0].mxu0
    %v4040 = vadd.f32 %v3999, %v4039
    %v4041 = vpop.f32.mrb[0].mxu0
    %v4042 = vpop.f32.mrb[0].mxu0
    %4043 = vdwg.mxu0
    %4044 = vmatprep.subr.bf16.mxu0 %v2549
    %4045 = vmatpush1.bf16.msra.mxu0 %v2548
    %4046 = vmatprep.subr.bf16.mxu0 %v2557
    %4047 = vmatpush1.bf16.msra.mxu0 %v2556
    %4048 = vmatprep.subr.bf16.mxu0 %v2565
    %4049 = vmatpush1.bf16.msra.mxu0 %v2564
    %4050 = vmatprep.subr.bf16.mxu0 %v2573
    %4051 = vmatpush1.bf16.msra.mxu0 %v2572
    %4052 = vmatprep.subr.bf16.mxu0 %v2581
    %4053 = vmatpush1.bf16.msra.mxu0 %v2580
    %4054 = vmatprep.subr.bf16.mxu0 %v2589
    %4055 = vmatpush1.bf16.msra.mxu0 %v2588
    %4056 = vmatprep.subr.bf16.mxu0 %v2597
    %4057 = vmatpush1.bf16.msra.mxu0 %v2596
    %4058 = vmatprep.subr.bf16.mxu0 %v2605
    %4059 = vmatpush1.bf16.msra.mxu0 %v2604
    %4060 = vmatprep.subr.bf16.mxu0 %v2613
    %4061 = vmatpush1.bf16.msra.mxu0 %v2612
    %4062 = vmatprep.subr.bf16.mxu0 %v2621
    %4063 = vmatpush1.bf16.msra.mxu0 %v2620
    %4064 = vmatprep.subr.bf16.mxu0 %v2629
    %4065 = vmatpush1.bf16.msra.mxu0 %v2628
    %4066 = vmatprep.subr.bf16.mxu0 %v2637
    %4067 = vmatpush1.bf16.msra.mxu0 %v2636
    %4068 = vmatprep.subr.bf16.mxu0 %v2645
    %4069 = vmatpush1.bf16.msra.mxu0 %v2644
    %4070 = vmatprep.subr.bf16.mxu0 %v2653
    %4071 = vmatpush1.bf16.msra.mxu0 %v2652
    %4072 = vmatprep.subr.bf16.mxu0 %v2661
    %4073 = vmatpush1.bf16.msra.mxu0 %v2660
    %4074 = vmatprep.subr.bf16.mxu0 %v2669
    %4075 = vmatpush1.bf16.msra.mxu0 %v2668
    %4076 = vmatprep.mubr.bf16.mxu0 %v176
    %4077 = vmatmul.mubr.bf16.gmra.mrb[0].mxu0 %v175
    %v4078 = vpop.f32.mrb[0].mxu0
    %v4079 = vadd.f32 %v4038, %v4078
    %v4080 = vpop.f32.mrb[0].mxu0
    %v4081 = vadd.f32 %v4040, %v4080
    %v4082 = vpop.f32.mrb[0].mxu0
    %v4083 = vpop.f32.mrb[0].mxu0
    %4084 = vdwg.mxu0
    %4085 = vmatprep.subr.bf16.mxu0 %v2677
    %4086 = vmatpush1.bf16.msra.mxu0 %v2676
    %4087 = vmatprep.subr.bf16.mxu0 %v2685
    %4088 = vmatpush1.bf16.msra.mxu0 %v2684
    %4089 = vmatprep.subr.bf16.mxu0 %v2693
    %4090 = vmatpush1.bf16.msra.mxu0 %v2692
    %4091 = vmatprep.subr.bf16.mxu0 %v2701
    %4092 = vmatpush1.bf16.msra.mxu0 %v2700
    %4093 = vmatprep.subr.bf16.mxu0 %v2709
    %4094 = vmatpush1.bf16.msra.mxu0 %v2708
    %4095 = vmatprep.subr.bf16.mxu0 %v2717
    %4096 = vmatpush1.bf16.msra.mxu0 %v2716
    %4097 = vmatprep.subr.bf16.mxu0 %v2725
    %4098 = vmatpush1.bf16.msra.mxu0 %v2724
    %4099 = vmatprep.subr.bf16.mxu0 %v2733
    %4100 = vmatpush1.bf16.msra.mxu0 %v2732
    %4101 = vmatprep.subr.bf16.mxu0 %v2741
    %4102 = vmatpush1.bf16.msra.mxu0 %v2740
    %4103 = vmatprep.subr.bf16.mxu0 %v2749
    %4104 = vmatpush1.bf16.msra.mxu0 %v2748
    %4105 = vmatprep.subr.bf16.mxu0 %v2757
    %4106 = vmatpush1.bf16.msra.mxu0 %v2756
    %4107 = vmatprep.subr.bf16.mxu0 %v2765
    %4108 = vmatpush1.bf16.msra.mxu0 %v2764
    %4109 = vmatprep.subr.bf16.mxu0 %v2773
    %4110 = vmatpush1.bf16.msra.mxu0 %v2772
    %4111 = vmatprep.subr.bf16.mxu0 %v2781
    %4112 = vmatpush1.bf16.msra.mxu0 %v2780
    %4113 = vmatprep.subr.bf16.mxu0 %v2789
    %4114 = vmatpush1.bf16.msra.mxu0 %v2788
    %4115 = vmatprep.subr.bf16.mxu0 %v2797
    %4116 = vmatpush1.bf16.msra.mxu0 %v2796
    %4117 = vmatprep.mubr.bf16.mxu0 %v178
    %4118 = vmatmul.mubr.bf16.gmra.mrb[0].mxu0 %v177
    %v4119 = vpop.f32.mrb[0].mxu0
    %v4120 = vadd.f32 %v4079, %v4119
    %v4121 = vpop.f32.mrb[0].mxu0
    %v4122 = vadd.f32 %v4081, %v4121
    %v4123 = vpop.f32.mrb[0].mxu0
    %v4124 = vpop.f32.mrb[0].mxu0
    %4125 = vdwg.mxu0
    %4126 = vmatprep.subr.bf16.mxu0 %v3345
    %4127 = vmatpush1.bf16.msra.mxu0 %v3342
    %4128 = vmatprep.subr.bf16.mxu0 0
    %4129 = vmatpush1.bf16.msra.mxu0 0
    %4130 = vmatprep.subr.bf16.mxu0 0
    %4131 = vmatpush1.bf16.msra.mxu0 0
    %4132 = vmatprep.subr.bf16.mxu0 0
    %4133 = vmatpush1.bf16.msra.mxu0 0
    %4134 = vmatprep.subr.bf16.mxu0 0
    %4135 = vmatpush1.bf16.msra.mxu0 0
    %4136 = vmatprep.subr.bf16.mxu0 0
    %4137 = vmatpush1.bf16.msra.mxu0 0
    %4138 = vmatprep.subr.bf16.mxu0 0
    %4139 = vmatpush1.bf16.msra.mxu0 0
    %4140 = vmatprep.subr.bf16.mxu0 0
    %4141 = vmatpush1.bf16.msra.mxu0 0
    %4142 = vmatprep.subr.bf16.mxu0 0
    %4143 = vmatpush1.bf16.msra.mxu0 0
    %4144 = vmatprep.subr.bf16.mxu0 0
    %4145 = vmatpush1.bf16.msra.mxu0 0
    %4146 = vmatprep.subr.bf16.mxu0 0
    %4147 = vmatpush1.bf16.msra.mxu0 0
    %4148 = vmatprep.subr.bf16.mxu0 0
    %4149 = vmatpush1.bf16.msra.mxu0 0
    %4150 = vmatprep.subr.bf16.mxu0 0
    %4151 = vmatpush1.bf16.msra.mxu0 0
    %4152 = vmatprep.subr.bf16.mxu0 0
    %4153 = vmatpush1.bf16.msra.mxu0 0
    %4154 = vmatprep.subr.bf16.mxu0 0
    %4155 = vmatpush1.bf16.msra.mxu0 0
    %4156 = vmatprep.subr.bf16.mxu0 0
    %4157 = vmatpush1.bf16.msra.mxu0 0
    %4158 = vmatprep.mubr.bf16.mxu0 0
    %4159 = vmatmul.mubr.bf16.gmra.mrb[0].mxu0 %v3320
    %v4160 = vpop.f32.mrb[0].mxu0
    %v4161 = vadd.f32 %v4120, %v4160
    %v4162 = vpop.f32.mrb[0].mxu0
    %v4163 = vadd.f32 %v4122, %v4162
    %v4164 = vpop.f32.mrb[0].mxu0
    %v4165 = vpop.f32.mrb[0].mxu0
    %4166 = vdwg.mxu0
    %v4167 = vmul.f32 %v3546, 0.01
    %v4168 = vmul.f32 %v3548, 0.01
    %v4169 = vmul.f32 %v3751, 0.01
    %v4170 = vmul.f32 %v3753, 0.01
    %v4171 = vmul.f32 %v3956, 0.01
    %v4172 = vmul.f32 %v3958, 0.01
    %v4173 = vmul.f32 %v4161, 0.01
    %v4174 = vmul.f32 %v4163, 0.01
    %v4175 = vmax.f32 %v3546, %v4167
    %v4176 = vmax.f32 %v3548, %v4168
    %v4177 = vmax.f32 %v3751, %v4169
    %v4178 = vmax.f32 %v3753, %v4170
    %v4179 = vmax.f32 %v3956, %v4171
    %v4180 = vmax.f32 %v3958, %v4172
    %v4181 = vmax.f32 %v4161, %v4173
    %v4182 = vmax.f32 %v4163, %v4174
    %v4183 = vpack.c.bf16 %v4175, %v4175
    %v4184 = vpack.c.bf16 %v4176, %v4176
    %v4185 = vpack.c.bf16 %v4177, %v4177
    %v4186 = vpack.c.bf16 %v4178, %v4178
    %v4187 = vpack.c.bf16 %v4179, %v4179
    %v4188 = vpack.c.bf16 %v4180, %v4180
    %v4189 = vpack.c.bf16 %v4181, %v4181
    %v4190 = vpack.c.bf16 %v4182, %v4182
    %v4191 = vld [vmem:[#allocation8] sm:$0xff]
    %v4192 = vld [vmem:[#allocation8 + $0x8] sm:$0xff]
    %v4193 = vld [vmem:[#allocation8 + $0x10] sm:$0xff]
    %v4194 = vld [vmem:[#allocation8 + $0x18] sm:$0xff]
    %v4195 = vld [vmem:[#allocation8 + $0x20] sm:$0xff]
    %v4196 = vld [vmem:[#allocation8 + $0x28] sm:$0xff]
    %v4197 = vld [vmem:[#allocation8 + $0x30] sm:$0xff]
    %v4198 = vld [vmem:[#allocation8 + $0x38] sm:$0xff]
    %v4199 = vld [vmem:[#allocation8 + $0x40] sm:$0xff]
    %v4200 = vld [vmem:[#allocation8 + $0x48] sm:$0xff]
    %v4201 = vld [vmem:[#allocation8 + $0x50] sm:$0xff]
    %v4202 = vld [vmem:[#allocation8 + $0x58] sm:$0xff]
    %v4203 = vld [vmem:[#allocation8 + $0x60] sm:$0xff]
    %v4204 = vld [vmem:[#allocation8 + $0x68] sm:$0xff]
    %v4205 = vld [vmem:[#allocation8 + $0x70] sm:$0xff]
    %v4206 = vld [vmem:[#allocation8 + $0x78] sm:$0xff]
    %v4207 = vld [vmem:[#allocation8 + $0x80] sm:$0xff]
    %v4208 = vld [vmem:[#allocation8 + $0x88] sm:$0xff]
    %v4209 = vld [vmem:[#allocation8 + $0x90] sm:$0xff]
    %v4210 = vld [vmem:[#allocation8 + $0x98] sm:$0xff]
    %v4211 = vld [vmem:[#allocation8 + $0xa0] sm:$0xff]
    %v4212 = vld [vmem:[#allocation8 + $0xa8] sm:$0xff]
    %v4213 = vld [vmem:[#allocation8 + $0xb0] sm:$0xff]
    %v4214 = vld [vmem:[#allocation8 + $0xb8] sm:$0xff]
    %v4215 = vld [vmem:[#allocation8 + $0xc0] sm:$0xff]
    %v4216 = vld [vmem:[#allocation8 + $0xc8] sm:$0xff]
    %v4217 = vld [vmem:[#allocation8 + $0xd0] sm:$0xff]
    %v4218 = vld [vmem:[#allocation8 + $0xd8] sm:$0xff]
    %v4219 = vld [vmem:[#allocation8 + $0xe0] sm:$0xff]
    %v4220 = vld [vmem:[#allocation8 + $0xe8] sm:$0xff]
    %v4221 = vld [vmem:[#allocation8 + $0xf0] sm:$0xff]
    %v4222 = vld [vmem:[#allocation8 + $0xf8] sm:$0xff]
    %v4223 = vld [vmem:[#allocation8 + $0x100] sm:$0xff]
    %v4224 = vld [vmem:[#allocation8 + $0x108] sm:$0xff]
    %v4225 = vld [vmem:[#allocation8 + $0x110] sm:$0xff]
    %v4226 = vld [vmem:[#allocation8 + $0x118] sm:$0xff]
    %v4227 = vld [vmem:[#allocation8 + $0x120] sm:$0xff]
    %v4228 = vld [vmem:[#allocation8 + $0x128] sm:$0xff]
    %v4229 = vld [vmem:[#allocation8 + $0x130] sm:$0xff]
    %v4230 = vld [vmem:[#allocation8 + $0x138] sm:$0xff]
    %v4231 = vld [vmem:[#allocation8 + $0x140] sm:$0xff]
    %v4232 = vld [vmem:[#allocation8 + $0x148] sm:$0xff]
    %v4233 = vld [vmem:[#allocation8 + $0x150] sm:$0xff]
    %v4234 = vld [vmem:[#allocation8 + $0x158] sm:$0xff]
    %v4235 = vld [vmem:[#allocation8 + $0x160] sm:$0xff]
    %v4236 = vld [vmem:[#allocation8 + $0x168] sm:$0xff]
    %v4237 = vld [vmem:[#allocation8 + $0x170] sm:$0xff]
    %v4238 = vld [vmem:[#allocation8 + $0x178] sm:$0xff]
    %v4239 = vld [vmem:[#allocation8 + $0x180] sm:$0xff]
    %v4240 = vld [vmem:[#allocation8 + $0x188] sm:$0xff]
    %v4241 = vld [vmem:[#allocation8 + $0x190] sm:$0xff]
    %v4242 = vld [vmem:[#allocation8 + $0x198] sm:$0xff]
    %v4243 = vld [vmem:[#allocation8 + $0x1a0] sm:$0xff]
    %v4244 = vld [vmem:[#allocation8 + $0x1a8] sm:$0xff]
    %v4245 = vld [vmem:[#allocation8 + $0x1b0] sm:$0xff]
    %v4246 = vld [vmem:[#allocation8 + $0x1b8] sm:$0xff]
    %v4247 = vld [vmem:[#allocation8 + $0x1c0] sm:$0xff]
    %v4248 = vld [vmem:[#allocation8 + $0x1c8] sm:$0xff]
    %v4249 = vld [vmem:[#allocation8 + $0x1d0] sm:$0xff]
    %v4250 = vld [vmem:[#allocation8 + $0x1d8] sm:$0xff]
    %v4251 = vld [vmem:[#allocation8 + $0x1e0] sm:$0xff]
    %v4252 = vld [vmem:[#allocation8 + $0x1e8] sm:$0xff]
    %v4253 = vld [vmem:[#allocation8 + $0x1f0] sm:$0xff]
    %v4254 = vld [vmem:[#allocation8 + $0x1f8] sm:$0xff]
    %v4255 = vld [vmem:[#allocation8 + $0x200] sm:$0xff]
    %v4256 = vld [vmem:[#allocation8 + $0x208] sm:$0xff]
    %v4257 = vld [vmem:[#allocation8 + $0x210] sm:$0xff]
    %v4258 = vld [vmem:[#allocation8 + $0x218] sm:$0xff]
    %v4259 = vld [vmem:[#allocation8 + $0x220] sm:$0xff]
    %v4260 = vld [vmem:[#allocation8 + $0x228] sm:$0xff]
    %v4261 = vld [vmem:[#allocation8 + $0x230] sm:$0xff]
    %v4262 = vld [vmem:[#allocation8 + $0x238] sm:$0xff]
    %v4263 = vld [vmem:[#allocation8 + $0x240] sm:$0xff]
    %v4264 = vld [vmem:[#allocation8 + $0x248] sm:$0xff]
    %v4265 = vld [vmem:[#allocation8 + $0x250] sm:$0xff]
    %v4266 = vld [vmem:[#allocation8 + $0x258] sm:$0xff]
    %v4267 = vld [vmem:[#allocation8 + $0x260] sm:$0xff]
    %v4268 = vld [vmem:[#allocation8 + $0x268] sm:$0xff]
    %v4269 = vld [vmem:[#allocation8 + $0x270] sm:$0xff]
    %v4270 = vld [vmem:[#allocation8 + $0x278] sm:$0xff]
    %v4271 = vld [vmem:[#allocation8 + $0x280] sm:$0xff]
    %v4272 = vld [vmem:[#allocation8 + $0x288] sm:$0xff]
    %v4273 = vld [vmem:[#allocation8 + $0x290] sm:$0xff]
    %v4274 = vld [vmem:[#allocation8 + $0x298] sm:$0xff]
    %v4275 = vld [vmem:[#allocation8 + $0x2a0] sm:$0xff]
    %v4276 = vld [vmem:[#allocation8 + $0x2a8] sm:$0xff]
    %v4277 = vld [vmem:[#allocation8 + $0x2b0] sm:$0xff]
    %v4278 = vld [vmem:[#allocation8 + $0x2b8] sm:$0xff]
    %v4279 = vld [vmem:[#allocation8 + $0x2c0] sm:$0xff]
    %v4280 = vld [vmem:[#allocation8 + $0x2c8] sm:$0xff]
    %v4281 = vld [vmem:[#allocation8 + $0x2d0] sm:$0xff]
    %v4282 = vld [vmem:[#allocation8 + $0x2d8] sm:$0xff]
    %v4283 = vld [vmem:[#allocation8 + $0x2e0] sm:$0xff]
    %v4284 = vld [vmem:[#allocation8 + $0x2e8] sm:$0xff]
    %v4285 = vld [vmem:[#allocation8 + $0x2f0] sm:$0xff]
    %v4286 = vld [vmem:[#allocation8 + $0x2f8] sm:$0xff]
    %v4287 = vld [vmem:[#allocation8 + $0x300] sm:$0xff]
    %v4288 = vld [vmem:[#allocation8 + $0x308] sm:$0xff]
    %v4289 = vld [vmem:[#allocation8 + $0x310] sm:$0xff]
    %v4290 = vld [vmem:[#allocation8 + $0x318] sm:$0xff]
    %v4291 = vld [vmem:[#allocation8 + $0x320] sm:$0xff]
    %v4292 = vld [vmem:[#allocation8 + $0x328] sm:$0xff]
    %v4293 = vld [vmem:[#allocation8 + $0x330] sm:$0xff]
    %v4294 = vld [vmem:[#allocation8 + $0x338] sm:$0xff]
    %v4295 = vld [vmem:[#allocation8 + $0x340] sm:$0xff]
    %v4296 = vld [vmem:[#allocation8 + $0x348] sm:$0xff]
    %v4297 = vld [vmem:[#allocation8 + $0x350] sm:$0xff]
    %v4298 = vld [vmem:[#allocation8 + $0x358] sm:$0xff]
    %v4299 = vld [vmem:[#allocation8 + $0x360] sm:$0xff]
    %v4300 = vld [vmem:[#allocation8 + $0x368] sm:$0xff]
    %v4301 = vld [vmem:[#allocation8 + $0x370] sm:$0xff]
    %v4302 = vld [vmem:[#allocation8 + $0x378] sm:$0xff]
    %v4303 = vld [vmem:[#allocation8 + $0x380] sm:$0xff]
    %v4304 = vld [vmem:[#allocation8 + $0x388] sm:$0xff]
    %v4305 = vld [vmem:[#allocation8 + $0x390] sm:$0xff]
    %v4306 = vld [vmem:[#allocation8 + $0x398] sm:$0xff]
    %v4307 = vld [vmem:[#allocation8 + $0x3a0] sm:$0xff]
    %v4308 = vld [vmem:[#allocation8 + $0x3a8] sm:$0xff]
    %v4309 = vld [vmem:[#allocation8 + $0x3b0] sm:$0xff]
    %v4310 = vld [vmem:[#allocation8 + $0x3b8] sm:$0xff]
    %v4311 = vld [vmem:[#allocation8 + $0x3c0] sm:$0xff]
    %v4312 = vld [vmem:[#allocation8 + $0x3c8] sm:$0xff]
    %v4313 = vld [vmem:[#allocation8 + $0x3d0] sm:$0xff]
    %v4314 = vld [vmem:[#allocation8 + $0x3d8] sm:$0xff]
    %v4315 = vld [vmem:[#allocation8 + $0x3e0] sm:$0xff]
    %v4316 = vld [vmem:[#allocation8 + $0x3e8] sm:$0xff]
    %v4317 = vld [vmem:[#allocation8 + $0x3f0] sm:$0xff]
    %v4318 = vld [vmem:[#allocation8 + $0x3f8] sm:$0xff]
    %v4319 = vld [vmem:[#allocation8 + $0x400] sm:$0xff]
    %v4320 = vld [vmem:[#allocation8 + $0x408] sm:$0xff]
    %v4321 = vld [vmem:[#allocation8 + $0x410] sm:$0xff]
    %v4322 = vld [vmem:[#allocation8 + $0x418] sm:$0xff]
    %v4323 = vld [vmem:[#allocation8 + $0x420] sm:$0xff]
    %v4324 = vld [vmem:[#allocation8 + $0x428] sm:$0xff]
    %v4325 = vld [vmem:[#allocation8 + $0x430] sm:$0xff]
    %v4326 = vld [vmem:[#allocation8 + $0x438] sm:$0xff]
    %v4327 = vld [vmem:[#allocation8 + $0x440] sm:$0xff]
    %v4328 = vld [vmem:[#allocation8 + $0x448] sm:$0xff]
    %v4329 = vld [vmem:[#allocation8 + $0x450] sm:$0xff]
    %v4330 = vld [vmem:[#allocation8 + $0x458] sm:$0xff]
    %v4331 = vld [vmem:[#allocation8 + $0x460] sm:$0xff]
    %v4332 = vld [vmem:[#allocation8 + $0x468] sm:$0xff]
    %v4333 = vld [vmem:[#allocation8 + $0x470] sm:$0xff]
    %v4334 = vld [vmem:[#allocation8 + $0x478] sm:$0xff]
    %v4335 = vld [vmem:[#allocation8 + $0x480] sm:$0xff]
    %v4336 = vld [vmem:[#allocation8 + $0x488] sm:$0xff]
    %v4337 = vld [vmem:[#allocation8 + $0x490] sm:$0xff]
    %v4338 = vld [vmem:[#allocation8 + $0x498] sm:$0xff]
    %v4339 = vld [vmem:[#allocation8 + $0x4a0] sm:$0xff]
    %v4340 = vld [vmem:[#allocation8 + $0x4a8] sm:$0xff]
    %v4341 = vld [vmem:[#allocation8 + $0x4b0] sm:$0xff]
    %v4342 = vld [vmem:[#allocation8 + $0x4b8] sm:$0xff]
    %v4343 = vld [vmem:[#allocation8 + $0x4c0] sm:$0xff]
    %v4344 = vld [vmem:[#allocation8 + $0x4c8] sm:$0xff]
    %v4345 = vld [vmem:[#allocation8 + $0x4d0] sm:$0xff]
    %v4346 = vld [vmem:[#allocation8 + $0x4d8] sm:$0xff]
    %v4347 = vld [vmem:[#allocation8 + $0x4e0] sm:$0xff]
    %v4348 = vld [vmem:[#allocation8 + $0x4e8] sm:$0xff]
    %v4349 = vld [vmem:[#allocation8 + $0x4f0] sm:$0xff]
    %v4350 = vld [vmem:[#allocation8 + $0x4f8] sm:$0xff]
    %v4351 = vld [vmem:[#allocation8 + $0x500] sm:$0xff]
    %v4352 = vld [vmem:[#allocation8 + $0x508] sm:$0xff]
    %v4353 = vld [vmem:[#allocation8 + $0x510] sm:$0xff]
    %v4354 = vld [vmem:[#allocation8 + $0x518] sm:$0xff]
    %v4355 = vld [vmem:[#allocation8 + $0x520] sm:$0xff]
    %v4356 = vld [vmem:[#allocation8 + $0x528] sm:$0xff]
    %v4357 = vld [vmem:[#allocation8 + $0x530] sm:$0xff]
    %v4358 = vld [vmem:[#allocation8 + $0x538] sm:$0xff]
    %v4359 = vld [vmem:[#allocation8 + $0x540] sm:$0xff]
    %v4360 = vld [vmem:[#allocation8 + $0x548] sm:$0xff]
    %v4361 = vld [vmem:[#allocation8 + $0x550] sm:$0xff]
    %v4362 = vld [vmem:[#allocation8 + $0x558] sm:$0xff]
    %v4363 = vld [vmem:[#allocation8 + $0x560] sm:$0xff]
    %v4364 = vld [vmem:[#allocation8 + $0x568] sm:$0xff]
    %v4365 = vld [vmem:[#allocation8 + $0x570] sm:$0xff]
    %v4366 = vld [vmem:[#allocation8 + $0x578] sm:$0xff]
    %v4367 = vld [vmem:[#allocation8 + $0x580] sm:$0xff]
    %v4368 = vld [vmem:[#allocation8 + $0x588] sm:$0xff]
    %v4369 = vld [vmem:[#allocation8 + $0x590] sm:$0xff]
    %v4370 = vld [vmem:[#allocation8 + $0x598] sm:$0xff]
    %v4371 = vld [vmem:[#allocation8 + $0x5a0] sm:$0xff]
    %v4372 = vld [vmem:[#allocation8 + $0x5a8] sm:$0xff]
    %v4373 = vld [vmem:[#allocation8 + $0x5b0] sm:$0xff]
    %v4374 = vld [vmem:[#allocation8 + $0x5b8] sm:$0xff]
    %v4375 = vld [vmem:[#allocation8 + $0x5c0] sm:$0xff]
    %v4376 = vld [vmem:[#allocation8 + $0x5c8] sm:$0xff]
    %v4377 = vld [vmem:[#allocation8 + $0x5d0] sm:$0xff]
    %v4378 = vld [vmem:[#allocation8 + $0x5d8] sm:$0xff]
    %v4379 = vld [vmem:[#allocation8 + $0x5e0] sm:$0xff]
    %v4380 = vld [vmem:[#allocation8 + $0x5e8] sm:$0xff]
    %v4381 = vld [vmem:[#allocation8 + $0x5f0] sm:$0xff]
    %v4382 = vld [vmem:[#allocation8 + $0x5f8] sm:$0xff]
    %v4383 = vld [vmem:[#allocation8 + $0x600] sm:$0xff]
    %v4384 = vld [vmem:[#allocation8 + $0x608] sm:$0xff]
    %v4385 = vld [vmem:[#allocation8 + $0x610] sm:$0xff]
    %v4386 = vld [vmem:[#allocation8 + $0x618] sm:$0xff]
    %v4387 = vld [vmem:[#allocation8 + $0x620] sm:$0xff]
    %v4388 = vld [vmem:[#allocation8 + $0x628] sm:$0xff]
    %v4389 = vld [vmem:[#allocation8 + $0x630] sm:$0xff]
    %v4390 = vld [vmem:[#allocation8 + $0x638] sm:$0xff]
    %v4391 = vld [vmem:[#allocation8 + $0x640] sm:$0xff]
    %v4392 = vld [vmem:[#allocation8 + $0x648] sm:$0xff]
    %v4393 = vld [vmem:[#allocation8 + $0x650] sm:$0xff]
    %v4394 = vld [vmem:[#allocation8 + $0x658] sm:$0xff]
    %v4395 = vld [vmem:[#allocation8 + $0x660] sm:$0xff]
    %v4396 = vld [vmem:[#allocation8 + $0x668] sm:$0xff]
    %v4397 = vld [vmem:[#allocation8 + $0x670] sm:$0xff]
    %v4398 = vld [vmem:[#allocation8 + $0x678] sm:$0xff]
    %v4399 = vld [vmem:[#allocation8 + $0x680] sm:$0xff]
    %v4400 = vld [vmem:[#allocation8 + $0x688] sm:$0xff]
    %v4401 = vld [vmem:[#allocation8 + $0x690] sm:$0xff]
    %v4402 = vld [vmem:[#allocation8 + $0x698] sm:$0xff]
    %v4403 = vld [vmem:[#allocation8 + $0x6a0] sm:$0xff]
    %v4404 = vld [vmem:[#allocation8 + $0x6a8] sm:$0xff]
    %v4405 = vld [vmem:[#allocation8 + $0x6b0] sm:$0xff]
    %v4406 = vld [vmem:[#allocation8 + $0x6b8] sm:$0xff]
    %v4407 = vld [vmem:[#allocation8 + $0x6c0] sm:$0xff]
    %v4408 = vld [vmem:[#allocation8 + $0x6c8] sm:$0xff]
    %v4409 = vld [vmem:[#allocation8 + $0x6d0] sm:$0xff]
    %v4410 = vld [vmem:[#allocation8 + $0x6d8] sm:$0xff]
    %v4411 = vld [vmem:[#allocation8 + $0x6e0] sm:$0xff]
    %v4412 = vld [vmem:[#allocation8 + $0x6e8] sm:$0xff]
    %v4413 = vld [vmem:[#allocation8 + $0x6f0] sm:$0xff]
    %v4414 = vld [vmem:[#allocation8 + $0x6f8] sm:$0xff]
    %v4415 = vld [vmem:[#allocation8 + $0x700] sm:$0xff]
    %v4416 = vld [vmem:[#allocation8 + $0x708] sm:$0xff]
    %v4417 = vld [vmem:[#allocation8 + $0x710] sm:$0xff]
    %v4418 = vld [vmem:[#allocation8 + $0x718] sm:$0xff]
    %v4419 = vld [vmem:[#allocation8 + $0x720] sm:$0xff]
    %v4420 = vld [vmem:[#allocation8 + $0x728] sm:$0xff]
    %v4421 = vld [vmem:[#allocation8 + $0x730] sm:$0xff]
    %v4422 = vld [vmem:[#allocation8 + $0x738] sm:$0xff]
    %v4423 = vld [vmem:[#allocation8 + $0x740] sm:$0xff]
    %v4424 = vld [vmem:[#allocation8 + $0x748] sm:$0xff]
    %v4425 = vld [vmem:[#allocation8 + $0x750] sm:$0xff]
    %v4426 = vld [vmem:[#allocation8 + $0x758] sm:$0xff]
    %v4427 = vld [vmem:[#allocation8 + $0x760] sm:$0xff]
    %v4428 = vld [vmem:[#allocation8 + $0x768] sm:$0xff]
    %v4429 = vld [vmem:[#allocation8 + $0x770] sm:$0xff]
    %v4430 = vld [vmem:[#allocation8 + $0x778] sm:$0xff]
    %v4431 = vld [vmem:[#allocation8 + $0x780] sm:$0xff]
    %v4432 = vld [vmem:[#allocation8 + $0x788] sm:$0xff]
    %v4433 = vld [vmem:[#allocation8 + $0x790] sm:$0xff]
    %v4434 = vld [vmem:[#allocation8 + $0x798] sm:$0xff]
    %v4435 = vld [vmem:[#allocation8 + $0x7a0] sm:$0xff]
    %v4436 = vld [vmem:[#allocation8 + $0x7a8] sm:$0xff]
    %v4437 = vld [vmem:[#allocation8 + $0x7b0] sm:$0xff]
    %v4438 = vld [vmem:[#allocation8 + $0x7b8] sm:$0xff]
    %v4439 = vld [vmem:[#allocation8 + $0x7c0] sm:$0xff]
    %v4440 = vld [vmem:[#allocation8 + $0x7c8] sm:$0xff]
    %v4441 = vld [vmem:[#allocation8 + $0x7d0] sm:$0xff]
    %v4442 = vld [vmem:[#allocation8 + $0x7d8] sm:$0xff]
    %v4443 = vld [vmem:[#allocation8 + $0x7e0] sm:$0xff]
    %v4444 = vld [vmem:[#allocation8 + $0x7e8] sm:$0xff]
    %v4445 = vld [vmem:[#allocation8 + $0x7f0] sm:$0xff]
    %v4446 = vld [vmem:[#allocation8 + $0x7f8] sm:$0xff]
    %v4447 = vld [vmem:[#allocation10] sm:$0xf]
    %v4449 = vlaneseq
    %v4450 = vshrl.u32 %v4449, 7
    %v4451 = vsub.s32 0, %v4450
    %v4452 = vrot.slane %v4447, %v4451
    %v4453 = vlaneseq
    %v4454 = vshrl.u32 %v4453, 7
    %v4455 = vsub.s32 1, %v4454
    %v4456 = vrot.slane %v4447, %v4455
    %v4457 = vlaneseq
    %v4458 = vshrl.u32 %v4457, 7
    %v4459 = vsub.s32 2, %v4458
    %v4460 = vrot.slane %v4447, %v4459
    %v4461 = vlaneseq
    %v4462 = vshrl.u32 %v4461, 7
    %v4463 = vsub.s32 3, %v4462
    %v4464 = vrot.slane %v4447, %v4463
    %v4725 = vunpack.c.l.b16 %v4191
    %v4726 = vunpack.c.h.b16 %v4191
    %v4727 = vunpack.c.l.b16 %v4192
    %v4728 = vunpack.c.h.b16 %v4192
    %v4729 = vunpack.c.l.b16 %v4193
    %v4730 = vunpack.c.h.b16 %v4193
    %v4731 = vunpack.c.l.b16 %v4194
    %v4732 = vunpack.c.h.b16 %v4194
    %v4733 = vunpack.c.l.b16 %v4195
    %v4734 = vunpack.c.h.b16 %v4195
    %v4735 = vunpack.c.l.b16 %v4196
    %v4736 = vunpack.c.h.b16 %v4196
    %v4737 = vunpack.c.l.b16 %v4197
    %v4738 = vunpack.c.h.b16 %v4197
    %v4739 = vunpack.c.l.b16 %v4198
    %v4740 = vunpack.c.h.b16 %v4198
    %v4741 = vunpack.c.l.b16 %v4199
    %v4742 = vunpack.c.h.b16 %v4199
    %v4743 = vunpack.c.l.b16 %v4200
    %v4744 = vunpack.c.h.b16 %v4200
    %v4745 = vunpack.c.l.b16 %v4201
    %v4746 = vunpack.c.h.b16 %v4201
    %v4747 = vunpack.c.l.b16 %v4202
    %v4748 = vunpack.c.h.b16 %v4202
    %v4749 = vunpack.c.l.b16 %v4203
    %v4750 = vunpack.c.h.b16 %v4203
    %v4751 = vunpack.c.l.b16 %v4204
    %v4752 = vunpack.c.h.b16 %v4204
    %v4753 = vunpack.c.l.b16 %v4205
    %v4754 = vunpack.c.h.b16 %v4205
    %v4755 = vunpack.c.l.b16 %v4206
    %v4756 = vunpack.c.h.b16 %v4206
    %v4757 = vunpack.c.l.b16 %v4207
    %v4758 = vunpack.c.h.b16 %v4207
    %v4759 = vunpack.c.l.b16 %v4208
    %v4760 = vunpack.c.h.b16 %v4208
    %v4761 = vunpack.c.l.b16 %v4209
    %v4762 = vunpack.c.h.b16 %v4209
    %v4763 = vunpack.c.l.b16 %v4210
    %v4764 = vunpack.c.h.b16 %v4210
    %v4765 = vunpack.c.l.b16 %v4211
    %v4766 = vunpack.c.h.b16 %v4211
    %v4767 = vunpack.c.l.b16 %v4212
    %v4768 = vunpack.c.h.b16 %v4212
    %v4769 = vunpack.c.l.b16 %v4213
    %v4770 = vunpack.c.h.b16 %v4213
    %v4771 = vunpack.c.l.b16 %v4214
    %v4772 = vunpack.c.h.b16 %v4214
    %v4773 = vunpack.c.l.b16 %v4215
    %v4774 = vunpack.c.h.b16 %v4215
    %v4775 = vunpack.c.l.b16 %v4216
    %v4776 = vunpack.c.h.b16 %v4216
    %v4777 = vunpack.c.l.b16 %v4217
    %v4778 = vunpack.c.h.b16 %v4217
    %v4779 = vunpack.c.l.b16 %v4218
    %v4780 = vunpack.c.h.b16 %v4218
    %v4781 = vunpack.c.l.b16 %v4219
    %v4782 = vunpack.c.h.b16 %v4219
    %v4783 = vunpack.c.l.b16 %v4220
    %v4784 = vunpack.c.h.b16 %v4220
    %v4785 = vunpack.c.l.b16 %v4221
    %v4786 = vunpack.c.h.b16 %v4221
    %v4787 = vunpack.c.l.b16 %v4222
    %v4788 = vunpack.c.h.b16 %v4222
    %v4789 = vunpack.c.l.b16 %v4223
    %v4790 = vunpack.c.h.b16 %v4223
    %v4791 = vunpack.c.l.b16 %v4224
    %v4792 = vunpack.c.h.b16 %v4224
    %v4793 = vunpack.c.l.b16 %v4225
    %v4794 = vunpack.c.h.b16 %v4225
    %v4795 = vunpack.c.l.b16 %v4226
    %v4796 = vunpack.c.h.b16 %v4226
    %v4797 = vunpack.c.l.b16 %v4227
    %v4798 = vunpack.c.h.b16 %v4227
    %v4799 = vunpack.c.l.b16 %v4228
    %v4800 = vunpack.c.h.b16 %v4228
    %v4801 = vunpack.c.l.b16 %v4229
    %v4802 = vunpack.c.h.b16 %v4229
    %v4803 = vunpack.c.l.b16 %v4230
    %v4804 = vunpack.c.h.b16 %v4230
    %v4805 = vunpack.c.l.b16 %v4231
    %v4806 = vunpack.c.h.b16 %v4231
    %v4807 = vunpack.c.l.b16 %v4232
    %v4808 = vunpack.c.h.b16 %v4232
    %v4809 = vunpack.c.l.b16 %v4233
    %v4810 = vunpack.c.h.b16 %v4233
    %v4811 = vunpack.c.l.b16 %v4234
    %v4812 = vunpack.c.h.b16 %v4234
    %v4813 = vunpack.c.l.b16 %v4235
    %v4814 = vunpack.c.h.b16 %v4235
    %v4815 = vunpack.c.l.b16 %v4236
    %v4816 = vunpack.c.h.b16 %v4236
    %v4817 = vunpack.c.l.b16 %v4237
    %v4818 = vunpack.c.h.b16 %v4237
    %v4819 = vunpack.c.l.b16 %v4238
    %v4820 = vunpack.c.h.b16 %v4238
    %v4821 = vunpack.c.l.b16 %v4239
    %v4822 = vunpack.c.h.b16 %v4239
    %v4823 = vunpack.c.l.b16 %v4240
    %v4824 = vunpack.c.h.b16 %v4240
    %v4825 = vunpack.c.l.b16 %v4241
    %v4826 = vunpack.c.h.b16 %v4241
    %v4827 = vunpack.c.l.b16 %v4242
    %v4828 = vunpack.c.h.b16 %v4242
    %v4829 = vunpack.c.l.b16 %v4243
    %v4830 = vunpack.c.h.b16 %v4243
    %v4831 = vunpack.c.l.b16 %v4244
    %v4832 = vunpack.c.h.b16 %v4244
    %v4833 = vunpack.c.l.b16 %v4245
    %v4834 = vunpack.c.h.b16 %v4245
    %v4835 = vunpack.c.l.b16 %v4246
    %v4836 = vunpack.c.h.b16 %v4246
    %v4837 = vunpack.c.l.b16 %v4247
    %v4838 = vunpack.c.h.b16 %v4247
    %v4839 = vunpack.c.l.b16 %v4248
    %v4840 = vunpack.c.h.b16 %v4248
    %v4841 = vunpack.c.l.b16 %v4249
    %v4842 = vunpack.c.h.b16 %v4249
    %v4843 = vunpack.c.l.b16 %v4250
    %v4844 = vunpack.c.h.b16 %v4250
    %v4845 = vunpack.c.l.b16 %v4251
    %v4846 = vunpack.c.h.b16 %v4251
    %v4847 = vunpack.c.l.b16 %v4252
    %v4848 = vunpack.c.h.b16 %v4252
    %v4849 = vunpack.c.l.b16 %v4253
    %v4850 = vunpack.c.h.b16 %v4253
    %v4851 = vunpack.c.l.b16 %v4254
    %v4852 = vunpack.c.h.b16 %v4254
    %v4853 = vunpack.c.l.b16 %v4255
    %v4854 = vunpack.c.h.b16 %v4255
    %v4855 = vunpack.c.l.b16 %v4256
    %v4856 = vunpack.c.h.b16 %v4256
    %v4857 = vunpack.c.l.b16 %v4257
    %v4858 = vunpack.c.h.b16 %v4257
    %v4859 = vunpack.c.l.b16 %v4258
    %v4860 = vunpack.c.h.b16 %v4258
    %v4861 = vunpack.c.l.b16 %v4259
    %v4862 = vunpack.c.h.b16 %v4259
    %v4863 = vunpack.c.l.b16 %v4260
    %v4864 = vunpack.c.h.b16 %v4260
    %v4865 = vunpack.c.l.b16 %v4261
    %v4866 = vunpack.c.h.b16 %v4261
    %v4867 = vunpack.c.l.b16 %v4262
    %v4868 = vunpack.c.h.b16 %v4262
    %v4869 = vunpack.c.l.b16 %v4263
    %v4870 = vunpack.c.h.b16 %v4263
    %v4871 = vunpack.c.l.b16 %v4264
    %v4872 = vunpack.c.h.b16 %v4264
    %v4873 = vunpack.c.l.b16 %v4265
    %v4874 = vunpack.c.h.b16 %v4265
    %v4875 = vunpack.c.l.b16 %v4266
    %v4876 = vunpack.c.h.b16 %v4266
    %v4877 = vunpack.c.l.b16 %v4267
    %v4878 = vunpack.c.h.b16 %v4267
    %v4879 = vunpack.c.l.b16 %v4268
    %v4880 = vunpack.c.h.b16 %v4268
    %v4881 = vunpack.c.l.b16 %v4269
    %v4882 = vunpack.c.h.b16 %v4269
    %v4883 = vunpack.c.l.b16 %v4270
    %v4884 = vunpack.c.h.b16 %v4270
    %v4885 = vunpack.c.l.b16 %v4271
    %v4886 = vunpack.c.h.b16 %v4271
    %v4887 = vunpack.c.l.b16 %v4272
    %v4888 = vunpack.c.h.b16 %v4272
    %v4889 = vunpack.c.l.b16 %v4273
    %v4890 = vunpack.c.h.b16 %v4273
    %v4891 = vunpack.c.l.b16 %v4274
    %v4892 = vunpack.c.h.b16 %v4274
    %v4893 = vunpack.c.l.b16 %v4275
    %v4894 = vunpack.c.h.b16 %v4275
    %v4895 = vunpack.c.l.b16 %v4276
    %v4896 = vunpack.c.h.b16 %v4276
    %v4897 = vunpack.c.l.b16 %v4277
    %v4898 = vunpack.c.h.b16 %v4277
    %v4899 = vunpack.c.l.b16 %v4278
    %v4900 = vunpack.c.h.b16 %v4278
    %v4901 = vunpack.c.l.b16 %v4279
    %v4902 = vunpack.c.h.b16 %v4279
    %v4903 = vunpack.c.l.b16 %v4280
    %v4904 = vunpack.c.h.b16 %v4280
    %v4905 = vunpack.c.l.b16 %v4281
    %v4906 = vunpack.c.h.b16 %v4281
    %v4907 = vunpack.c.l.b16 %v4282
    %v4908 = vunpack.c.h.b16 %v4282
    %v4909 = vunpack.c.l.b16 %v4283
    %v4910 = vunpack.c.h.b16 %v4283
    %v4911 = vunpack.c.l.b16 %v4284
    %v4912 = vunpack.c.h.b16 %v4284
    %v4913 = vunpack.c.l.b16 %v4285
    %v4914 = vunpack.c.h.b16 %v4285
    %v4915 = vunpack.c.l.b16 %v4286
    %v4916 = vunpack.c.h.b16 %v4286
    %v4917 = vunpack.c.l.b16 %v4287
    %v4918 = vunpack.c.h.b16 %v4287
    %v4919 = vunpack.c.l.b16 %v4288
    %v4920 = vunpack.c.h.b16 %v4288
    %v4921 = vunpack.c.l.b16 %v4289
    %v4922 = vunpack.c.h.b16 %v4289
    %v4923 = vunpack.c.l.b16 %v4290
    %v4924 = vunpack.c.h.b16 %v4290
    %v4925 = vunpack.c.l.b16 %v4291
    %v4926 = vunpack.c.h.b16 %v4291
    %v4927 = vunpack.c.l.b16 %v4292
    %v4928 = vunpack.c.h.b16 %v4292
    %v4929 = vunpack.c.l.b16 %v4293
    %v4930 = vunpack.c.h.b16 %v4293
    %v4931 = vunpack.c.l.b16 %v4294
    %v4932 = vunpack.c.h.b16 %v4294
    %v4933 = vunpack.c.l.b16 %v4295
    %v4934 = vunpack.c.h.b16 %v4295
    %v4935 = vunpack.c.l.b16 %v4296
    %v4936 = vunpack.c.h.b16 %v4296
    %v4937 = vunpack.c.l.b16 %v4297
    %v4938 = vunpack.c.h.b16 %v4297
    %v4939 = vunpack.c.l.b16 %v4298
    %v4940 = vunpack.c.h.b16 %v4298
    %v4941 = vunpack.c.l.b16 %v4299
    %v4942 = vunpack.c.h.b16 %v4299
    %v4943 = vunpack.c.l.b16 %v4300
    %v4944 = vunpack.c.h.b16 %v4300
    %v4945 = vunpack.c.l.b16 %v4301
    %v4946 = vunpack.c.h.b16 %v4301
    %v4947 = vunpack.c.l.b16 %v4302
    %v4948 = vunpack.c.h.b16 %v4302
    %v4949 = vunpack.c.l.b16 %v4303
    %v4950 = vunpack.c.h.b16 %v4303
    %v4951 = vunpack.c.l.b16 %v4304
    %v4952 = vunpack.c.h.b16 %v4304
    %v4953 = vunpack.c.l.b16 %v4305
    %v4954 = vunpack.c.h.b16 %v4305
    %v4955 = vunpack.c.l.b16 %v4306
    %v4956 = vunpack.c.h.b16 %v4306
    %v4957 = vunpack.c.l.b16 %v4307
    %v4958 = vunpack.c.h.b16 %v4307
    %v4959 = vunpack.c.l.b16 %v4308
    %v4960 = vunpack.c.h.b16 %v4308
    %v4961 = vunpack.c.l.b16 %v4309
    %v4962 = vunpack.c.h.b16 %v4309
    %v4963 = vunpack.c.l.b16 %v4310
    %v4964 = vunpack.c.h.b16 %v4310
    %v4965 = vunpack.c.l.b16 %v4311
    %v4966 = vunpack.c.h.b16 %v4311
    %v4967 = vunpack.c.l.b16 %v4312
    %v4968 = vunpack.c.h.b16 %v4312
    %v4969 = vunpack.c.l.b16 %v4313
    %v4970 = vunpack.c.h.b16 %v4313
    %v4971 = vunpack.c.l.b16 %v4314
    %v4972 = vunpack.c.h.b16 %v4314
    %v4973 = vunpack.c.l.b16 %v4315
    %v4974 = vunpack.c.h.b16 %v4315
    %v4975 = vunpack.c.l.b16 %v4316
    %v4976 = vunpack.c.h.b16 %v4316
    %v4977 = vunpack.c.l.b16 %v4317
    %v4978 = vunpack.c.h.b16 %v4317
    %v4979 = vunpack.c.l.b16 %v4318
    %v4980 = vunpack.c.h.b16 %v4318
    %v4981 = vunpack.c.l.b16 %v4319
    %v4982 = vunpack.c.h.b16 %v4319
    %v4983 = vunpack.c.l.b16 %v4320
    %v4984 = vunpack.c.h.b16 %v4320
    %v4985 = vunpack.c.l.b16 %v4321
    %v4986 = vunpack.c.h.b16 %v4321
    %v4987 = vunpack.c.l.b16 %v4322
    %v4988 = vunpack.c.h.b16 %v4322
    %v4989 = vunpack.c.l.b16 %v4323
    %v4990 = vunpack.c.h.b16 %v4323
    %v4991 = vunpack.c.l.b16 %v4324
    %v4992 = vunpack.c.h.b16 %v4324
    %v4993 = vunpack.c.l.b16 %v4325
    %v4994 = vunpack.c.h.b16 %v4325
    %v4995 = vunpack.c.l.b16 %v4326
    %v4996 = vunpack.c.h.b16 %v4326
    %v4997 = vunpack.c.l.b16 %v4327
    %v4998 = vunpack.c.h.b16 %v4327
    %v4999 = vunpack.c.l.b16 %v4328
    %v5000 = vunpack.c.h.b16 %v4328
    %v5001 = vunpack.c.l.b16 %v4329
    %v5002 = vunpack.c.h.b16 %v4329
    %v5003 = vunpack.c.l.b16 %v4330
    %v5004 = vunpack.c.h.b16 %v4330
    %v5005 = vunpack.c.l.b16 %v4331
    %v5006 = vunpack.c.h.b16 %v4331
    %v5007 = vunpack.c.l.b16 %v4332
    %v5008 = vunpack.c.h.b16 %v4332
    %v5009 = vunpack.c.l.b16 %v4333
    %v5010 = vunpack.c.h.b16 %v4333
    %v5011 = vunpack.c.l.b16 %v4334
    %v5012 = vunpack.c.h.b16 %v4334
    %v5013 = vunpack.c.l.b16 %v4335
    %v5014 = vunpack.c.h.b16 %v4335
    %v5015 = vunpack.c.l.b16 %v4336
    %v5016 = vunpack.c.h.b16 %v4336
    %v5017 = vunpack.c.l.b16 %v4337
    %v5018 = vunpack.c.h.b16 %v4337
    %v5019 = vunpack.c.l.b16 %v4338
    %v5020 = vunpack.c.h.b16 %v4338
    %v5021 = vunpack.c.l.b16 %v4339
    %v5022 = vunpack.c.h.b16 %v4339
    %v5023 = vunpack.c.l.b16 %v4340
    %v5024 = vunpack.c.h.b16 %v4340
    %v5025 = vunpack.c.l.b16 %v4341
    %v5026 = vunpack.c.h.b16 %v4341
    %v5027 = vunpack.c.l.b16 %v4342
    %v5028 = vunpack.c.h.b16 %v4342
    %v5029 = vunpack.c.l.b16 %v4343
    %v5030 = vunpack.c.h.b16 %v4343
    %v5031 = vunpack.c.l.b16 %v4344
    %v5032 = vunpack.c.h.b16 %v4344
    %v5033 = vunpack.c.l.b16 %v4345
    %v5034 = vunpack.c.h.b16 %v4345
    %v5035 = vunpack.c.l.b16 %v4346
    %v5036 = vunpack.c.h.b16 %v4346
    %v5037 = vunpack.c.l.b16 %v4347
    %v5038 = vunpack.c.h.b16 %v4347
    %v5039 = vunpack.c.l.b16 %v4348
    %v5040 = vunpack.c.h.b16 %v4348
    %v5041 = vunpack.c.l.b16 %v4349
    %v5042 = vunpack.c.h.b16 %v4349
    %v5043 = vunpack.c.l.b16 %v4350
    %v5044 = vunpack.c.h.b16 %v4350
    %v5045 = vunpack.c.l.b16 %v4351
    %v5046 = vunpack.c.h.b16 %v4351
    %v5047 = vunpack.c.l.b16 %v4352
    %v5048 = vunpack.c.h.b16 %v4352
    %v5049 = vunpack.c.l.b16 %v4353
    %v5050 = vunpack.c.h.b16 %v4353
    %v5051 = vunpack.c.l.b16 %v4354
    %v5052 = vunpack.c.h.b16 %v4354
    %v5053 = vunpack.c.l.b16 %v4355
    %v5054 = vunpack.c.h.b16 %v4355
    %v5055 = vunpack.c.l.b16 %v4356
    %v5056 = vunpack.c.h.b16 %v4356
    %v5057 = vunpack.c.l.b16 %v4357
    %v5058 = vunpack.c.h.b16 %v4357
    %v5059 = vunpack.c.l.b16 %v4358
    %v5060 = vunpack.c.h.b16 %v4358
    %v5061 = vunpack.c.l.b16 %v4359
    %v5062 = vunpack.c.h.b16 %v4359
    %v5063 = vunpack.c.l.b16 %v4360
    %v5064 = vunpack.c.h.b16 %v4360
    %v5065 = vunpack.c.l.b16 %v4361
    %v5066 = vunpack.c.h.b16 %v4361
    %v5067 = vunpack.c.l.b16 %v4362
    %v5068 = vunpack.c.h.b16 %v4362
    %v5069 = vunpack.c.l.b16 %v4363
    %v5070 = vunpack.c.h.b16 %v4363
    %v5071 = vunpack.c.l.b16 %v4364
    %v5072 = vunpack.c.h.b16 %v4364
    %v5073 = vunpack.c.l.b16 %v4365
    %v5074 = vunpack.c.h.b16 %v4365
    %v5075 = vunpack.c.l.b16 %v4366
    %v5076 = vunpack.c.h.b16 %v4366
    %v5077 = vunpack.c.l.b16 %v4367
    %v5078 = vunpack.c.h.b16 %v4367
    %v5079 = vunpack.c.l.b16 %v4368
    %v5080 = vunpack.c.h.b16 %v4368
    %v5081 = vunpack.c.l.b16 %v4369
    %v5082 = vunpack.c.h.b16 %v4369
    %v5083 = vunpack.c.l.b16 %v4370
    %v5084 = vunpack.c.h.b16 %v4370
    %v5085 = vunpack.c.l.b16 %v4371
    %v5086 = vunpack.c.h.b16 %v4371
    %v5087 = vunpack.c.l.b16 %v4372
    %v5088 = vunpack.c.h.b16 %v4372
    %v5089 = vunpack.c.l.b16 %v4373
    %v5090 = vunpack.c.h.b16 %v4373
    %v5091 = vunpack.c.l.b16 %v4374
    %v5092 = vunpack.c.h.b16 %v4374
    %v5093 = vunpack.c.l.b16 %v4375
    %v5094 = vunpack.c.h.b16 %v4375
    %v5095 = vunpack.c.l.b16 %v4376
    %v5096 = vunpack.c.h.b16 %v4376
    %v5097 = vunpack.c.l.b16 %v4377
    %v5098 = vunpack.c.h.b16 %v4377
    %v5099 = vunpack.c.l.b16 %v4378
    %v5100 = vunpack.c.h.b16 %v4378
    %v5101 = vunpack.c.l.b16 %v4379
    %v5102 = vunpack.c.h.b16 %v4379
    %v5103 = vunpack.c.l.b16 %v4380
    %v5104 = vunpack.c.h.b16 %v4380
    %v5105 = vunpack.c.l.b16 %v4381
    %v5106 = vunpack.c.h.b16 %v4381
    %v5107 = vunpack.c.l.b16 %v4382
    %v5108 = vunpack.c.h.b16 %v4382
    %v5109 = vunpack.c.l.b16 %v4383
    %v5110 = vunpack.c.h.b16 %v4383
    %v5111 = vunpack.c.l.b16 %v4384
    %v5112 = vunpack.c.h.b16 %v4384
    %v5113 = vunpack.c.l.b16 %v4385
    %v5114 = vunpack.c.h.b16 %v4385
    %v5115 = vunpack.c.l.b16 %v4386
    %v5116 = vunpack.c.h.b16 %v4386
    %v5117 = vunpack.c.l.b16 %v4387
    %v5118 = vunpack.c.h.b16 %v4387
    %v5119 = vunpack.c.l.b16 %v4388
    %v5120 = vunpack.c.h.b16 %v4388
    %v5121 = vunpack.c.l.b16 %v4389
    %v5122 = vunpack.c.h.b16 %v4389
    %v5123 = vunpack.c.l.b16 %v4390
    %v5124 = vunpack.c.h.b16 %v4390
    %v5125 = vunpack.c.l.b16 %v4391
    %v5126 = vunpack.c.h.b16 %v4391
    %v5127 = vunpack.c.l.b16 %v4392
    %v5128 = vunpack.c.h.b16 %v4392
    %v5129 = vunpack.c.l.b16 %v4393
    %v5130 = vunpack.c.h.b16 %v4393
    %v5131 = vunpack.c.l.b16 %v4394
    %v5132 = vunpack.c.h.b16 %v4394
    %v5133 = vunpack.c.l.b16 %v4395
    %v5134 = vunpack.c.h.b16 %v4395
    %v5135 = vunpack.c.l.b16 %v4396
    %v5136 = vunpack.c.h.b16 %v4396
    %v5137 = vunpack.c.l.b16 %v4397
    %v5138 = vunpack.c.h.b16 %v4397
    %v5139 = vunpack.c.l.b16 %v4398
    %v5140 = vunpack.c.h.b16 %v4398
    %v5141 = vunpack.c.l.b16 %v4399
    %v5142 = vunpack.c.h.b16 %v4399
    %v5143 = vunpack.c.l.b16 %v4400
    %v5144 = vunpack.c.h.b16 %v4400
    %v5145 = vunpack.c.l.b16 %v4401
    %v5146 = vunpack.c.h.b16 %v4401
    %v5147 = vunpack.c.l.b16 %v4402
    %v5148 = vunpack.c.h.b16 %v4402
    %v5149 = vunpack.c.l.b16 %v4403
    %v5150 = vunpack.c.h.b16 %v4403
    %v5151 = vunpack.c.l.b16 %v4404
    %v5152 = vunpack.c.h.b16 %v4404
    %v5153 = vunpack.c.l.b16 %v4405
    %v5154 = vunpack.c.h.b16 %v4405
    %v5155 = vunpack.c.l.b16 %v4406
    %v5156 = vunpack.c.h.b16 %v4406
    %v5157 = vunpack.c.l.b16 %v4407
    %v5158 = vunpack.c.h.b16 %v4407
    %v5159 = vunpack.c.l.b16 %v4408
    %v5160 = vunpack.c.h.b16 %v4408
    %v5161 = vunpack.c.l.b16 %v4409
    %v5162 = vunpack.c.h.b16 %v4409
    %v5163 = vunpack.c.l.b16 %v4410
    %v5164 = vunpack.c.h.b16 %v4410
    %v5165 = vunpack.c.l.b16 %v4411
    %v5166 = vunpack.c.h.b16 %v4411
    %v5167 = vunpack.c.l.b16 %v4412
    %v5168 = vunpack.c.h.b16 %v4412
    %v5169 = vunpack.c.l.b16 %v4413
    %v5170 = vunpack.c.h.b16 %v4413
    %v5171 = vunpack.c.l.b16 %v4414
    %v5172 = vunpack.c.h.b16 %v4414
    %v5173 = vunpack.c.l.b16 %v4415
    %v5174 = vunpack.c.h.b16 %v4415
    %v5175 = vunpack.c.l.b16 %v4416
    %v5176 = vunpack.c.h.b16 %v4416
    %v5177 = vunpack.c.l.b16 %v4417
    %v5178 = vunpack.c.h.b16 %v4417
    %v5179 = vunpack.c.l.b16 %v4418
    %v5180 = vunpack.c.h.b16 %v4418
    %v5181 = vunpack.c.l.b16 %v4419
    %v5182 = vunpack.c.h.b16 %v4419
    %v5183 = vunpack.c.l.b16 %v4420
    %v5184 = vunpack.c.h.b16 %v4420
    %v5185 = vunpack.c.l.b16 %v4421
    %v5186 = vunpack.c.h.b16 %v4421
    %v5187 = vunpack.c.l.b16 %v4422
    %v5188 = vunpack.c.h.b16 %v4422
    %v5189 = vunpack.c.l.b16 %v4423
    %v5190 = vunpack.c.h.b16 %v4423
    %v5191 = vunpack.c.l.b16 %v4424
    %v5192 = vunpack.c.h.b16 %v4424
    %v5193 = vunpack.c.l.b16 %v4425
    %v5194 = vunpack.c.h.b16 %v4425
    %v5195 = vunpack.c.l.b16 %v4426
    %v5196 = vunpack.c.h.b16 %v4426
    %v5197 = vunpack.c.l.b16 %v4427
    %v5198 = vunpack.c.h.b16 %v4427
    %v5199 = vunpack.c.l.b16 %v4428
    %v5200 = vunpack.c.h.b16 %v4428
    %v5201 = vunpack.c.l.b16 %v4429
    %v5202 = vunpack.c.h.b16 %v4429
    %v5203 = vunpack.c.l.b16 %v4430
    %v5204 = vunpack.c.h.b16 %v4430
    %v5205 = vunpack.c.l.b16 %v4431
    %v5206 = vunpack.c.h.b16 %v4431
    %v5207 = vunpack.c.l.b16 %v4432
    %v5208 = vunpack.c.h.b16 %v4432
    %v5209 = vunpack.c.l.b16 %v4433
    %v5210 = vunpack.c.h.b16 %v4433
    %v5211 = vunpack.c.l.b16 %v4434
    %v5212 = vunpack.c.h.b16 %v4434
    %v5213 = vunpack.c.l.b16 %v4435
    %v5214 = vunpack.c.h.b16 %v4435
    %v5215 = vunpack.c.l.b16 %v4436
    %v5216 = vunpack.c.h.b16 %v4436
    %v5217 = vunpack.c.l.b16 %v4437
    %v5218 = vunpack.c.h.b16 %v4437
    %v5219 = vunpack.c.l.b16 %v4438
    %v5220 = vunpack.c.h.b16 %v4438
    %v5221 = vunpack.c.l.b16 %v4439
    %v5222 = vunpack.c.h.b16 %v4439
    %v5223 = vunpack.c.l.b16 %v4440
    %v5224 = vunpack.c.h.b16 %v4440
    %v5225 = vunpack.c.l.b16 %v4441
    %v5226 = vunpack.c.h.b16 %v4441
    %v5227 = vunpack.c.l.b16 %v4442
    %v5228 = vunpack.c.h.b16 %v4442
    %v5229 = vunpack.c.l.b16 %v4443
    %v5230 = vunpack.c.h.b16 %v4443
    %v5231 = vunpack.c.l.b16 %v4444
    %v5232 = vunpack.c.h.b16 %v4444
    %v5233 = vunpack.c.l.b16 %v4445
    %v5234 = vunpack.c.h.b16 %v4445
    %v5235 = vunpack.c.l.b16 %v4446
    %v5236 = vunpack.c.h.b16 %v4446
    %v5237 = vpack.c.b16 %v4729, %v4725
    %v5238 = vpack.c.b16 %v4730, %v4726
    %v5239 = vpack.c.b16 %v4731, %v4727
    %v5240 = vpack.c.b16 %v4732, %v4728
    %v5241 = vpack.c.b16 %v4737, %v4733
    %v5242 = vpack.c.b16 %v4738, %v4734
    %v5243 = vpack.c.b16 %v4739, %v4735
    %v5244 = vpack.c.b16 %v4740, %v4736
    %v5245 = vpack.c.b16 %v4745, %v4741
    %v5246 = vpack.c.b16 %v4746, %v4742
    %v5247 = vpack.c.b16 %v4747, %v4743
    %v5248 = vpack.c.b16 %v4748, %v4744
    %v5249 = vpack.c.b16 %v4753, %v4749
    %v5250 = vpack.c.b16 %v4754, %v4750
    %v5251 = vpack.c.b16 %v4755, %v4751
    %v5252 = vpack.c.b16 %v4756, %v4752
    %v5253 = vpack.c.b16 %v4761, %v4757
    %v5254 = vpack.c.b16 %v4762, %v4758
    %v5255 = vpack.c.b16 %v4763, %v4759
    %v5256 = vpack.c.b16 %v4764, %v4760
    %v5257 = vpack.c.b16 %v4769, %v4765
    %v5258 = vpack.c.b16 %v4770, %v4766
    %v5259 = vpack.c.b16 %v4771, %v4767
    %v5260 = vpack.c.b16 %v4772, %v4768
    %v5261 = vpack.c.b16 %v4777, %v4773
    %v5262 = vpack.c.b16 %v4778, %v4774
    %v5263 = vpack.c.b16 %v4779, %v4775
    %v5264 = vpack.c.b16 %v4780, %v4776
    %v5265 = vpack.c.b16 %v4785, %v4781
    %v5266 = vpack.c.b16 %v4786, %v4782
    %v5267 = vpack.c.b16 %v4787, %v4783
    %v5268 = vpack.c.b16 %v4788, %v4784
    %v5269 = vpack.c.b16 %v4793, %v4789
    %v5270 = vpack.c.b16 %v4794, %v4790
    %v5271 = vpack.c.b16 %v4795, %v4791
    %v5272 = vpack.c.b16 %v4796, %v4792
    %v5273 = vpack.c.b16 %v4801, %v4797
    %v5274 = vpack.c.b16 %v4802, %v4798
    %v5275 = vpack.c.b16 %v4803, %v4799
    %v5276 = vpack.c.b16 %v4804, %v4800
    %v5277 = vpack.c.b16 %v4809, %v4805
    %v5278 = vpack.c.b16 %v4810, %v4806
    %v5279 = vpack.c.b16 %v4811, %v4807
    %v5280 = vpack.c.b16 %v4812, %v4808
    %v5281 = vpack.c.b16 %v4817, %v4813
    %v5282 = vpack.c.b16 %v4818, %v4814
    %v5283 = vpack.c.b16 %v4819, %v4815
    %v5284 = vpack.c.b16 %v4820, %v4816
    %v5285 = vpack.c.b16 %v4825, %v4821
    %v5286 = vpack.c.b16 %v4826, %v4822
    %v5287 = vpack.c.b16 %v4827, %v4823
    %v5288 = vpack.c.b16 %v4828, %v4824
    %v5289 = vpack.c.b16 %v4833, %v4829
    %v5290 = vpack.c.b16 %v4834, %v4830
    %v5291 = vpack.c.b16 %v4835, %v4831
    %v5292 = vpack.c.b16 %v4836, %v4832
    %v5293 = vpack.c.b16 %v4841, %v4837
    %v5294 = vpack.c.b16 %v4842, %v4838
    %v5295 = vpack.c.b16 %v4843, %v4839
    %v5296 = vpack.c.b16 %v4844, %v4840
    %v5297 = vpack.c.b16 %v4849, %v4845
    %v5298 = vpack.c.b16 %v4850, %v4846
    %v5299 = vpack.c.b16 %v4851, %v4847
    %v5300 = vpack.c.b16 %v4852, %v4848
    %v5301 = vpack.c.b16 %v4857, %v4853
    %v5302 = vpack.c.b16 %v4858, %v4854
    %v5303 = vpack.c.b16 %v4859, %v4855
    %v5304 = vpack.c.b16 %v4860, %v4856
    %v5305 = vpack.c.b16 %v4865, %v4861
    %v5306 = vpack.c.b16 %v4866, %v4862
    %v5307 = vpack.c.b16 %v4867, %v4863
    %v5308 = vpack.c.b16 %v4868, %v4864
    %v5309 = vpack.c.b16 %v4873, %v4869
    %v5310 = vpack.c.b16 %v4874, %v4870
    %v5311 = vpack.c.b16 %v4875, %v4871
    %v5312 = vpack.c.b16 %v4876, %v4872
    %v5313 = vpack.c.b16 %v4881, %v4877
    %v5314 = vpack.c.b16 %v4882, %v4878
    %v5315 = vpack.c.b16 %v4883, %v4879
    %v5316 = vpack.c.b16 %v4884, %v4880
    %v5317 = vpack.c.b16 %v4889, %v4885
    %v5318 = vpack.c.b16 %v4890, %v4886
    %v5319 = vpack.c.b16 %v4891, %v4887
    %v5320 = vpack.c.b16 %v4892, %v4888
    %v5321 = vpack.c.b16 %v4897, %v4893
    %v5322 = vpack.c.b16 %v4898, %v4894
    %v5323 = vpack.c.b16 %v4899, %v4895
    %v5324 = vpack.c.b16 %v4900, %v4896
    %v5325 = vpack.c.b16 %v4905, %v4901
    %v5326 = vpack.c.b16 %v4906, %v4902
    %v5327 = vpack.c.b16 %v4907, %v4903
    %v5328 = vpack.c.b16 %v4908, %v4904
    %v5329 = vpack.c.b16 %v4913, %v4909
    %v5330 = vpack.c.b16 %v4914, %v4910
    %v5331 = vpack.c.b16 %v4915, %v4911
    %v5332 = vpack.c.b16 %v4916, %v4912
    %v5333 = vpack.c.b16 %v4921, %v4917
    %v5334 = vpack.c.b16 %v4922, %v4918
    %v5335 = vpack.c.b16 %v4923, %v4919
    %v5336 = vpack.c.b16 %v4924, %v4920
    %v5337 = vpack.c.b16 %v4929, %v4925
    %v5338 = vpack.c.b16 %v4930, %v4926
    %v5339 = vpack.c.b16 %v4931, %v4927
    %v5340 = vpack.c.b16 %v4932, %v4928
    %v5341 = vpack.c.b16 %v4937, %v4933
    %v5342 = vpack.c.b16 %v4938, %v4934
    %v5343 = vpack.c.b16 %v4939, %v4935
    %v5344 = vpack.c.b16 %v4940, %v4936
    %v5345 = vpack.c.b16 %v4945, %v4941
    %v5346 = vpack.c.b16 %v4946, %v4942
    %v5347 = vpack.c.b16 %v4947, %v4943
    %v5348 = vpack.c.b16 %v4948, %v4944
    %v5349 = vpack.c.b16 %v4953, %v4949
    %v5350 = vpack.c.b16 %v4954, %v4950
    %v5351 = vpack.c.b16 %v4955, %v4951
    %v5352 = vpack.c.b16 %v4956, %v4952
    %v5353 = vpack.c.b16 %v4961, %v4957
    %v5354 = vpack.c.b16 %v4962, %v4958
    %v5355 = vpack.c.b16 %v4963, %v4959
    %v5356 = vpack.c.b16 %v4964, %v4960
    %v5357 = vpack.c.b16 %v4969, %v4965
    %v5358 = vpack.c.b16 %v4970, %v4966
    %v5359 = vpack.c.b16 %v4971, %v4967
    %v5360 = vpack.c.b16 %v4972, %v4968
    %v5361 = vpack.c.b16 %v4977, %v4973
    %v5362 = vpack.c.b16 %v4978, %v4974
    %v5363 = vpack.c.b16 %v4979, %v4975
    %v5364 = vpack.c.b16 %v4980, %v4976
    %v5365 = vpack.c.b16 %v4985, %v4981
    %v5366 = vpack.c.b16 %v4986, %v4982
    %v5367 = vpack.c.b16 %v4987, %v4983
    %v5368 = vpack.c.b16 %v4988, %v4984
    %v5369 = vpack.c.b16 %v4993, %v4989
    %v5370 = vpack.c.b16 %v4994, %v4990
    %v5371 = vpack.c.b16 %v4995, %v4991
    %v5372 = vpack.c.b16 %v4996, %v4992
    %v5373 = vpack.c.b16 %v5001, %v4997
    %v5374 = vpack.c.b16 %v5002, %v4998
    %v5375 = vpack.c.b16 %v5003, %v4999
    %v5376 = vpack.c.b16 %v5004, %v5000
    %v5377 = vpack.c.b16 %v5009, %v5005
    %v5378 = vpack.c.b16 %v5010, %v5006
    %v5379 = vpack.c.b16 %v5011, %v5007
    %v5380 = vpack.c.b16 %v5012, %v5008
    %v5381 = vpack.c.b16 %v5017, %v5013
    %v5382 = vpack.c.b16 %v5018, %v5014
    %v5383 = vpack.c.b16 %v5019, %v5015
    %v5384 = vpack.c.b16 %v5020, %v5016
    %v5385 = vpack.c.b16 %v5025, %v5021
    %v5386 = vpack.c.b16 %v5026, %v5022
    %v5387 = vpack.c.b16 %v5027, %v5023
    %v5388 = vpack.c.b16 %v5028, %v5024
    %v5389 = vpack.c.b16 %v5033, %v5029
    %v5390 = vpack.c.b16 %v5034, %v5030
    %v5391 = vpack.c.b16 %v5035, %v5031
    %v5392 = vpack.c.b16 %v5036, %v5032
    %v5393 = vpack.c.b16 %v5041, %v5037
    %v5394 = vpack.c.b16 %v5042, %v5038
    %v5395 = vpack.c.b16 %v5043, %v5039
    %v5396 = vpack.c.b16 %v5044, %v5040
    %v5397 = vpack.c.b16 %v5049, %v5045
    %v5398 = vpack.c.b16 %v5050, %v5046
    %v5399 = vpack.c.b16 %v5051, %v5047
    %v5400 = vpack.c.b16 %v5052, %v5048
    %v5401 = vpack.c.b16 %v5057, %v5053
    %v5402 = vpack.c.b16 %v5058, %v5054
    %v5403 = vpack.c.b16 %v5059, %v5055
    %v5404 = vpack.c.b16 %v5060, %v5056
    %v5405 = vpack.c.b16 %v5065, %v5061
    %v5406 = vpack.c.b16 %v5066, %v5062
    %v5407 = vpack.c.b16 %v5067, %v5063
    %v5408 = vpack.c.b16 %v5068, %v5064
    %v5409 = vpack.c.b16 %v5073, %v5069
    %v5410 = vpack.c.b16 %v5074, %v5070
    %v5411 = vpack.c.b16 %v5075, %v5071
    %v5412 = vpack.c.b16 %v5076, %v5072
    %v5413 = vpack.c.b16 %v5081, %v5077
    %v5414 = vpack.c.b16 %v5082, %v5078
    %v5415 = vpack.c.b16 %v5083, %v5079
    %v5416 = vpack.c.b16 %v5084, %v5080
    %v5417 = vpack.c.b16 %v5089, %v5085
    %v5418 = vpack.c.b16 %v5090, %v5086
    %v5419 = vpack.c.b16 %v5091, %v5087
    %v5420 = vpack.c.b16 %v5092, %v5088
    %v5421 = vpack.c.b16 %v5097, %v5093
    %v5422 = vpack.c.b16 %v5098, %v5094
    %v5423 = vpack.c.b16 %v5099, %v5095
    %v5424 = vpack.c.b16 %v5100, %v5096
    %v5425 = vpack.c.b16 %v5105, %v5101
    %v5426 = vpack.c.b16 %v5106, %v5102
    %v5427 = vpack.c.b16 %v5107, %v5103
    %v5428 = vpack.c.b16 %v5108, %v5104
    %v5429 = vpack.c.b16 %v5113, %v5109
    %v5430 = vpack.c.b16 %v5114, %v5110
    %v5431 = vpack.c.b16 %v5115, %v5111
    %v5432 = vpack.c.b16 %v5116, %v5112
    %v5433 = vpack.c.b16 %v5121, %v5117
    %v5434 = vpack.c.b16 %v5122, %v5118
    %v5435 = vpack.c.b16 %v5123, %v5119
    %v5436 = vpack.c.b16 %v5124, %v5120
    %v5437 = vpack.c.b16 %v5129, %v5125
    %v5438 = vpack.c.b16 %v5130, %v5126
    %v5439 = vpack.c.b16 %v5131, %v5127
    %v5440 = vpack.c.b16 %v5132, %v5128
    %v5441 = vpack.c.b16 %v5137, %v5133
    %v5442 = vpack.c.b16 %v5138, %v5134
    %v5443 = vpack.c.b16 %v5139, %v5135
    %v5444 = vpack.c.b16 %v5140, %v5136
    %v5445 = vpack.c.b16 %v5145, %v5141
    %v5446 = vpack.c.b16 %v5146, %v5142
    %v5447 = vpack.c.b16 %v5147, %v5143
    %v5448 = vpack.c.b16 %v5148, %v5144
    %v5449 = vpack.c.b16 %v5153, %v5149
    %v5450 = vpack.c.b16 %v5154, %v5150
    %v5451 = vpack.c.b16 %v5155, %v5151
    %v5452 = vpack.c.b16 %v5156, %v5152
    %v5453 = vpack.c.b16 %v5161, %v5157
    %v5454 = vpack.c.b16 %v5162, %v5158
    %v5455 = vpack.c.b16 %v5163, %v5159
    %v5456 = vpack.c.b16 %v5164, %v5160
    %v5457 = vpack.c.b16 %v5169, %v5165
    %v5458 = vpack.c.b16 %v5170, %v5166
    %v5459 = vpack.c.b16 %v5171, %v5167
    %v5460 = vpack.c.b16 %v5172, %v5168
    %v5461 = vpack.c.b16 %v5177, %v5173
    %v5462 = vpack.c.b16 %v5178, %v5174
    %v5463 = vpack.c.b16 %v5179, %v5175
    %v5464 = vpack.c.b16 %v5180, %v5176
    %v5465 = vpack.c.b16 %v5185, %v5181
    %v5466 = vpack.c.b16 %v5186, %v5182
    %v5467 = vpack.c.b16 %v5187, %v5183
    %v5468 = vpack.c.b16 %v5188, %v5184
    %v5469 = vpack.c.b16 %v5193, %v5189
    %v5470 = vpack.c.b16 %v5194, %v5190
    %v5471 = vpack.c.b16 %v5195, %v5191
    %v5472 = vpack.c.b16 %v5196, %v5192
    %v5473 = vpack.c.b16 %v5201, %v5197
    %v5474 = vpack.c.b16 %v5202, %v5198
    %v5475 = vpack.c.b16 %v5203, %v5199
    %v5476 = vpack.c.b16 %v5204, %v5200
    %v5477 = vpack.c.b16 %v5209, %v5205
    %v5478 = vpack.c.b16 %v5210, %v5206
    %v5479 = vpack.c.b16 %v5211, %v5207
    %v5480 = vpack.c.b16 %v5212, %v5208
    %v5481 = vpack.c.b16 %v5217, %v5213
    %v5482 = vpack.c.b16 %v5218, %v5214
    %v5483 = vpack.c.b16 %v5219, %v5215
    %v5484 = vpack.c.b16 %v5220, %v5216
    %v5485 = vpack.c.b16 %v5225, %v5221
    %v5486 = vpack.c.b16 %v5226, %v5222
    %v5487 = vpack.c.b16 %v5227, %v5223
    %v5488 = vpack.c.b16 %v5228, %v5224
    %v5489 = vpack.c.b16 %v5233, %v5229
    %v5490 = vpack.c.b16 %v5234, %v5230
    %v5491 = vpack.c.b16 %v5235, %v5231
    %v5492 = vpack.c.b16 %v5236, %v5232
    %5749 = vmatprep.subr.bf16.mxu0 %v5238
    %5750 = vmatpush1.bf16.msra.mxu0 %v5237
    %5751 = vmatprep.subr.bf16.mxu0 %v5242
    %5752 = vmatpush1.bf16.msra.mxu0 %v5241
    %5753 = vmatprep.subr.bf16.mxu0 %v5246
    %5754 = vmatpush1.bf16.msra.mxu0 %v5245
    %5755 = vmatprep.subr.bf16.mxu0 %v5250
    %5756 = vmatpush1.bf16.msra.mxu0 %v5249
    %5757 = vmatprep.subr.bf16.mxu0 %v5254
    %5758 = vmatpush1.bf16.msra.mxu0 %v5253
    %5759 = vmatprep.subr.bf16.mxu0 %v5258
    %5760 = vmatpush1.bf16.msra.mxu0 %v5257
    %5761 = vmatprep.subr.bf16.mxu0 %v5262
    %5762 = vmatpush1.bf16.msra.mxu0 %v5261
    %5763 = vmatprep.subr.bf16.mxu0 %v5266
    %5764 = vmatpush1.bf16.msra.mxu0 %v5265
    %5765 = vmatprep.subr.bf16.mxu0 %v5270
    %5766 = vmatpush1.bf16.msra.mxu0 %v5269
    %5767 = vmatprep.subr.bf16.mxu0 %v5274
    %5768 = vmatpush1.bf16.msra.mxu0 %v5273
    %5769 = vmatprep.subr.bf16.mxu0 %v5278
    %5770 = vmatpush1.bf16.msra.mxu0 %v5277
    %5771 = vmatprep.subr.bf16.mxu0 %v5282
    %5772 = vmatpush1.bf16.msra.mxu0 %v5281
    %5773 = vmatprep.subr.bf16.mxu0 %v5286
    %5774 = vmatpush1.bf16.msra.mxu0 %v5285
    %5775 = vmatprep.subr.bf16.mxu0 %v5290
    %5776 = vmatpush1.bf16.msra.mxu0 %v5289
    %5777 = vmatprep.subr.bf16.mxu0 %v5294
    %5778 = vmatpush1.bf16.msra.mxu0 %v5293
    %5779 = vmatprep.subr.bf16.mxu0 %v5298
    %5780 = vmatpush1.bf16.msra.mxu0 %v5297
    %5781 = vmatprep.mubr.bf16.mxu0 %v4184
    %5782 = vmatmul.mubr.bf16.gmra.mrb[0].mxu0 %v4183
    %v5783 = vpop.f32.mrb[0].mxu0
    %v5784 = vadd.f32 %v4452, %v5783
    %v5785 = vpop.f32.mrb[0].mxu0
    %v5786 = vadd.f32 %v4456, %v5785
    %v5787 = vpop.f32.mrb[0].mxu0
    %v5788 = vpop.f32.mrb[0].mxu0
    %5789 = vdwg.mxu0
    %5790 = vmatprep.subr.bf16.mxu0 %v5302
    %5791 = vmatpush1.bf16.msra.mxu0 %v5301
    %5792 = vmatprep.subr.bf16.mxu0 %v5306
    %5793 = vmatpush1.bf16.msra.mxu0 %v5305
    %5794 = vmatprep.subr.bf16.mxu0 %v5310
    %5795 = vmatpush1.bf16.msra.mxu0 %v5309
    %5796 = vmatprep.subr.bf16.mxu0 %v5314
    %5797 = vmatpush1.bf16.msra.mxu0 %v5313
    %5798 = vmatprep.subr.bf16.mxu0 %v5318
    %5799 = vmatpush1.bf16.msra.mxu0 %v5317
    %5800 = vmatprep.subr.bf16.mxu0 %v5322
    %5801 = vmatpush1.bf16.msra.mxu0 %v5321
    %5802 = vmatprep.subr.bf16.mxu0 %v5326
    %5803 = vmatpush1.bf16.msra.mxu0 %v5325
    %5804 = vmatprep.subr.bf16.mxu0 %v5330
    %5805 = vmatpush1.bf16.msra.mxu0 %v5329
    %5806 = vmatprep.subr.bf16.mxu0 %v5334
    %5807 = vmatpush1.bf16.msra.mxu0 %v5333
    %5808 = vmatprep.subr.bf16.mxu0 %v5338
    %5809 = vmatpush1.bf16.msra.mxu0 %v5337
    %5810 = vmatprep.subr.bf16.mxu0 %v5342
    %5811 = vmatpush1.bf16.msra.mxu0 %v5341
    %5812 = vmatprep.subr.bf16.mxu0 %v5346
    %5813 = vmatpush1.bf16.msra.mxu0 %v5345
    %5814 = vmatprep.subr.bf16.mxu0 %v5350
    %5815 = vmatpush1.bf16.msra.mxu0 %v5349
    %5816 = vmatprep.subr.bf16.mxu0 %v5354
    %5817 = vmatpush1.bf16.msra.mxu0 %v5353
    %5818 = vmatprep.subr.bf16.mxu0 %v5358
    %5819 = vmatpush1.bf16.msra.mxu0 %v5357
    %5820 = vmatprep.subr.bf16.mxu0 %v5362
    %5821 = vmatpush1.bf16.msra.mxu0 %v5361
    %5822 = vmatprep.mubr.bf16.mxu0 %v4186
    %5823 = vmatmul.mubr.bf16.gmra.mrb[0].mxu0 %v4185
    %v5824 = vpop.f32.mrb[0].mxu0
    %v5825 = vadd.f32 %v5784, %v5824
    %v5826 = vpop.f32.mrb[0].mxu0
    %v5827 = vadd.f32 %v5786, %v5826
    %v5828 = vpop.f32.mrb[0].mxu0
    %v5829 = vpop.f32.mrb[0].mxu0
    %5830 = vdwg.mxu0
    %5831 = vmatprep.subr.bf16.mxu0 %v5366
    %5832 = vmatpush1.bf16.msra.mxu0 %v5365
    %5833 = vmatprep.subr.bf16.mxu0 %v5370
    %5834 = vmatpush1.bf16.msra.mxu0 %v5369
    %5835 = vmatprep.subr.bf16.mxu0 %v5374
    %5836 = vmatpush1.bf16.msra.mxu0 %v5373
    %5837 = vmatprep.subr.bf16.mxu0 %v5378
    %5838 = vmatpush1.bf16.msra.mxu0 %v5377
    %5839 = vmatprep.subr.bf16.mxu0 %v5382
    %5840 = vmatpush1.bf16.msra.mxu0 %v5381
    %5841 = vmatprep.subr.bf16.mxu0 %v5386
    %5842 = vmatpush1.bf16.msra.mxu0 %v5385
    %5843 = vmatprep.subr.bf16.mxu0 %v5390
    %5844 = vmatpush1.bf16.msra.mxu0 %v5389
    %5845 = vmatprep.subr.bf16.mxu0 %v5394
    %5846 = vmatpush1.bf16.msra.mxu0 %v5393
    %5847 = vmatprep.subr.bf16.mxu0 %v5398
    %5848 = vmatpush1.bf16.msra.mxu0 %v5397
    %5849 = vmatprep.subr.bf16.mxu0 %v5402
    %5850 = vmatpush1.bf16.msra.mxu0 %v5401
    %5851 = vmatprep.subr.bf16.mxu0 %v5406
    %5852 = vmatpush1.bf16.msra.mxu0 %v5405
    %5853 = vmatprep.subr.bf16.mxu0 %v5410
    %5854 = vmatpush1.bf16.msra.mxu0 %v5409
    %5855 = vmatprep.subr.bf16.mxu0 %v5414
    %5856 = vmatpush1.bf16.msra.mxu0 %v5413
    %5857 = vmatprep.subr.bf16.mxu0 %v5418
    %5858 = vmatpush1.bf16.msra.mxu0 %v5417
    %5859 = vmatprep.subr.bf16.mxu0 %v5422
    %5860 = vmatpush1.bf16.msra.mxu0 %v5421
    %5861 = vmatprep.subr.bf16.mxu0 %v5426
    %5862 = vmatpush1.bf16.msra.mxu0 %v5425
    %5863 = vmatprep.mubr.bf16.mxu0 %v4188
    %5864 = vmatmul.mubr.bf16.gmra.mrb[0].mxu0 %v4187
    %v5865 = vpop.f32.mrb[0].mxu0
    %v5866 = vadd.f32 %v5825, %v5865
    %v5867 = vpop.f32.mrb[0].mxu0
    %v5868 = vadd.f32 %v5827, %v5867
    %v5869 = vpop.f32.mrb[0].mxu0
    %v5870 = vpop.f32.mrb[0].mxu0
    %5871 = vdwg.mxu0
    %5872 = vmatprep.subr.bf16.mxu0 %v5430
    %5873 = vmatpush1.bf16.msra.mxu0 %v5429
    %5874 = vmatprep.subr.bf16.mxu0 %v5434
    %5875 = vmatpush1.bf16.msra.mxu0 %v5433
    %5876 = vmatprep.subr.bf16.mxu0 %v5438
    %5877 = vmatpush1.bf16.msra.mxu0 %v5437
    %5878 = vmatprep.subr.bf16.mxu0 %v5442
    %5879 = vmatpush1.bf16.msra.mxu0 %v5441
    %5880 = vmatprep.subr.bf16.mxu0 %v5446
    %5881 = vmatpush1.bf16.msra.mxu0 %v5445
    %5882 = vmatprep.subr.bf16.mxu0 %v5450
    %5883 = vmatpush1.bf16.msra.mxu0 %v5449
    %5884 = vmatprep.subr.bf16.mxu0 %v5454
    %5885 = vmatpush1.bf16.msra.mxu0 %v5453
    %5886 = vmatprep.subr.bf16.mxu0 %v5458
    %5887 = vmatpush1.bf16.msra.mxu0 %v5457
    %5888 = vmatprep.subr.bf16.mxu0 %v5462
    %5889 = vmatpush1.bf16.msra.mxu0 %v5461
    %5890 = vmatprep.subr.bf16.mxu0 %v5466
    %5891 = vmatpush1.bf16.msra.mxu0 %v5465
    %5892 = vmatprep.subr.bf16.mxu0 %v5470
    %5893 = vmatpush1.bf16.msra.mxu0 %v5469
    %5894 = vmatprep.subr.bf16.mxu0 %v5474
    %5895 = vmatpush1.bf16.msra.mxu0 %v5473
    %5896 = vmatprep.subr.bf16.mxu0 %v5478
    %5897 = vmatpush1.bf16.msra.mxu0 %v5477
    %5898 = vmatprep.subr.bf16.mxu0 %v5482
    %5899 = vmatpush1.bf16.msra.mxu0 %v5481
    %5900 = vmatprep.subr.bf16.mxu0 %v5486
    %5901 = vmatpush1.bf16.msra.mxu0 %v5485
    %5902 = vmatprep.subr.bf16.mxu0 %v5490
    %5903 = vmatpush1.bf16.msra.mxu0 %v5489
    %5904 = vmatprep.mubr.bf16.mxu0 %v4190
    %5905 = vmatmul.mubr.bf16.gmra.mrb[0].mxu0 %v4189
    %v5906 = vpop.f32.mrb[0].mxu0
    %v5907 = vadd.f32 %v5866, %v5906
    %v5908 = vpop.f32.mrb[0].mxu0
    %v5909 = vadd.f32 %v5868, %v5908
    %v5910 = vpop.f32.mrb[0].mxu0
    %v5911 = vpop.f32.mrb[0].mxu0
    %5912 = vdwg.mxu0
    %5913 = vmatprep.subr.bf16.mxu0 %v5240
    %5914 = vmatpush1.bf16.msra.mxu0 %v5239
    %5915 = vmatprep.subr.bf16.mxu0 %v5244
    %5916 = vmatpush1.bf16.msra.mxu0 %v5243
    %5917 = vmatprep.subr.bf16.mxu0 %v5248
    %5918 = vmatpush1.bf16.msra.mxu0 %v5247
    %5919 = vmatprep.subr.bf16.mxu0 %v5252
    %5920 = vmatpush1.bf16.msra.mxu0 %v5251
    %5921 = vmatprep.subr.bf16.mxu0 %v5256
    %5922 = vmatpush1.bf16.msra.mxu0 %v5255
    %5923 = vmatprep.subr.bf16.mxu0 %v5260
    %5924 = vmatpush1.bf16.msra.mxu0 %v5259
    %5925 = vmatprep.subr.bf16.mxu0 %v5264
    %5926 = vmatpush1.bf16.msra.mxu0 %v5263
    %5927 = vmatprep.subr.bf16.mxu0 %v5268
    %5928 = vmatpush1.bf16.msra.mxu0 %v5267
    %5929 = vmatprep.subr.bf16.mxu0 %v5272
    %5930 = vmatpush1.bf16.msra.mxu0 %v5271
    %5931 = vmatprep.subr.bf16.mxu0 %v5276
    %5932 = vmatpush1.bf16.msra.mxu0 %v5275
    %5933 = vmatprep.subr.bf16.mxu0 %v5280
    %5934 = vmatpush1.bf16.msra.mxu0 %v5279
    %5935 = vmatprep.subr.bf16.mxu0 %v5284
    %5936 = vmatpush1.bf16.msra.mxu0 %v5283
    %5937 = vmatprep.subr.bf16.mxu0 %v5288
    %5938 = vmatpush1.bf16.msra.mxu0 %v5287
    %5939 = vmatprep.subr.bf16.mxu0 %v5292
    %5940 = vmatpush1.bf16.msra.mxu0 %v5291
    %5941 = vmatprep.subr.bf16.mxu0 %v5296
    %5942 = vmatpush1.bf16.msra.mxu0 %v5295
    %5943 = vmatprep.subr.bf16.mxu0 %v5300
    %5944 = vmatpush1.bf16.msra.mxu0 %v5299
    %5945 = vmatprep.mubr.bf16.mxu0 %v4184
    %5946 = vmatmul.mubr.bf16.gmra.mrb[0].mxu0 %v4183
    %v5947 = vpop.f32.mrb[0].mxu0
    %v5948 = vadd.f32 %v4460, %v5947
    %v5949 = vpop.f32.mrb[0].mxu0
    %v5950 = vadd.f32 %v4464, %v5949
    %v5951 = vpop.f32.mrb[0].mxu0
    %v5952 = vpop.f32.mrb[0].mxu0
    %5953 = vdwg.mxu0
    %5954 = vmatprep.subr.bf16.mxu0 %v5304
    %5955 = vmatpush1.bf16.msra.mxu0 %v5303
    %5956 = vmatprep.subr.bf16.mxu0 %v5308
    %5957 = vmatpush1.bf16.msra.mxu0 %v5307
    %5958 = vmatprep.subr.bf16.mxu0 %v5312
    %5959 = vmatpush1.bf16.msra.mxu0 %v5311
    %5960 = vmatprep.subr.bf16.mxu0 %v5316
    %5961 = vmatpush1.bf16.msra.mxu0 %v5315
    %5962 = vmatprep.subr.bf16.mxu0 %v5320
    %5963 = vmatpush1.bf16.msra.mxu0 %v5319
    %5964 = vmatprep.subr.bf16.mxu0 %v5324
    %5965 = vmatpush1.bf16.msra.mxu0 %v5323
    %5966 = vmatprep.subr.bf16.mxu0 %v5328
    %5967 = vmatpush1.bf16.msra.mxu0 %v5327
    %5968 = vmatprep.subr.bf16.mxu0 %v5332
    %5969 = vmatpush1.bf16.msra.mxu0 %v5331
    %5970 = vmatprep.subr.bf16.mxu0 %v5336
    %5971 = vmatpush1.bf16.msra.mxu0 %v5335
    %5972 = vmatprep.subr.bf16.mxu0 %v5340
    %5973 = vmatpush1.bf16.msra.mxu0 %v5339
    %5974 = vmatprep.subr.bf16.mxu0 %v5344
    %5975 = vmatpush1.bf16.msra.mxu0 %v5343
    %5976 = vmatprep.subr.bf16.mxu0 %v5348
    %5977 = vmatpush1.bf16.msra.mxu0 %v5347
    %5978 = vmatprep.subr.bf16.mxu0 %v5352
    %5979 = vmatpush1.bf16.msra.mxu0 %v5351
    %5980 = vmatprep.subr.bf16.mxu0 %v5356
    %5981 = vmatpush1.bf16.msra.mxu0 %v5355
    %5982 = vmatprep.subr.bf16.mxu0 %v5360
    %5983 = vmatpush1.bf16.msra.mxu0 %v5359
    %5984 = vmatprep.subr.bf16.mxu0 %v5364
    %5985 = vmatpush1.bf16.msra.mxu0 %v5363
    %5986 = vmatprep.mubr.bf16.mxu0 %v4186
    %5987 = vmatmul.mubr.bf16.gmra.mrb[0].mxu0 %v4185
    %v5988 = vpop.f32.mrb[0].mxu0
    %v5989 = vadd.f32 %v5948, %v5988
    %v5990 = vpop.f32.mrb[0].mxu0
    %v5991 = vadd.f32 %v5950, %v5990
    %v5992 = vpop.f32.mrb[0].mxu0
    %v5993 = vpop.f32.mrb[0].mxu0
    %5994 = vdwg.mxu0
    %5995 = vmatprep.subr.bf16.mxu0 %v5368
    %5996 = vmatpush1.bf16.msra.mxu0 %v5367
    %5997 = vmatprep.subr.bf16.mxu0 %v5372
    %5998 = vmatpush1.bf16.msra.mxu0 %v5371
    %5999 = vmatprep.subr.bf16.mxu0 %v5376
    %6000 = vmatpush1.bf16.msra.mxu0 %v5375
    %6001 = vmatprep.subr.bf16.mxu0 %v5380
    %6002 = vmatpush1.bf16.msra.mxu0 %v5379
    %6003 = vmatprep.subr.bf16.mxu0 %v5384
    %6004 = vmatpush1.bf16.msra.mxu0 %v5383
    %6005 = vmatprep.subr.bf16.mxu0 %v5388
    %6006 = vmatpush1.bf16.msra.mxu0 %v5387
    %6007 = vmatprep.subr.bf16.mxu0 %v5392
    %6008 = vmatpush1.bf16.msra.mxu0 %v5391
    %6009 = vmatprep.subr.bf16.mxu0 %v5396
    %6010 = vmatpush1.bf16.msra.mxu0 %v5395
    %6011 = vmatprep.subr.bf16.mxu0 %v5400
    %6012 = vmatpush1.bf16.msra.mxu0 %v5399
    %6013 = vmatprep.subr.bf16.mxu0 %v5404
    %6014 = vmatpush1.bf16.msra.mxu0 %v5403
    %6015 = vmatprep.subr.bf16.mxu0 %v5408
    %6016 = vmatpush1.bf16.msra.mxu0 %v5407
    %6017 = vmatprep.subr.bf16.mxu0 %v5412
    %6018 = vmatpush1.bf16.msra.mxu0 %v5411
    %6019 = vmatprep.subr.bf16.mxu0 %v5416
    %6020 = vmatpush1.bf16.msra.mxu0 %v5415
    %6021 = vmatprep.subr.bf16.mxu0 %v5420
    %6022 = vmatpush1.bf16.msra.mxu0 %v5419
    %6023 = vmatprep.subr.bf16.mxu0 %v5424
    %6024 = vmatpush1.bf16.msra.mxu0 %v5423
    %6025 = vmatprep.subr.bf16.mxu0 %v5428
    %6026 = vmatpush1.bf16.msra.mxu0 %v5427
    %6027 = vmatprep.mubr.bf16.mxu0 %v4188
    %6028 = vmatmul.mubr.bf16.gmra.mrb[0].mxu0 %v4187
    %v6029 = vpop.f32.mrb[0].mxu0
    %v6030 = vadd.f32 %v5989, %v6029
    %v6031 = vpop.f32.mrb[0].mxu0
    %v6032 = vadd.f32 %v5991, %v6031
    %v6033 = vpop.f32.mrb[0].mxu0
    %v6034 = vpop.f32.mrb[0].mxu0
    %6035 = vdwg.mxu0
    %6036 = vmatprep.subr.bf16.mxu0 %v5432
    %6037 = vmatpush1.bf16.msra.mxu0 %v5431
    %6038 = vmatprep.subr.bf16.mxu0 %v5436
    %6039 = vmatpush1.bf16.msra.mxu0 %v5435
    %6040 = vmatprep.subr.bf16.mxu0 %v5440
    %6041 = vmatpush1.bf16.msra.mxu0 %v5439
    %6042 = vmatprep.subr.bf16.mxu0 %v5444
    %6043 = vmatpush1.bf16.msra.mxu0 %v5443
    %6044 = vmatprep.subr.bf16.mxu0 %v5448
    %6045 = vmatpush1.bf16.msra.mxu0 %v5447
    %6046 = vmatprep.subr.bf16.mxu0 %v5452
    %6047 = vmatpush1.bf16.msra.mxu0 %v5451
    %6048 = vmatprep.subr.bf16.mxu0 %v5456
    %6049 = vmatpush1.bf16.msra.mxu0 %v5455
    %6050 = vmatprep.subr.bf16.mxu0 %v5460
    %6051 = vmatpush1.bf16.msra.mxu0 %v5459
    %6052 = vmatprep.subr.bf16.mxu0 %v5464
    %6053 = vmatpush1.bf16.msra.mxu0 %v5463
    %6054 = vmatprep.subr.bf16.mxu0 %v5468
    %6055 = vmatpush1.bf16.msra.mxu0 %v5467
    %6056 = vmatprep.subr.bf16.mxu0 %v5472
    %6057 = vmatpush1.bf16.msra.mxu0 %v5471
    %6058 = vmatprep.subr.bf16.mxu0 %v5476
    %6059 = vmatpush1.bf16.msra.mxu0 %v5475
    %6060 = vmatprep.subr.bf16.mxu0 %v5480
    %6061 = vmatpush1.bf16.msra.mxu0 %v5479
    %6062 = vmatprep.subr.bf16.mxu0 %v5484
    %6063 = vmatpush1.bf16.msra.mxu0 %v5483
    %6064 = vmatprep.subr.bf16.mxu0 %v5488
    %6065 = vmatpush1.bf16.msra.mxu0 %v5487
    %6066 = vmatprep.subr.bf16.mxu0 %v5492
    %6067 = vmatpush1.bf16.msra.mxu0 %v5491
    %6068 = vmatprep.mubr.bf16.mxu0 %v4190
    %6069 = vmatmul.mubr.bf16.gmra.mrb[0].mxu0 %v4189
    %v6070 = vpop.f32.mrb[0].mxu0
    %v6071 = vadd.f32 %v6030, %v6070
    %v6072 = vpop.f32.mrb[0].mxu0
    %v6073 = vadd.f32 %v6032, %v6072
    %v6074 = vpop.f32.mrb[0].mxu0
    %v6075 = vpop.f32.mrb[0].mxu0
    %6076 = vdwg.mxu0
    %v6077 = vmul.f32 %v5907, 0.01
    %v6078 = vmul.f32 %v5909, 0.01
    %v6079 = vmul.f32 %v6071, 0.01
    %v6080 = vmul.f32 %v6073, 0.01
    %v6081 = vmax.f32 %v5907, %v6077
    %v6082 = vmax.f32 %v5909, %v6078
    %v6083 = vmax.f32 %v6071, %v6079
    %v6084 = vmax.f32 %v6073, %v6080
    %v6085 = vpack.c.bf16 %v6081, %v6081
    %v6086 = vpack.c.bf16 %v6082, %v6082
    %v6087 = vpack.c.bf16 %v6083, %v6083
    %v6088 = vpack.c.bf16 %v6084, %v6084
    %v6089 = vld [vmem:[#allocation11] sm:$0xf]
    %v6090 = vld [vmem:[#allocation11 + $0x4] sm:$0xf]
    %v6091 = vld [vmem:[#allocation11 + $0x8] sm:$0xf]
    %v6092 = vld [vmem:[#allocation11 + $0xc] sm:$0xf]
    %v6093 = vld [vmem:[#allocation11 + $0x10] sm:$0xf]
    %v6094 = vld [vmem:[#allocation11 + $0x14] sm:$0xf]
    %v6095 = vld [vmem:[#allocation11 + $0x18] sm:$0xf]
    %v6096 = vld [vmem:[#allocation11 + $0x1c] sm:$0xf]
    %v6097 = vld [vmem:[#allocation11 + $0x20] sm:$0xf]
    %v6098 = vld [vmem:[#allocation11 + $0x24] sm:$0xf]
    %v6099 = vld [vmem:[#allocation11 + $0x28] sm:$0xf]
    %v6100 = vld [vmem:[#allocation11 + $0x2c] sm:$0xf]
    %v6101 = vld [vmem:[#allocation11 + $0x30] sm:$0xf]
    %v6102 = vld [vmem:[#allocation11 + $0x34] sm:$0xf]
    %v6103 = vld [vmem:[#allocation11 + $0x38] sm:$0xf]
    %v6104 = vld [vmem:[#allocation11 + $0x3c] sm:$0xf]
    %v6105 = vld [vmem:[#allocation11 + $0x40] sm:$0xf]
    %v6106 = vld [vmem:[#allocation11 + $0x44] sm:$0xf]
    %v6107 = vld [vmem:[#allocation11 + $0x48] sm:$0xf]
    %v6108 = vld [vmem:[#allocation11 + $0x4c] sm:$0xf]
    %v6109 = vld [vmem:[#allocation11 + $0x50] sm:$0xf]
    %v6110 = vld [vmem:[#allocation11 + $0x54] sm:$0xf]
    %v6111 = vld [vmem:[#allocation11 + $0x58] sm:$0xf]
    %v6112 = vld [vmem:[#allocation11 + $0x5c] sm:$0xf]
    %v6113 = vld [vmem:[#allocation11 + $0x60] sm:$0xf]
    %v6114 = vld [vmem:[#allocation11 + $0x64] sm:$0xf]
    %v6115 = vld [vmem:[#allocation11 + $0x68] sm:$0xf]
    %v6116 = vld [vmem:[#allocation11 + $0x6c] sm:$0xf]
    %v6117 = vld [vmem:[#allocation11 + $0x70] sm:$0xf]
    %v6118 = vld [vmem:[#allocation11 + $0x74] sm:$0xf]
    %v6119 = vld [vmem:[#allocation11 + $0x78] sm:$0xf]
    %v6120 = vld [vmem:[#allocation11 + $0x7c] sm:$0xf]
    %v6121 = vld [vmem:[#allocation11 + $0x80] sm:$0xf]
    %v6122 = vld [vmem:[#allocation11 + $0x84] sm:$0xf]
    %v6123 = vld [vmem:[#allocation11 + $0x88] sm:$0xf]
    %v6124 = vld [vmem:[#allocation11 + $0x8c] sm:$0xf]
    %v6125 = vld [vmem:[#allocation11 + $0x90] sm:$0xf]
    %v6126 = vld [vmem:[#allocation11 + $0x94] sm:$0xf]
    %v6127 = vld [vmem:[#allocation11 + $0x98] sm:$0xf]
    %v6128 = vld [vmem:[#allocation11 + $0x9c] sm:$0xf]
    %v6129 = vld [vmem:[#allocation11 + $0xa0] sm:$0xf]
    %v6130 = vld [vmem:[#allocation11 + $0xa4] sm:$0xf]
    %v6131 = vld [vmem:[#allocation11 + $0xa8] sm:$0xf]
    %v6132 = vld [vmem:[#allocation11 + $0xac] sm:$0xf]
    %v6133 = vld [vmem:[#allocation11 + $0xb0] sm:$0xf]
    %v6134 = vld [vmem:[#allocation11 + $0xb4] sm:$0xf]
    %v6135 = vld [vmem:[#allocation11 + $0xb8] sm:$0xf]
    %v6136 = vld [vmem:[#allocation11 + $0xbc] sm:$0xf]
    %v6137 = vld [vmem:[#allocation11 + $0xc0] sm:$0xf]
    %v6138 = vld [vmem:[#allocation11 + $0xc4] sm:$0xf]
    %v6139 = vld [vmem:[#allocation11 + $0xc8] sm:$0xf]
    %v6140 = vld [vmem:[#allocation11 + $0xcc] sm:$0xf]
    %v6141 = vld [vmem:[#allocation11 + $0xd0] sm:$0xf]
    %v6142 = vld [vmem:[#allocation11 + $0xd4] sm:$0xf]
    %v6143 = vld [vmem:[#allocation11 + $0xd8] sm:$0xf]
    %v6144 = vld [vmem:[#allocation11 + $0xdc] sm:$0xf]
    %v6145 = vld [vmem:[#allocation11 + $0xe0] sm:$0xf]
    %v6146 = vld [vmem:[#allocation11 + $0xe4] sm:$0xf]
    %v6147 = vld [vmem:[#allocation11 + $0xe8] sm:$0xf]
    %v6148 = vld [vmem:[#allocation11 + $0xec] sm:$0xf]
    %v6149 = vld [vmem:[#allocation11 + $0xf0] sm:$0xf]
    %v6150 = vld [vmem:[#allocation11 + $0xf4] sm:$0xf]
    %v6151 = vld [vmem:[#allocation11 + $0xf8] sm:$0xf]
    %v6152 = vld [vmem:[#allocation11 + $0xfc] sm:$0xf]
    %v6153 = vld [vmem:[#allocation13] sm:$0x1]
    %v6155 = vlaneseq
    %v6156 = vshrl.u32 %v6155, 7
    %v6157 = vsub.s32 0, %v6156
    %v6158 = vrot.slane %v6153, %v6157
    %v6224 = vunpack.c.l.b16 %v6089
    %v6225 = vunpack.c.l.b16 %v6090
    %v6226 = vunpack.c.l.b16 %v6091
    %v6227 = vunpack.c.l.b16 %v6092
    %v6228 = vunpack.c.l.b16 %v6093
    %v6229 = vunpack.c.l.b16 %v6094
    %v6230 = vunpack.c.l.b16 %v6095
    %v6231 = vunpack.c.l.b16 %v6096
    %v6232 = vunpack.c.l.b16 %v6097
    %v6233 = vunpack.c.l.b16 %v6098
    %v6234 = vunpack.c.l.b16 %v6099
    %v6235 = vunpack.c.l.b16 %v6100
    %v6236 = vunpack.c.l.b16 %v6101
    %v6237 = vunpack.c.l.b16 %v6102
    %v6238 = vunpack.c.l.b16 %v6103
    %v6239 = vunpack.c.l.b16 %v6104
    %v6240 = vunpack.c.l.b16 %v6105
    %v6241 = vunpack.c.l.b16 %v6106
    %v6242 = vunpack.c.l.b16 %v6107
    %v6243 = vunpack.c.l.b16 %v6108
    %v6244 = vunpack.c.l.b16 %v6109
    %v6245 = vunpack.c.l.b16 %v6110
    %v6246 = vunpack.c.l.b16 %v6111
    %v6247 = vunpack.c.l.b16 %v6112
    %v6248 = vunpack.c.l.b16 %v6113
    %v6249 = vunpack.c.l.b16 %v6114
    %v6250 = vunpack.c.l.b16 %v6115
    %v6251 = vunpack.c.l.b16 %v6116
    %v6252 = vunpack.c.l.b16 %v6117
    %v6253 = vunpack.c.l.b16 %v6118
    %v6254 = vunpack.c.l.b16 %v6119
    %v6255 = vunpack.c.l.b16 %v6120
    %v6256 = vunpack.c.l.b16 %v6121
    %v6257 = vunpack.c.l.b16 %v6122
    %v6258 = vunpack.c.l.b16 %v6123
    %v6259 = vunpack.c.l.b16 %v6124
    %v6260 = vunpack.c.l.b16 %v6125
    %v6261 = vunpack.c.l.b16 %v6126
    %v6262 = vunpack.c.l.b16 %v6127
    %v6263 = vunpack.c.l.b16 %v6128
    %v6264 = vunpack.c.l.b16 %v6129
    %v6265 = vunpack.c.l.b16 %v6130
    %v6266 = vunpack.c.l.b16 %v6131
    %v6267 = vunpack.c.l.b16 %v6132
    %v6268 = vunpack.c.l.b16 %v6133
    %v6269 = vunpack.c.l.b16 %v6134
    %v6270 = vunpack.c.l.b16 %v6135
    %v6271 = vunpack.c.l.b16 %v6136
    %v6272 = vunpack.c.l.b16 %v6137
    %v6273 = vunpack.c.l.b16 %v6138
    %v6274 = vunpack.c.l.b16 %v6139
    %v6275 = vunpack.c.l.b16 %v6140
    %v6276 = vunpack.c.l.b16 %v6141
    %v6277 = vunpack.c.l.b16 %v6142
    %v6278 = vunpack.c.l.b16 %v6143
    %v6279 = vunpack.c.l.b16 %v6144
    %v6280 = vunpack.c.l.b16 %v6145
    %v6281 = vunpack.c.l.b16 %v6146
    %v6282 = vunpack.c.l.b16 %v6147
    %v6283 = vunpack.c.l.b16 %v6148
    %v6284 = vunpack.c.l.b16 %v6149
    %v6285 = vunpack.c.l.b16 %v6150
    %v6286 = vunpack.c.l.b16 %v6151
    %v6287 = vunpack.c.l.b16 %v6152
    %v6288 = vpack.c.b16 %v6225, %v6224
    %v6289 = vpack.c.b16 %v6227, %v6226
    %v6290 = vpack.c.b16 %v6229, %v6228
    %v6291 = vpack.c.b16 %v6231, %v6230
    %v6292 = vpack.c.b16 %v6233, %v6232
    %v6293 = vpack.c.b16 %v6235, %v6234
    %v6294 = vpack.c.b16 %v6237, %v6236
    %v6295 = vpack.c.b16 %v6239, %v6238
    %v6296 = vpack.c.b16 %v6241, %v6240
    %v6297 = vpack.c.b16 %v6243, %v6242
    %v6298 = vpack.c.b16 %v6245, %v6244
    %v6299 = vpack.c.b16 %v6247, %v6246
    %v6300 = vpack.c.b16 %v6249, %v6248
    %v6301 = vpack.c.b16 %v6251, %v6250
    %v6302 = vpack.c.b16 %v6253, %v6252
    %v6303 = vpack.c.b16 %v6255, %v6254
    %v6304 = vpack.c.b16 %v6257, %v6256
    %v6305 = vpack.c.b16 %v6259, %v6258
    %v6306 = vpack.c.b16 %v6261, %v6260
    %v6307 = vpack.c.b16 %v6263, %v6262
    %v6308 = vpack.c.b16 %v6265, %v6264
    %v6309 = vpack.c.b16 %v6267, %v6266
    %v6310 = vpack.c.b16 %v6269, %v6268
    %v6311 = vpack.c.b16 %v6271, %v6270
    %v6312 = vpack.c.b16 %v6273, %v6272
    %v6313 = vpack.c.b16 %v6275, %v6274
    %v6314 = vpack.c.b16 %v6277, %v6276
    %v6315 = vpack.c.b16 %v6279, %v6278
    %v6316 = vpack.c.b16 %v6281, %v6280
    %v6317 = vpack.c.b16 %v6283, %v6282
    %v6318 = vpack.c.b16 %v6285, %v6284
    %v6319 = vpack.c.b16 %v6287, %v6286
    %6352 = vmatprep.subr.bf16.mxu0 0
    %6353 = vmatpush1.bf16.msra.mxu0 %v6288
    %6354 = vmatprep.subr.bf16.mxu0 0
    %6355 = vmatpush1.bf16.msra.mxu0 %v6289
    %6356 = vmatprep.subr.bf16.mxu0 0
    %6357 = vmatpush1.bf16.msra.mxu0 %v6290
    %6358 = vmatprep.subr.bf16.mxu0 0
    %6359 = vmatpush1.bf16.msra.mxu0 %v6291
    %6360 = vmatprep.subr.bf16.mxu0 0
    %6361 = vmatpush1.bf16.msra.mxu0 %v6292
    %6362 = vmatprep.subr.bf16.mxu0 0
    %6363 = vmatpush1.bf16.msra.mxu0 %v6293
    %6364 = vmatprep.subr.bf16.mxu0 0
    %6365 = vmatpush1.bf16.msra.mxu0 %v6294
    %6366 = vmatprep.subr.bf16.mxu0 0
    %6367 = vmatpush1.bf16.msra.mxu0 %v6295
    %6368 = vmatprep.subr.bf16.mxu0 0
    %6369 = vmatpush1.bf16.msra.mxu0 %v6296
    %6370 = vmatprep.subr.bf16.mxu0 0
    %6371 = vmatpush1.bf16.msra.mxu0 %v6297
    %6372 = vmatprep.subr.bf16.mxu0 0
    %6373 = vmatpush1.bf16.msra.mxu0 %v6298
    %6374 = vmatprep.subr.bf16.mxu0 0
    %6375 = vmatpush1.bf16.msra.mxu0 %v6299
    %6376 = vmatprep.subr.bf16.mxu0 0
    %6377 = vmatpush1.bf16.msra.mxu0 %v6300
    %6378 = vmatprep.subr.bf16.mxu0 0
    %6379 = vmatpush1.bf16.msra.mxu0 %v6301
    %6380 = vmatprep.subr.bf16.mxu0 0
    %6381 = vmatpush1.bf16.msra.mxu0 %v6302
    %6382 = vmatprep.subr.bf16.mxu0 0
    %6383 = vmatpush1.bf16.msra.mxu0 %v6303
    %6384 = vmatprep.mubr.bf16.mxu0 %v6086
    %6385 = vmatmul.mubr.bf16.gmra.mrb[0].mxu0 %v6085
    %v6386 = vpop.f32.mrb[0].mxu0
    %v6387 = vadd.f32 %v6158, %v6386
    %v6388 = vpop.f32.mrb[0].mxu0
    %v6389 = vpop.f32.mrb[0].mxu0
    %v6390 = vpop.f32.mrb[0].mxu0
    %6391 = vdwg.mxu0
    %6392 = vmatprep.subr.bf16.mxu0 0
    %6393 = vmatpush1.bf16.msra.mxu0 %v6304
    %6394 = vmatprep.subr.bf16.mxu0 0
    %6395 = vmatpush1.bf16.msra.mxu0 %v6305
    %6396 = vmatprep.subr.bf16.mxu0 0
    %6397 = vmatpush1.bf16.msra.mxu0 %v6306
    %6398 = vmatprep.subr.bf16.mxu0 0
    %6399 = vmatpush1.bf16.msra.mxu0 %v6307
    %6400 = vmatprep.subr.bf16.mxu0 0
    %6401 = vmatpush1.bf16.msra.mxu0 %v6308
    %6402 = vmatprep.subr.bf16.mxu0 0
    %6403 = vmatpush1.bf16.msra.mxu0 %v6309
    %6404 = vmatprep.subr.bf16.mxu0 0
    %6405 = vmatpush1.bf16.msra.mxu0 %v6310
    %6406 = vmatprep.subr.bf16.mxu0 0
    %6407 = vmatpush1.bf16.msra.mxu0 %v6311
    %6408 = vmatprep.subr.bf16.mxu0 0
    %6409 = vmatpush1.bf16.msra.mxu0 %v6312
    %6410 = vmatprep.subr.bf16.mxu0 0
    %6411 = vmatpush1.bf16.msra.mxu0 %v6313
    %6412 = vmatprep.subr.bf16.mxu0 0
    %6413 = vmatpush1.bf16.msra.mxu0 %v6314
    %6414 = vmatprep.subr.bf16.mxu0 0
    %6415 = vmatpush1.bf16.msra.mxu0 %v6315
    %6416 = vmatprep.subr.bf16.mxu0 0
    %6417 = vmatpush1.bf16.msra.mxu0 %v6316
    %6418 = vmatprep.subr.bf16.mxu0 0
    %6419 = vmatpush1.bf16.msra.mxu0 %v6317
    %6420 = vmatprep.subr.bf16.mxu0 0
    %6421 = vmatpush1.bf16.msra.mxu0 %v6318
    %6422 = vmatprep.subr.bf16.mxu0 0
    %6423 = vmatpush1.bf16.msra.mxu0 %v6319
    %6424 = vmatprep.mubr.bf16.mxu0 %v6088
    %6425 = vmatmul.mubr.bf16.gmra.mrb[0].mxu0 %v6087
    %v6426 = vpop.f32.mrb[0].mxu0
    %v6427 = vadd.f32 %v6387, %v6426
    %v6428 = vpop.f32.mrb[0].mxu0
    %v6429 = vpop.f32.mrb[0].mxu0
    %v6430 = vpop.f32.mrb[0].mxu0
    %6431 = vdwg.mxu0
    %v6432 = vsel %vm3322, %v6427, -inf
    %6433 = vmax.xlane.f32.xlu0 %v6432
    %v6434 = vpop.xlane.xlu0 %6433
    %v6435 = vsub.f32 %v6427, %v6434
    %v6436 = vmul.f32 %v6435, 1.442695
    %v6437 = vpow.pop %v6436
    %v6438 = vsel %vm3322, %v6437, 0.0
    %6439 = vadd.xlane.f32.xlu0 %v6438
    %v6440 = vpop.xlane.xlu0 %6439
    %v6441 = vrcp.pop %v6440
    %v6442 = vmul.f32 %v6437, %v6441
    %6443 = vst [vmem:[#allocation14] sm:$0x3] %v6442
    // Predicated region
    $region58: #{tpu_custom_call.1} parent=1 // pred_check
      _
    $region59: #{tpu_custom_call.1} parent=1 // pred_check_branch
      %6445 = sbr.rel (0) target = $region61
    $region60: #{tpu_custom_call.1} parent=1 // pred_region
      %s6447 = ssub.s32 32, 32
      %6448 = vsyncadd [#allocation4], %s6447
      %s6450 = sshll.u32 [#allocation14], 4
      %s6451 = int_to_ptr.vmem [resolvable:$true] %s6450
      %6453 = dma.vmem_to_hbm [thread:$0]  %s6451, 32, %s7, [#allocation4]
    $region61: #{tpu_custom_call.1} parent=1 // pred_fallthru
      _
    // Predicated region
    $region62: #{tpu_custom_call.1} parent=1 // pred_check
      _
    $region63: #{tpu_custom_call.1} parent=1 // pred_check_branch
      %6455 = sbr.rel (0) target = $region65
    $region64: #{tpu_custom_call.1} parent=1 // pred_region
      %6456 = dma.done [#allocation4], 32
    $region65: #{tpu_custom_call.1} parent=1 // pred_fallthru
      _
    %6457 = vsyncpa [#allocation3], 1
    %6458 = vsyncpa [#allocation6], 1
    %6459 = vsyncpa [#allocation9], 1
    %6460 = vsyncpa [#allocation12], 1
    %6461 = vsyncpa [#allocation4], 1

</llo_original>
